<compile_context>
chip_gen: v7x
topology: tpu7x:2x2x1
jax: 0.10.0
libtpu: 0.0.40
codegen_flags: <defaults>
</compile_context>

<pallas_src>
import functools
import math

import numpy as np
import jax
import jax.numpy as jnp
from jax import lax
from jax.experimental import pallas as pl
from jax.experimental.pallas import tpu as pltpu

NEG_INF = -1e30  # finite stand-in for float('-inf'): 0 * NEG_INF stays finite
                 # in the counts·table dot (0 * -inf would be NaN).


def _round_up(x, k):
    return ((x + k - 1) // k) * k


def _device_defaults():
    """Per-chip defaults: counts dtype, VMEM limit, target lane width R."""
    try:
        kind = jax.devices()[0].device_kind.lower()
    except Exception:
        kind = ""
    newer = ("v6" in kind) or ("v7" in kind)     # bf16 VALU available
    is_v7x = "v7" in kind                        # 64 MiB physical VMEM
    counts_dtype = jnp.bfloat16 if newer else jnp.float32
    vmem_limit = (32 if is_v7x else 64) * 1024 * 1024
    target_r = 256 if is_v7x else 512
    return counts_dtype, vmem_limit, target_r


# ----------------------------------------------------------------------------
# Fused attention kernel: __calcAttention + __getUnigramLoss per-entry terms.
# Grid: (batch tiles ["parallel"], vocab tiles ["arbitrary"]).
# ----------------------------------------------------------------------------
def _optok_attn_kernel(table_ref, ids_ref, invlens_ref, stats_ref, logps_acc,
                       *, tau, M, counts_dtype):
    j = pl.program_id(1)                       # vocab tile index (reduction)

    @pl.when(j == 0)
    def _():
        logps_acc[...] = jnp.zeros_like(logps_acc)

    ids = ids_ref[...]                          # (R, L) int32
    R, L = ids.shape
    tile_v = table_ref.shape[-1]

    # shift ids into this tile's local vocab range; non-members never match
    ids_local = ids - j * tile_v
    lane = lax.broadcasted_iota(jnp.int32, (1, tile_v), 1)   # (1, tile_v)

    # Per-row occurrence counts of each local vocab id.  (1, tile_v) iota
    # broadcast against an (R, 1) token column keeps the live temp at
    # (R, tile_v); counts accumulate in bf16 on v6e/v7x (exact for L <= 256).
    # TODO(synk): lax.fori_loop(unroll=True) was suggested to cap live ranges,
    # but it turns the lane-dim token slice dynamic (fragile Mosaic lowering);
    # with vocab tiling the per-iteration temp is bounded by R*tile_v anyway.
    counts = jnp.zeros((R, tile_v), counts_dtype)
    for l in range(L):
        counts = counts + (lane == ids_local[:, l:l + 1]).astype(counts_dtype)

    # partial logPs for this vocab tile: counts (R, tv) · table (1, tv)^T (MXU)
    part = lax.dot_general(counts.astype(jnp.float32), table_ref[...],
                           (((1,), (1,)), ((), ())),
                           preferred_element_type=jnp.float32)        # (R, 1)
    logps_acc[...] += part

    @pl.when(j == pl.num_programs(1) - 1)
    def _():
        TB = R // M
        logps = logps_acc[...].reshape(TB, M)

        # softattn = exp(logPs - logsumexp(logPs, dim=1))
        mx = jnp.max(logps, axis=-1, keepdims=True)
        ex = jnp.exp(logps - mx)
        soft = ex / jnp.sum(ex, axis=-1, keepdims=True)

        # samplingMode == 'temp': softmax((logPs - max) / tau)
        pt = jnp.exp((logps - mx) * (1.0 / tau))
        attn = pt / jnp.sum(pt, axis=-1, keepdims=True)

        # __getUnigramLoss per-entry terms: -logPs * attn * (1/lens)
        wlp = (-logps) * attn * invlens_ref[...]

        # lane-dense (4, R) stats slab, written row by row (no concat temp)
        stats_ref[0:1, :] = logps.reshape(1, R)
        stats_ref[1:2, :] = soft.reshape(1, R)
        stats_ref[2:3, :] = attn.reshape(1, R)
        stats_ref[3:4, :] = wlp.reshape(1, R)


# ----------------------------------------------------------------------------
# Wrapper ("OpTok.forward" tensor path)
# ----------------------------------------------------------------------------
@functools.partial(jax.jit, static_argnames=("lam", "tau", "block_b", "tile_v",
                                             "counts_dtype", "vmem_limit_bytes"))
def _optok_forward_impl(lm_embed, nlm_w, id_nbests, lens, *, lam, tau, block_b,
                        tile_v, counts_dtype, vmem_limit_bytes):
    V, E = lm_embed.shape
    B, M, L = id_nbests.shape
    Vp = _round_up(V + 2, tile_v)
    nv = Vp // tile_v

    # ---- hoisted __getLogTheta (tiny XLA op; NOT recomputed per grid step) --
    logits = lm_embed.astype(jnp.float32) @ nlm_w.astype(jnp.float32)   # (V,)
    log_theta = logits - jax.scipy.special.logsumexp(logits)
    # gather table: [0,V) -> log_theta ; V -> minfPaddingIdx (finite -inf
    # stand-in, never gathered) ; V+1 and pad lanes -> 0.0 (zeroPaddingIdx)
    table = jnp.zeros((1, Vp), jnp.float32)
    table = table.at[0, :V].set(log_theta).at[0, V].set(NEG_INF)

    Bp = _round_up(B, block_b)
    nb = Bp // block_b
    R = block_b * M                               # lane width of the stats slab

    ids_p = id_nbests.astype(jnp.int32)
    inv_lens = 1.0 / lens.astype(jnp.float32)     # reciprocal hoisted (item 12)
    if Bp != B:   # pad batch with all-zeroPaddingIdx rows (logPs=0, wlp 0)
        ids_p = jnp.full((Bp, M, L), V + 1, jnp.int32).at[:B].set(ids_p)
        inv_lens = jnp.ones((Bp, M), jnp.float32).at[:B].set(inv_lens)
    # wrapper-side layout plumbing: kernel blocks arrive already (R, L)-shaped
    ids_p = ids_p.reshape(nb, R, L)
    inv_lens = inv_lens.reshape(nb, block_b, M)

    stats = pl.pallas_call(
        functools.partial(_optok_attn_kernel, tau=tau, M=M,
                          counts_dtype=counts_dtype),
        grid=(nb, nv),
        in_specs=[pl.BlockSpec((1, tile_v), lambda i, j: (0, j)),
                  pl.BlockSpec((None, R, L), lambda i, j: (i, 0, 0)),
                  pl.BlockSpec((None, block_b, M), lambda i, j: (i, 0, 0))],
        out_specs=pl.BlockSpec((None, 4, R), lambda i, j: (i, 0, 0)),
        out_shape=jax.ShapeDtypeStruct((nb, 4, R), jnp.float32),
        scratch_shapes=[pltpu.VMEM((R, 1), jnp.float32)],
        compiler_params=pltpu.CompilerParams(
            dimension_semantics=("parallel", "arbitrary"),
            vmem_limit_bytes=vmem_limit_bytes),
    )(table, ids_p, inv_lens)

    # layout plumbing: (nb, 4, R) -> (4, Bp, M), drop padded batch rows
    stats = stats.reshape(nb, 4, block_b, M).transpose(1, 0, 2, 3).reshape(4, Bp, M)
    logps = stats[0, :B]
    softattn = stats[1, :B]
    attn = stats[2, :B]
    wlp = stats[3, :B]
    loss = jnp.sum(wlp) / (B * M)                 # __getUnigramLoss scalar mean

    return logps, softattn, attn, loss, log_theta, lam * log_theta


def optok_forward(lm_embed, nlm_w, id_nbests, lens, *, lam=0.2, tau=0.1,
                  block_b=None, tile_v=None, counts_dtype=None,
                  vmem_limit_bytes=None):
    """lm_embed: (V, E) f32, nlm_w: (E,) f32,
    id_nbests: (B, M, L) int32 padded with zeroPaddingIdx = V + 1,
    lens: (B, M) f32 (token counts per n-best entry)."""
    V, _ = lm_embed.shape
    B, M, L = id_nbests.shape

    d_dtype, d_vmem, d_target_r = _device_defaults()
    if counts_dtype is None:
        counts_dtype = d_dtype
    if vmem_limit_bytes is None:
        vmem_limit_bytes = d_vmem
    if tile_v is None:
        tile_v = min(_round_up(V + 2, 128), 2048)     # vocab tile (item 2)
    if block_b is None:
        # smallest block_b giving R = block_b*M a multiple of 128, scaled up
        # toward the per-chip target R without exceeding the batch (item 7/8)
        base = 128 // math.gcd(M, 128)
        mult = max(1, min(d_target_r // (base * M), -(-B // base)))
        block_b = base * mult
    if np.dtype(counts_dtype) == np.dtype(jnp.bfloat16):
        assert L <= 256, "bf16 counts are only exact for L <= 256"

    return _optok_forward_impl(lm_embed, nlm_w, id_nbests, lens, lam=lam,
                               tau=tau, block_b=block_b, tile_v=tile_v,
                               counts_dtype=counts_dtype,
                               vmem_limit_bytes=vmem_limit_bytes)


# Pure-JAX reference for correctness checking.
def _reference(lm_embed, nlm_w, ids, lens, tau):
    logits = lm_embed @ nlm_w
    log_theta = logits - jax.scipy.special.logsumexp(logits)
    table = jnp.concatenate([log_theta, jnp.array([NEG_INF, 0.0], jnp.float32)])
    logps = table[ids].sum(-1)
    soft = jax.nn.softmax(logps, axis=-1)
    mx = logps.max(-1, keepdims=True)
    pt = jnp.exp((logps - mx) / tau)
    attn = pt / pt.sum(-1, keepdims=True)
    loss = jnp.sum(-logps * attn / lens) / logps.size
    return logps, soft, attn, loss, log_theta


if __name__ == "__main__":
    key = jax.random.PRNGKey(0)
    k1, k2, k3, k4 = jax.random.split(key, 4)

    V, E = 30, 16      # vocab size, embed size
    B, M, L = 4, 4, 8  # batch (lines), m n-bests per line, max segmentation length
    tau, lam = 0.1, 0.2
    zero_pad_idx = V + 1

    lm_embed = jax.random.normal(k1, (V, E), jnp.float32) * 0.1
    nlm_w = jax.random.normal(k2, (E,), jnp.float32) * 0.1

    # synthetic n-best id segmentations, padded with zeroPaddingIdx
    lengths = jax.random.randint(k3, (B, M), 3, L + 1)              # 3..L tokens
    raw_ids = jax.random.randint(k4, (B, M, L), 0, V)
    pos = jnp.arange(L)[None, None, :]
    ids = jnp.where(pos < lengths[..., None], raw_ids, zero_pad_idx).astype(jnp.int32)
    lens = lengths.astype(jnp.float32)

    outs = optok_forward(lm_embed, nlm_w, ids, lens, lam=lam, tau=tau)
    outs = jax.block_until_ready(outs)
    logps, soft, attn, loss, log_theta, log_smoothed = outs

    r_logps, r_soft, r_attn, r_loss, r_log_theta = _reference(lm_embed, nlm_w,
                                                              ids, lens, tau)
    assert jnp.allclose(log_theta, r_log_theta, atol=1e-3, rtol=1e-3)
    assert jnp.allclose(log_smoothed, lam * r_log_theta, atol=1e-3, rtol=1e-3)
    assert jnp.allclose(logps, r_logps, atol=1e-3, rtol=1e-3)
    assert jnp.allclose(soft, r_soft, atol=1e-4, rtol=1e-3)
    assert jnp.allclose(attn, r_attn, atol=1e-4, rtol=1e-3)
    assert jnp.allclose(loss, r_loss, atol=1e-3, rtol=1e-3)

    print("KERNEL_OK")
</pallas_src>

<mosaic_0001>
module attributes {stable_mosaic.version = 11 : i64} {
  func.func @_optok_attn_kernel(%arg0: i32, %arg1: i32, %arg2: memref<1x128xf32, #tpu.memory_space<vmem>>, %arg3: memref<1x128x8xi32, #tpu.memory_space<vmem>>, %arg4: memref<1x32x4xf32, #tpu.memory_space<vmem>>, %arg5: memref<1x4x128xf32, #tpu.memory_space<vmem>>, %arg6: memref<128x1xf32, #tpu.memory_space<vmem>>) attributes {dimension_semantics = [#tpu.dimension_semantics<parallel>, #tpu.dimension_semantics<arbitrary>], iteration_bounds = array<i64: 1, 1>, scalar_prefetch = 0 : i64, scratch_operands = 1 : i64, tpu.core_type = #tpu.core_type<tc>, window_params = [{transform_indices = @transform_0, window_bounds = array<i64: 1, 128>}, {transform_indices = @transform_1, window_bounds = array<i64: 1, 128, 8>}, {transform_indices = @transform_2, window_bounds = array<i64: 1, 32, 4>}, {transform_indices = @transform_3, window_bounds = array<i64: 1, 4, 128>}]} {
    %c0_i32 = arith.constant 0 : i32
    %0 = arith.cmpi eq, %arg1, %c0_i32 : i32
    %1 = arith.extui %0 : i1 to i32
    %c0_i32_0 = arith.constant 0 : i32
    %2 = arith.cmpi ne, %1, %c0_i32_0 : i32
    scf.if %2 {
      %cst_12 = arith.constant 0.000000e+00 : f32
      %74 = vector.broadcast %cst_12 : f32 to vector<128x1xf32>
      %c0_13 = arith.constant 0 : index
      %c0_14 = arith.constant 0 : index
      %75 = vector.load %arg6[%c0_13, %c0_14] : memref<128x1xf32, #tpu.memory_space<vmem>>, vector<128x1xf32>
      tpu.vector_store %arg6[%c0_13, %c0_14], %74 {strides = array<i32>} : memref<128x1xf32, #tpu.memory_space<vmem>>, vector<128x1xf32>,
    } else {
    }
    %c0 = arith.constant 0 : index
    %c0_1 = arith.constant 0 : index
    %c0_2 = arith.constant 0 : index
    %3 = vector.load %arg3[%c0, %c0_1, %c0_2] : memref<1x128x8xi32, #tpu.memory_space<vmem>>, vector<1x128x8xi32>
    %4 = vector.shape_cast %3 : vector<1x128x8xi32> to vector<128x8xi32>
    %c128_i32 = arith.constant 128 : i32
    %5 = arith.muli %arg1, %c128_i32 : i32
    %6 = vector.broadcast %5 : i32 to vector<128x8xi32>
    %7 = arith.subi %4, %6 : vector<128x8xi32>
    %8 = tpu.iota {dimensions = array<i32: 1>} : vector<1x128xi32>
    %cst = arith.constant 0.000000e+00 : f32
    %9 = vector.broadcast %cst : f32 to vector<128x128xf32>
    %10 = vector.extract_strided_slice %7 {offsets = [0, 0], sizes = [128, 1], strides = [1, 1]} : vector<128x8xi32> to vector<128x1xi32>
    %11 = vector.broadcast %8 : vector<1x128xi32> to vector<128x128xi32>
    %12 = vector.broadcast %10 : vector<128x1xi32> to vector<128x128xi32>
    %13 = arith.cmpi eq, %11, %12 : vector<128x128xi32>
    %14 = arith.extui %13 : vector<128x128xi1> to vector<128x128xi32>
    %15 = arith.sitofp %14 : vector<128x128xi32> to vector<128x128xf32>
    %16 = arith.addf %9, %15 : vector<128x128xf32>
    %17 = vector.extract_strided_slice %7 {offsets = [0, 1], sizes = [128, 1], strides = [1, 1]} : vector<128x8xi32> to vector<128x1xi32>
    %18 = vector.broadcast %8 : vector<1x128xi32> to vector<128x128xi32>
    %19 = vector.broadcast %17 : vector<128x1xi32> to vector<128x128xi32>
    %20 = arith.cmpi eq, %18, %19 : vector<128x128xi32>
    %21 = arith.extui %20 : vector<128x128xi1> to vector<128x128xi32>
    %22 = arith.sitofp %21 : vector<128x128xi32> to vector<128x128xf32>
    %23 = arith.addf %16, %22 : vector<128x128xf32>
    %24 = vector.extract_strided_slice %7 {offsets = [0, 2], sizes = [128, 1], strides = [1, 1]} : vector<128x8xi32> to vector<128x1xi32>
    %25 = vector.broadcast %8 : vector<1x128xi32> to vector<128x128xi32>
    %26 = vector.broadcast %24 : vector<128x1xi32> to vector<128x128xi32>
    %27 = arith.cmpi eq, %25, %26 : vector<128x128xi32>
    %28 = arith.extui %27 : vector<128x128xi1> to vector<128x128xi32>
    %29 = arith.sitofp %28 : vector<128x128xi32> to vector<128x128xf32>
    %30 = arith.addf %23, %29 : vector<128x128xf32>
    %31 = vector.extract_strided_slice %7 {offsets = [0, 3], sizes = [128, 1], strides = [1, 1]} : vector<128x8xi32> to vector<128x1xi32>
    %32 = vector.broadcast %8 : vector<1x128xi32> to vector<128x128xi32>
    %33 = vector.broadcast %31 : vector<128x1xi32> to vector<128x128xi32>
    %34 = arith.cmpi eq, %32, %33 : vector<128x128xi32>
    %35 = arith.extui %34 : vector<128x128xi1> to vector<128x128xi32>
    %36 = arith.sitofp %35 : vector<128x128xi32> to vector<128x128xf32>
    %37 = arith.addf %30, %36 : vector<128x128xf32>
    %38 = vector.extract_strided_slice %7 {offsets = [0, 4], sizes = [128, 1], strides = [1, 1]} : vector<128x8xi32> to vector<128x1xi32>
    %39 = vector.broadcast %8 : vector<1x128xi32> to vector<128x128xi32>
    %40 = vector.broadcast %38 : vector<128x1xi32> to vector<128x128xi32>
    %41 = arith.cmpi eq, %39, %40 : vector<128x128xi32>
    %42 = arith.extui %41 : vector<128x128xi1> to vector<128x128xi32>
    %43 = arith.sitofp %42 : vector<128x128xi32> to vector<128x128xf32>
    %44 = arith.addf %37, %43 : vector<128x128xf32>
    %45 = vector.extract_strided_slice %7 {offsets = [0, 5], sizes = [128, 1], strides = [1, 1]} : vector<128x8xi32> to vector<128x1xi32>
    %46 = vector.broadcast %8 : vector<1x128xi32> to vector<128x128xi32>
    %47 = vector.broadcast %45 : vector<128x1xi32> to vector<128x128xi32>
    %48 = arith.cmpi eq, %46, %47 : vector<128x128xi32>
    %49 = arith.extui %48 : vector<128x128xi1> to vector<128x128xi32>
    %50 = arith.sitofp %49 : vector<128x128xi32> to vector<128x128xf32>
    %51 = arith.addf %44, %50 : vector<128x128xf32>
    %52 = vector.extract_strided_slice %7 {offsets = [0, 6], sizes = [128, 1], strides = [1, 1]} : vector<128x8xi32> to vector<128x1xi32>
    %53 = vector.broadcast %8 : vector<1x128xi32> to vector<128x128xi32>
    %54 = vector.broadcast %52 : vector<128x1xi32> to vector<128x128xi32>
    %55 = arith.cmpi eq, %53, %54 : vector<128x128xi32>
    %56 = arith.extui %55 : vector<128x128xi1> to vector<128x128xi32>
    %57 = arith.sitofp %56 : vector<128x128xi32> to vector<128x128xf32>
    %58 = arith.addf %51, %57 : vector<128x128xf32>
    %59 = vector.extract_strided_slice %7 {offsets = [0, 7], sizes = [128, 1], strides = [1, 1]} : vector<128x8xi32> to vector<128x1xi32>
    %60 = vector.broadcast %8 : vector<1x128xi32> to vector<128x128xi32>
    %61 = vector.broadcast %59 : vector<128x1xi32> to vector<128x128xi32>
    %62 = arith.cmpi eq, %60, %61 : vector<128x128xi32>
    %63 = arith.extui %62 : vector<128x128xi1> to vector<128x128xi32>
    %64 = arith.sitofp %63 : vector<128x128xi32> to vector<128x128xf32>
    %65 = arith.addf %58, %64 : vector<128x128xf32>
    %c0_3 = arith.constant 0 : index
    %c0_4 = arith.constant 0 : index
    %66 = vector.load %arg2[%c0_3, %c0_4] : memref<1x128xf32, #tpu.memory_space<vmem>>, vector<1x128xf32>
    %cst_5 = arith.constant dense<0.000000e+00> : vector<128x1xf32>
    %67 = tpu.matmul %65, %66, %cst_5 {dimension_numbers = #tpu.dot_dimension_numbers<[1], [1], [0], [0], [0, 0, 1, 0], [], []>} : vector<128x128xf32>, vector<1x128xf32>, vector<128x1xf32> -> vector<128x1xf32>
    %c0_6 = arith.constant 0 : index
    %c0_7 = arith.constant 0 : index
    %68 = vector.load %arg6[%c0_6, %c0_7] : memref<128x1xf32, #tpu.memory_space<vmem>>, vector<128x1xf32>
    %69 = arith.addf %68, %67 : vector<128x1xf32>
    %c0_8 = arith.constant 0 : index
    %c0_9 = arith.constant 0 : index
    %70 = vector.load %arg6[%c0_8, %c0_9] : memref<128x1xf32, #tpu.memory_space<vmem>>, vector<128x1xf32>
    tpu.vector_store %arg6[%c0_8, %c0_9], %69 {strides = array<i32>} : memref<128x1xf32, #tpu.memory_space<vmem>>, vector<128x1xf32>,
    %c0_i32_10 = arith.constant 0 : i32
    %71 = arith.cmpi eq, %arg1, %c0_i32_10 : i32
    %72 = arith.extui %71 : i1 to i32
    %c0_i32_11 = arith.constant 0 : i32
    %73 = arith.cmpi ne, %72, %c0_i32_11 : i32
    scf.if %73 {
      %c0_12 = arith.constant 0 : index
      %c0_13 = arith.constant 0 : index
      %74 = vector.load %arg6[%c0_12, %c0_13] : memref<128x1xf32, #tpu.memory_space<vmem>>, vector<128x1xf32>
      %75 = vector.shape_cast %74 : vector<128x1xf32> to vector<32x4xf32>
      %cst_14 = arith.constant dense<0xFF800000> : vector<32xf32>
      %76 = vector.multi_reduction <maximumf>, %75, %cst_14 [1] : vector<32x4xf32> to vector<32xf32>
      %77 = vector.shape_cast %76 : vector<32xf32> to vector<32x1xf32>
      %78 = vector.broadcast %77 : vector<32x1xf32> to vector<32x4xf32>
      %79 = arith.subf %75, %78 : vector<32x4xf32>
      %80 = math.exp %79 : vector<32x4xf32>
      %cst_15 = arith.constant dense<0.000000e+00> : vector<32xf32>
      %81 = vector.multi_reduction <add>, %80, %cst_15 [1] : vector<32x4xf32> to vector<32xf32>
      %82 = vector.shape_cast %81 : vector<32xf32> to vector<32x1xf32>
      %83 = vector.broadcast %82 : vector<32x1xf32> to vector<32x4xf32>
      %84 = arith.divf %80, %83 : vector<32x4xf32>
      %85 = vector.broadcast %77 : vector<32x1xf32> to vector<32x4xf32>
      %86 = arith.subf %75, %85 : vector<32x4xf32>
      %cst_16 = arith.constant 1.000000e+01 : f32
      %87 = vector.broadcast %cst_16 : f32 to vector<32x4xf32>
      %88 = arith.mulf %86, %87 : vector<32x4xf32>
      %89 = math.exp %88 : vector<32x4xf32>
      %cst_17 = arith.constant dense<0.000000e+00> : vector<32xf32>
      %90 = vector.multi_reduction <add>, %89, %cst_17 [1] : vector<32x4xf32> to vector<32xf32>
      %91 = vector.shape_cast %90 : vector<32xf32> to vector<32x1xf32>
      %92 = vector.broadcast %91 : vector<32x1xf32> to vector<32x4xf32>
      %93 = arith.divf %89, %92 : vector<32x4xf32>
      %cst_18 = arith.constant 0.000000e+00 : f32
      %94 = vector.broadcast %cst_18 : f32 to vector<32x4xf32>
      %95 = arith.subf %94, %75 : vector<32x4xf32>
      %96 = arith.mulf %95, %93 : vector<32x4xf32>
      %c0_19 = arith.constant 0 : index
      %c0_20 = arith.constant 0 : index
      %c0_21 = arith.constant 0 : index
      %97 = vector.load %arg4[%c0_19, %c0_20, %c0_21] : memref<1x32x4xf32, #tpu.memory_space<vmem>>, vector<1x32x4xf32>
      %98 = vector.shape_cast %97 : vector<1x32x4xf32> to vector<32x4xf32>
      %99 = arith.mulf %96, %98 : vector<32x4xf32>
      %100 = vector.shape_cast %75 : vector<32x4xf32> to vector<1x128xf32>
      %c0_22 = arith.constant 0 : index
      %c0_23 = arith.constant 0 : index
      %c0_24 = arith.constant 0 : index
      %101 = vector.load %arg5[%c0_22, %c0_23, %c0_24] : memref<1x4x128xf32, #tpu.memory_space<vmem>>, vector<1x1x128xf32>
      %102 = vector.shape_cast %101 : vector<1x1x128xf32> to vector<1x128xf32>
      %103 = vector.shape_cast %100 : vector<1x128xf32> to vector<1x1x128xf32>
      tpu.vector_store %arg5[%c0_22, %c0_23, %c0_24], %103 {strides = array<i32>} : memref<1x4x128xf32, #tpu.memory_space<vmem>>, vector<1x1x128xf32>,
      %104 = vector.shape_cast %84 : vector<32x4xf32> to vector<1x128xf32>
      %c0_25 = arith.constant 0 : index
      %c1 = arith.constant 1 : index
      %c0_26 = arith.constant 0 : index
      %105 = vector.load %arg5[%c0_25, %c1, %c0_26] : memref<1x4x128xf32, #tpu.memory_space<vmem>>, vector<1x1x128xf32>
      %106 = vector.shape_cast %105 : vector<1x1x128xf32> to vector<1x128xf32>
      %107 = vector.shape_cast %104 : vector<1x128xf32> to vector<1x1x128xf32>
      tpu.vector_store %arg5[%c0_25, %c1, %c0_26], %107 {strides = array<i32>} : memref<1x4x128xf32, #tpu.memory_space<vmem>>, vector<1x1x128xf32>,
      %108 = vector.shape_cast %93 : vector<32x4xf32> to vector<1x128xf32>
      %c0_27 = arith.constant 0 : index
      %c2 = arith.constant 2 : index
      %c0_28 = arith.constant 0 : index
      %109 = vector.load %arg5[%c0_27, %c2, %c0_28] : memref<1x4x128xf32, #tpu.memory_space<vmem>>, vector<1x1x128xf32>
      %110 = vector.shape_cast %109 : vector<1x1x128xf32> to vector<1x128xf32>
      %111 = vector.shape_cast %108 : vector<1x128xf32> to vector<1x1x128xf32>
      tpu.vector_store %arg5[%c0_27, %c2, %c0_28], %111 {strides = array<i32>} : memref<1x4x128xf32, #tpu.memory_space<vmem>>, vector<1x1x128xf32>,
      %112 = vector.shape_cast %99 : vector<32x4xf32> to vector<1x128xf32>
      %c0_29 = arith.constant 0 : index
      %c3 = arith.constant 3 : index
      %c0_30 = arith.constant 0 : index
      %113 = vector.load %arg5[%c0_29, %c3, %c0_30] : memref<1x4x128xf32, #tpu.memory_space<vmem>>, vector<1x1x128xf32>
      %114 = vector.shape_cast %113 : vector<1x1x128xf32> to vector<1x128xf32>
      %115 = vector.shape_cast %112 : vector<1x128xf32> to vector<1x1x128xf32>
      tpu.vector_store %arg5[%c0_29, %c3, %c0_30], %115 {strides = array<i32>} : memref<1x4x128xf32, #tpu.memory_space<vmem>>, vector<1x1x128xf32>,
    } else {
    }
    return
  }
  func.func @transform_0(%arg0: i32, %arg1: i32) -> (i32, i32) {
    %c0_i32 = arith.constant 0 : i32
    %c0_i32_0 = arith.constant 0 : i32
    return %c0_i32, %arg1 : i32, i32
  }
  func.func @transform_1(%arg0: i32, %arg1: i32) -> (i32, i32, i32) {
    %c0_i32 = arith.constant 0 : i32
    %c0_i32_0 = arith.constant 0 : i32
    %c0_i32_1 = arith.constant 0 : i32
    return %arg0, %c0_i32, %c0_i32_0 : i32, i32, i32
  }
  func.func @transform_2(%arg0: i32, %arg1: i32) -> (i32, i32, i32) {
    %c0_i32 = arith.constant 0 : i32
    %c0_i32_0 = arith.constant 0 : i32
    %c0_i32_1 = arith.constant 0 : i32
    return %arg0, %c0_i32, %c0_i32_0 : i32, i32, i32
  }
  func.func @transform_3(%arg0: i32, %arg1: i32) -> (i32, i32, i32) {
    %c0_i32 = arith.constant 0 : i32
    %c0_i32_0 = arith.constant 0 : i32
    %c0_i32_1 = arith.constant 0 : i32
    return %arg0, %c0_i32, %c0_i32_0 : i32, i32, i32
  }
}

</mosaic_0001>

<llo_original>
// kernel: _optok_forward_impl.1
$region0: #{_optok_forward_impl.1}
  #allocation0 [shape = 'u32[]', space=smem, size = 0x4, offset = 0x4, fixed_abs, tag = 'smem constant byte address 0x4 - core index']
  #allocation1 [shape = 'u32[144,128]{1,0:T(1,128)}', space=vmem, size = 0x12000, scoped, tag = 'internal scratch']
  #allocation2 [shape = 'f32[128,1]{1,0:T(8,128)}', space=vmem, size = 0x10000, scoped, tag = 'scratch operand']
  %s0 = inlined_call_operand.hbm [shape: f32[1,128], index: 0, kind: input, shape index: {}]
  %s1 = inlined_call_operand.hbm [shape: s32[1,128,8], index: 1, kind: input, shape index: {}]
  %s2 = inlined_call_operand.hbm [shape: f32[1,32,4], index: 2, kind: input, shape index: {}]
  %s3 = inlined_call_operand.hbm [shape: f32[1,4,128], index: 3, kind: output, shape index: {}]
  %s4 = sld [smem:[#allocation0]]
  $region42: #{_optok_forward_impl.1} parent=0
    _
  %s6 = ssub.s32 1, %s4
  %s7 = scalar_select 0, %s6, %s4
  $region1: #{_optok_forward_impl.1} parent=0
    #allocation3 [shape = 'u8[512]{0}', space=vmem, size = 0x400, scoped, tag = 'input window, operand 0, single buffered']
    #allocation4 [shape = 's32[1]{0}', space=sflag, size = 0x4, scoped, tag = 'scoped memory for _optok_forward_impl.1']
    #allocation5 [shape = 's32[1]{0}', space=sflag, size = 0x4, scoped, tag = 'scoped memory for _optok_forward_impl.1']
    #allocation6 [shape = 'u8[65536]{0}', space=vmem, size = 0x10000, scoped, tag = 'input window, operand 1, single buffered']
    #allocation7 [shape = 's32[1]{0}', space=sflag, size = 0x4, scoped, tag = 'scoped memory for _optok_forward_impl.1']
    #allocation8 [shape = 'u8[16384]{0}', space=vmem, size = 0x4000, scoped, tag = 'input window, operand 2, single buffered']
    #allocation9 [shape = 'u8[2048]{0}', space=vmem, size = 0x800, scoped, tag = 'output window, operand 0, single buffered']
    %8 = vsyncpa [#allocation4], 0
    %9 = vsyncpa [#allocation7], 0
    %10 = vsyncpa [#allocation5], 0
    // Predicated region
    $region2: #{_optok_forward_impl.1} parent=1 // pred_check
      _
    $region3: #{_optok_forward_impl.1} parent=1 // pred_check_branch
      %12 = sbr.rel (0) target = $region5
    $region4: #{_optok_forward_impl.1} parent=1 // pred_region
      %s14 = ssub.s32 16, 16
      %15 = vsyncadd [#allocation4], %s14
      %s17 = sshll.u32 [#allocation3], 4
      %s18 = int_to_ptr.vmem [resolvable:$true] %s17
      %20 = dma.hbm_to_vmem [thread:$0]  %s0, 16, %s18, [#allocation4]
    $region5: #{_optok_forward_impl.1} parent=1 // pred_fallthru
      _
    // Predicated region
    $region6: #{_optok_forward_impl.1} parent=1 // pred_check
      _
    $region7: #{_optok_forward_impl.1} parent=1 // pred_check_branch
      %22 = sbr.rel (0) target = $region9
    $region8: #{_optok_forward_impl.1} parent=1 // pred_region
      %s24 = ssub.s32 2048, 2048
      %25 = vsyncadd [#allocation7], %s24
      %s26 = sshll.u32 [#allocation6], 4
      %s27 = int_to_ptr.vmem [resolvable:$true] %s26
      %32 = dma.hbm_to_vmem [thread:$0]  %s1, 2048, %s27, [#allocation7], 128, 128, 8
    $region9: #{_optok_forward_impl.1} parent=1 // pred_fallthru
      _
    // Predicated region
    $region10: #{_optok_forward_impl.1} parent=1 // pred_check
      _
    $region11: #{_optok_forward_impl.1} parent=1 // pred_check_branch
      %34 = sbr.rel (0) target = $region13
    $region12: #{_optok_forward_impl.1} parent=1 // pred_region
      %s36 = ssub.s32 512, 512
      %37 = vsyncadd [#allocation7], %s36
      %s38 = sshll.u32 [#allocation8], 4
      %s39 = int_to_ptr.vmem [resolvable:$true] %s38
      %44 = dma.hbm_to_vmem [thread:$0]  %s2, 512, %s39, [#allocation7], 128, 128, 8
    $region13: #{_optok_forward_impl.1} parent=1 // pred_fallthru
      _
    // Predicated region
    $region14: #{_optok_forward_impl.1} parent=1 // pred_check
      _
    $region15: #{_optok_forward_impl.1} parent=1 // pred_check_branch
      %46 = sbr.rel (0) target = $region17
    $region16: #{_optok_forward_impl.1} parent=1 // pred_region
      %47 = dma.done [#allocation4], 16
    $region17: #{_optok_forward_impl.1} parent=1 // pred_fallthru
      _
    // Predicated region
    $region18: #{_optok_forward_impl.1} parent=1 // pred_check
      _
    $region19: #{_optok_forward_impl.1} parent=1 // pred_check_branch
      %49 = sbr.rel (0) target = $region21
    $region20: #{_optok_forward_impl.1} parent=1 // pred_region
      %50 = dma.done [#allocation7], 2048
    $region21: #{_optok_forward_impl.1} parent=1 // pred_fallthru
      _
    // Predicated region
    $region22: #{_optok_forward_impl.1} parent=1 // pred_check
      _
    $region23: #{_optok_forward_impl.1} parent=1 // pred_check_branch
      %52 = sbr.rel (0) target = $region25
    $region24: #{_optok_forward_impl.1} parent=1 // pred_region
      %53 = dma.done [#allocation7], 512
    $region25: #{_optok_forward_impl.1} parent=1 // pred_fallthru
      _
    %p54 = scmp.eq.s32.totalorder 0, 0
    // Predicated region
    $region26: #{_optok_forward_impl.1} parent=1 // pred_check
      %p55 = pneg %p54
    $region27: #{_optok_forward_impl.1} parent=1 // pred_check_branch
      %57 = sbr.rel (%p55) target = $region29
    $region28: #{_optok_forward_impl.1} parent=1 // pred_region
      %vm58 = vcmask 7168
      %59 = vst.msk [vmem:[#allocation2] sm:$0xff] %vm58, 0.0
      %60 = vst.msk [vmem:[#allocation2 + $0x8] sm:$0xff] %vm58, 0.0
      %61 = vst.msk [vmem:[#allocation2 + $0x10] sm:$0xff] %vm58, 0.0
      %62 = vst.msk [vmem:[#allocation2 + $0x18] sm:$0xff] %vm58, 0.0
      %63 = vst.msk [vmem:[#allocation2 + $0x20] sm:$0xff] %vm58, 0.0
      %64 = vst.msk [vmem:[#allocation2 + $0x28] sm:$0xff] %vm58, 0.0
      %65 = vst.msk [vmem:[#allocation2 + $0x30] sm:$0xff] %vm58, 0.0
      %66 = vst.msk [vmem:[#allocation2 + $0x38] sm:$0xff] %vm58, 0.0
      %67 = vst.msk [vmem:[#allocation2 + $0x40] sm:$0xff] %vm58, 0.0
      %68 = vst.msk [vmem:[#allocation2 + $0x48] sm:$0xff] %vm58, 0.0
      %69 = vst.msk [vmem:[#allocation2 + $0x50] sm:$0xff] %vm58, 0.0
      %70 = vst.msk [vmem:[#allocation2 + $0x58] sm:$0xff] %vm58, 0.0
      %71 = vst.msk [vmem:[#allocation2 + $0x60] sm:$0xff] %vm58, 0.0
      %72 = vst.msk [vmem:[#allocation2 + $0x68] sm:$0xff] %vm58, 0.0
      %73 = vst.msk [vmem:[#allocation2 + $0x70] sm:$0xff] %vm58, 0.0
      %74 = vst.msk [vmem:[#allocation2 + $0x78] sm:$0xff] %vm58, 0.0
    $region29: #{_optok_forward_impl.1} parent=1 // pred_fallthru
      _
    %v75 = vld [vmem:[#allocation6] sm:$0xff]
    %v76 = vld [vmem:[#allocation6 + $0x8] sm:$0xff]
    %v77 = vld [vmem:[#allocation6 + $0x10] sm:$0xff]
    %v78 = vld [vmem:[#allocation6 + $0x18] sm:$0xff]
    %v79 = vld [vmem:[#allocation6 + $0x20] sm:$0xff]
    %v80 = vld [vmem:[#allocation6 + $0x28] sm:$0xff]
    %v81 = vld [vmem:[#allocation6 + $0x30] sm:$0xff]
    %v82 = vld [vmem:[#allocation6 + $0x38] sm:$0xff]
    %v83 = vld [vmem:[#allocation6 + $0x40] sm:$0xff]
    %v84 = vld [vmem:[#allocation6 + $0x48] sm:$0xff]
    %v85 = vld [vmem:[#allocation6 + $0x50] sm:$0xff]
    %v86 = vld [vmem:[#allocation6 + $0x58] sm:$0xff]
    %v87 = vld [vmem:[#allocation6 + $0x60] sm:$0xff]
    %v88 = vld [vmem:[#allocation6 + $0x68] sm:$0xff]
    %v89 = vld [vmem:[#allocation6 + $0x70] sm:$0xff]
    %v90 = vld [vmem:[#allocation6 + $0x78] sm:$0xff]
    %s91 = smul.u32 0, 128
    %v92 = vstv %s91
    %v93 = vsub.s32 %v75, %v92
    %v94 = vsub.s32 %v76, %v92
    %v95 = vsub.s32 %v77, %v92
    %v96 = vsub.s32 %v78, %v92
    %v97 = vsub.s32 %v79, %v92
    %v98 = vsub.s32 %v80, %v92
    %v99 = vsub.s32 %v81, %v92
    %v100 = vsub.s32 %v82, %v92
    %v101 = vsub.s32 %v83, %v92
    %v102 = vsub.s32 %v84, %v92
    %v103 = vsub.s32 %v85, %v92
    %v104 = vsub.s32 %v86, %v92
    %v105 = vsub.s32 %v87, %v92
    %v106 = vsub.s32 %v88, %v92
    %v107 = vsub.s32 %v89, %v92
    %v108 = vsub.s32 %v90, %v92
    %v109 = vlaneseq
    %v110 = vand.u32 %v109, 127
    %111 = vset.pattern.permute.xlu0 0
    %112 = vperm.xlu0 %111, %v93
    %v113 = vpop.permute.xlu0 %112
    %114 = vset.pattern.permute.xlu0 0
    %115 = vperm.xlu0 %114, %v94
    %v116 = vpop.permute.xlu0 %115
    %117 = vset.pattern.permute.xlu0 0
    %118 = vperm.xlu0 %117, %v95
    %v119 = vpop.permute.xlu0 %118
    %120 = vset.pattern.permute.xlu0 0
    %121 = vperm.xlu0 %120, %v96
    %v122 = vpop.permute.xlu0 %121
    %123 = vset.pattern.permute.xlu0 0
    %124 = vperm.xlu0 %123, %v97
    %v125 = vpop.permute.xlu0 %124
    %126 = vset.pattern.permute.xlu0 0
    %127 = vperm.xlu0 %126, %v98
    %v128 = vpop.permute.xlu0 %127
    %129 = vset.pattern.permute.xlu0 0
    %130 = vperm.xlu0 %129, %v99
    %v131 = vpop.permute.xlu0 %130
    %132 = vset.pattern.permute.xlu0 0
    %133 = vperm.xlu0 %132, %v100
    %v134 = vpop.permute.xlu0 %133
    %135 = vset.pattern.permute.xlu0 0
    %136 = vperm.xlu0 %135, %v101
    %v137 = vpop.permute.xlu0 %136
    %138 = vset.pattern.permute.xlu0 0
    %139 = vperm.xlu0 %138, %v102
    %v140 = vpop.permute.xlu0 %139
    %141 = vset.pattern.permute.xlu0 0
    %142 = vperm.xlu0 %141, %v103
    %v143 = vpop.permute.xlu0 %142
    %144 = vset.pattern.permute.xlu0 0
    %145 = vperm.xlu0 %144, %v104
    %v146 = vpop.permute.xlu0 %145
    %147 = vset.pattern.permute.xlu0 0
    %148 = vperm.xlu0 %147, %v105
    %v149 = vpop.permute.xlu0 %148
    %150 = vset.pattern.permute.xlu0 0
    %151 = vperm.xlu0 %150, %v106
    %v152 = vpop.permute.xlu0 %151
    %153 = vset.pattern.permute.xlu0 0
    %154 = vperm.xlu0 %153, %v107
    %v155 = vpop.permute.xlu0 %154
    %156 = vset.pattern.permute.xlu0 0
    %157 = vperm.xlu0 %156, %v108
    %v158 = vpop.permute.xlu0 %157
    %vm159 = vcmp.eq.s32.totalorder %v110, %v113
    %vm160 = vcmp.eq.s32.totalorder %v110, %v116
    %vm161 = vcmp.eq.s32.totalorder %v110, %v119
    %vm162 = vcmp.eq.s32.totalorder %v110, %v122
    %vm163 = vcmp.eq.s32.totalorder %v110, %v125
    %vm164 = vcmp.eq.s32.totalorder %v110, %v128
    %vm165 = vcmp.eq.s32.totalorder %v110, %v131
    %vm166 = vcmp.eq.s32.totalorder %v110, %v134
    %vm167 = vcmp.eq.s32.totalorder %v110, %v137
    %vm168 = vcmp.eq.s32.totalorder %v110, %v140
    %vm169 = vcmp.eq.s32.totalorder %v110, %v143
    %vm170 = vcmp.eq.s32.totalorder %v110, %v146
    %vm171 = vcmp.eq.s32.totalorder %v110, %v149
    %vm172 = vcmp.eq.s32.totalorder %v110, %v152
    %vm173 = vcmp.eq.s32.totalorder %v110, %v155
    %vm174 = vcmp.eq.s32.totalorder %v110, %v158
    %v175 = vsel %vm159, 1, 0
    %v176 = vsel %vm160, 1, 0
    %v177 = vsel %vm161, 1, 0
    %v178 = vsel %vm162, 1, 0
    %v179 = vsel %vm163, 1, 0
    %v180 = vsel %vm164, 1, 0
    %v181 = vsel %vm165, 1, 0
    %v182 = vsel %vm166, 1, 0
    %v183 = vsel %vm167, 1, 0
    %v184 = vsel %vm168, 1, 0
    %v185 = vsel %vm169, 1, 0
    %v186 = vsel %vm170, 1, 0
    %v187 = vsel %vm171, 1, 0
    %v188 = vsel %vm172, 1, 0
    %v189 = vsel %vm173, 1, 0
    %v190 = vsel %vm174, 1, 0
    %v191 = vcvt.s32.f32 %v175
    %v192 = vcvt.s32.f32 %v176
    %v193 = vcvt.s32.f32 %v177
    %v194 = vcvt.s32.f32 %v178
    %v195 = vcvt.s32.f32 %v179
    %v196 = vcvt.s32.f32 %v180
    %v197 = vcvt.s32.f32 %v181
    %v198 = vcvt.s32.f32 %v182
    %v199 = vcvt.s32.f32 %v183
    %v200 = vcvt.s32.f32 %v184
    %v201 = vcvt.s32.f32 %v185
    %v202 = vcvt.s32.f32 %v186
    %v203 = vcvt.s32.f32 %v187
    %v204 = vcvt.s32.f32 %v188
    %v205 = vcvt.s32.f32 %v189
    %v206 = vcvt.s32.f32 %v190
    %v207 = vadd.f32 %v191, 0.0
    %v208 = vadd.f32 %v192, 0.0
    %v209 = vadd.f32 %v193, 0.0
    %v210 = vadd.f32 %v194, 0.0
    %v211 = vadd.f32 %v195, 0.0
    %v212 = vadd.f32 %v196, 0.0
    %v213 = vadd.f32 %v197, 0.0
    %v214 = vadd.f32 %v198, 0.0
    %v215 = vadd.f32 %v199, 0.0
    %v216 = vadd.f32 %v200, 0.0
    %v217 = vadd.f32 %v201, 0.0
    %v218 = vadd.f32 %v202, 0.0
    %v219 = vadd.f32 %v203, 0.0
    %v220 = vadd.f32 %v204, 0.0
    %v221 = vadd.f32 %v205, 0.0
    %v222 = vadd.f32 %v206, 0.0
    %223 = vset.pattern.permute.xlu0 1
    %224 = vperm.xlu0 %223, %v93
    %v225 = vpop.permute.xlu0 %224
    %226 = vset.pattern.permute.xlu0 1
    %227 = vperm.xlu0 %226, %v94
    %v228 = vpop.permute.xlu0 %227
    %229 = vset.pattern.permute.xlu0 1
    %230 = vperm.xlu0 %229, %v95
    %v231 = vpop.permute.xlu0 %230
    %232 = vset.pattern.permute.xlu0 1
    %233 = vperm.xlu0 %232, %v96
    %v234 = vpop.permute.xlu0 %233
    %235 = vset.pattern.permute.xlu0 1
    %236 = vperm.xlu0 %235, %v97
    %v237 = vpop.permute.xlu0 %236
    %238 = vset.pattern.permute.xlu0 1
    %239 = vperm.xlu0 %238, %v98
    %v240 = vpop.permute.xlu0 %239
    %241 = vset.pattern.permute.xlu0 1
    %242 = vperm.xlu0 %241, %v99
    %v243 = vpop.permute.xlu0 %242
    %244 = vset.pattern.permute.xlu0 1
    %245 = vperm.xlu0 %244, %v100
    %v246 = vpop.permute.xlu0 %245
    %247 = vset.pattern.permute.xlu0 1
    %248 = vperm.xlu0 %247, %v101
    %v249 = vpop.permute.xlu0 %248
    %250 = vset.pattern.permute.xlu0 1
    %251 = vperm.xlu0 %250, %v102
    %v252 = vpop.permute.xlu0 %251
    %253 = vset.pattern.permute.xlu0 1
    %254 = vperm.xlu0 %253, %v103
    %v255 = vpop.permute.xlu0 %254
    %256 = vset.pattern.permute.xlu0 1
    %257 = vperm.xlu0 %256, %v104
    %v258 = vpop.permute.xlu0 %257
    %259 = vset.pattern.permute.xlu0 1
    %260 = vperm.xlu0 %259, %v105
    %v261 = vpop.permute.xlu0 %260
    %262 = vset.pattern.permute.xlu0 1
    %263 = vperm.xlu0 %262, %v106
    %v264 = vpop.permute.xlu0 %263
    %265 = vset.pattern.permute.xlu0 1
    %266 = vperm.xlu0 %265, %v107
    %v267 = vpop.permute.xlu0 %266
    %268 = vset.pattern.permute.xlu0 1
    %269 = vperm.xlu0 %268, %v108
    %v270 = vpop.permute.xlu0 %269
    %vm271 = vcmp.eq.s32.totalorder %v110, %v225
    %vm272 = vcmp.eq.s32.totalorder %v110, %v228
    %vm273 = vcmp.eq.s32.totalorder %v110, %v231
    %vm274 = vcmp.eq.s32.totalorder %v110, %v234
    %vm275 = vcmp.eq.s32.totalorder %v110, %v237
    %vm276 = vcmp.eq.s32.totalorder %v110, %v240
    %vm277 = vcmp.eq.s32.totalorder %v110, %v243
    %vm278 = vcmp.eq.s32.totalorder %v110, %v246
    %vm279 = vcmp.eq.s32.totalorder %v110, %v249
    %vm280 = vcmp.eq.s32.totalorder %v110, %v252
    %vm281 = vcmp.eq.s32.totalorder %v110, %v255
    %vm282 = vcmp.eq.s32.totalorder %v110, %v258
    %vm283 = vcmp.eq.s32.totalorder %v110, %v261
    %vm284 = vcmp.eq.s32.totalorder %v110, %v264
    %vm285 = vcmp.eq.s32.totalorder %v110, %v267
    %vm286 = vcmp.eq.s32.totalorder %v110, %v270
    %v287 = vsel %vm271, 1, 0
    %v288 = vsel %vm272, 1, 0
    %v289 = vsel %vm273, 1, 0
    %v290 = vsel %vm274, 1, 0
    %v291 = vsel %vm275, 1, 0
    %v292 = vsel %vm276, 1, 0
    %v293 = vsel %vm277, 1, 0
    %v294 = vsel %vm278, 1, 0
    %v295 = vsel %vm279, 1, 0
    %v296 = vsel %vm280, 1, 0
    %v297 = vsel %vm281, 1, 0
    %v298 = vsel %vm282, 1, 0
    %v299 = vsel %vm283, 1, 0
    %v300 = vsel %vm284, 1, 0
    %v301 = vsel %vm285, 1, 0
    %v302 = vsel %vm286, 1, 0
    %v303 = vcvt.s32.f32 %v287
    %v304 = vcvt.s32.f32 %v288
    %v305 = vcvt.s32.f32 %v289
    %v306 = vcvt.s32.f32 %v290
    %v307 = vcvt.s32.f32 %v291
    %v308 = vcvt.s32.f32 %v292
    %v309 = vcvt.s32.f32 %v293
    %v310 = vcvt.s32.f32 %v294
    %v311 = vcvt.s32.f32 %v295
    %v312 = vcvt.s32.f32 %v296
    %v313 = vcvt.s32.f32 %v297
    %v314 = vcvt.s32.f32 %v298
    %v315 = vcvt.s32.f32 %v299
    %v316 = vcvt.s32.f32 %v300
    %v317 = vcvt.s32.f32 %v301
    %v318 = vcvt.s32.f32 %v302
    %v319 = vadd.f32 %v207, %v303
    %v320 = vadd.f32 %v208, %v304
    %v321 = vadd.f32 %v209, %v305
    %v322 = vadd.f32 %v210, %v306
    %v323 = vadd.f32 %v211, %v307
    %v324 = vadd.f32 %v212, %v308
    %v325 = vadd.f32 %v213, %v309
    %v326 = vadd.f32 %v214, %v310
    %v327 = vadd.f32 %v215, %v311
    %v328 = vadd.f32 %v216, %v312
    %v329 = vadd.f32 %v217, %v313
    %v330 = vadd.f32 %v218, %v314
    %v331 = vadd.f32 %v219, %v315
    %v332 = vadd.f32 %v220, %v316
    %v333 = vadd.f32 %v221, %v317
    %v334 = vadd.f32 %v222, %v318
    %335 = vset.pattern.permute.xlu0 2
    %336 = vperm.xlu0 %335, %v93
    %v337 = vpop.permute.xlu0 %336
    %338 = vset.pattern.permute.xlu0 2
    %339 = vperm.xlu0 %338, %v94
    %v340 = vpop.permute.xlu0 %339
    %341 = vset.pattern.permute.xlu0 2
    %342 = vperm.xlu0 %341, %v95
    %v343 = vpop.permute.xlu0 %342
    %344 = vset.pattern.permute.xlu0 2
    %345 = vperm.xlu0 %344, %v96
    %v346 = vpop.permute.xlu0 %345
    %347 = vset.pattern.permute.xlu0 2
    %348 = vperm.xlu0 %347, %v97
    %v349 = vpop.permute.xlu0 %348
    %350 = vset.pattern.permute.xlu0 2
    %351 = vperm.xlu0 %350, %v98
    %v352 = vpop.permute.xlu0 %351
    %353 = vset.pattern.permute.xlu0 2
    %354 = vperm.xlu0 %353, %v99
    %v355 = vpop.permute.xlu0 %354
    %356 = vset.pattern.permute.xlu0 2
    %357 = vperm.xlu0 %356, %v100
    %v358 = vpop.permute.xlu0 %357
    %359 = vset.pattern.permute.xlu0 2
    %360 = vperm.xlu0 %359, %v101
    %v361 = vpop.permute.xlu0 %360
    %362 = vset.pattern.permute.xlu0 2
    %363 = vperm.xlu0 %362, %v102
    %v364 = vpop.permute.xlu0 %363
    %365 = vset.pattern.permute.xlu0 2
    %366 = vperm.xlu0 %365, %v103
    %v367 = vpop.permute.xlu0 %366
    %368 = vset.pattern.permute.xlu0 2
    %369 = vperm.xlu0 %368, %v104
    %v370 = vpop.permute.xlu0 %369
    %371 = vset.pattern.permute.xlu0 2
    %372 = vperm.xlu0 %371, %v105
    %v373 = vpop.permute.xlu0 %372
    %374 = vset.pattern.permute.xlu0 2
    %375 = vperm.xlu0 %374, %v106
    %v376 = vpop.permute.xlu0 %375
    %377 = vset.pattern.permute.xlu0 2
    %378 = vperm.xlu0 %377, %v107
    %v379 = vpop.permute.xlu0 %378
    %380 = vset.pattern.permute.xlu0 2
    %381 = vperm.xlu0 %380, %v108
    %v382 = vpop.permute.xlu0 %381
    %vm383 = vcmp.eq.s32.totalorder %v110, %v337
    %vm384 = vcmp.eq.s32.totalorder %v110, %v340
    %vm385 = vcmp.eq.s32.totalorder %v110, %v343
    %vm386 = vcmp.eq.s32.totalorder %v110, %v346
    %vm387 = vcmp.eq.s32.totalorder %v110, %v349
    %vm388 = vcmp.eq.s32.totalorder %v110, %v352
    %vm389 = vcmp.eq.s32.totalorder %v110, %v355
    %vm390 = vcmp.eq.s32.totalorder %v110, %v358
    %vm391 = vcmp.eq.s32.totalorder %v110, %v361
    %vm392 = vcmp.eq.s32.totalorder %v110, %v364
    %vm393 = vcmp.eq.s32.totalorder %v110, %v367
    %vm394 = vcmp.eq.s32.totalorder %v110, %v370
    %vm395 = vcmp.eq.s32.totalorder %v110, %v373
    %vm396 = vcmp.eq.s32.totalorder %v110, %v376
    %vm397 = vcmp.eq.s32.totalorder %v110, %v379
    %vm398 = vcmp.eq.s32.totalorder %v110, %v382
    %v399 = vsel %vm383, 1, 0
    %v400 = vsel %vm384, 1, 0
    %v401 = vsel %vm385, 1, 0
    %v402 = vsel %vm386, 1, 0
    %v403 = vsel %vm387, 1, 0
    %v404 = vsel %vm388, 1, 0
    %v405 = vsel %vm389, 1, 0
    %v406 = vsel %vm390, 1, 0
    %v407 = vsel %vm391, 1, 0
    %v408 = vsel %vm392, 1, 0
    %v409 = vsel %vm393, 1, 0
    %v410 = vsel %vm394, 1, 0
    %v411 = vsel %vm395, 1, 0
    %v412 = vsel %vm396, 1, 0
    %v413 = vsel %vm397, 1, 0
    %v414 = vsel %vm398, 1, 0
    %v415 = vcvt.s32.f32 %v399
    %v416 = vcvt.s32.f32 %v400
    %v417 = vcvt.s32.f32 %v401
    %v418 = vcvt.s32.f32 %v402
    %v419 = vcvt.s32.f32 %v403
    %v420 = vcvt.s32.f32 %v404
    %v421 = vcvt.s32.f32 %v405
    %v422 = vcvt.s32.f32 %v406
    %v423 = vcvt.s32.f32 %v407
    %v424 = vcvt.s32.f32 %v408
    %v425 = vcvt.s32.f32 %v409
    %v426 = vcvt.s32.f32 %v410
    %v427 = vcvt.s32.f32 %v411
    %v428 = vcvt.s32.f32 %v412
    %v429 = vcvt.s32.f32 %v413
    %v430 = vcvt.s32.f32 %v414
    %v431 = vadd.f32 %v319, %v415
    %v432 = vadd.f32 %v320, %v416
    %v433 = vadd.f32 %v321, %v417
    %v434 = vadd.f32 %v322, %v418
    %v435 = vadd.f32 %v323, %v419
    %v436 = vadd.f32 %v324, %v420
    %v437 = vadd.f32 %v325, %v421
    %v438 = vadd.f32 %v326, %v422
    %v439 = vadd.f32 %v327, %v423
    %v440 = vadd.f32 %v328, %v424
    %v441 = vadd.f32 %v329, %v425
    %v442 = vadd.f32 %v330, %v426
    %v443 = vadd.f32 %v331, %v427
    %v444 = vadd.f32 %v332, %v428
    %v445 = vadd.f32 %v333, %v429
    %v446 = vadd.f32 %v334, %v430
    %447 = vset.pattern.permute.xlu0 3
    %448 = vperm.xlu0 %447, %v93
    %v449 = vpop.permute.xlu0 %448
    %450 = vset.pattern.permute.xlu0 3
    %451 = vperm.xlu0 %450, %v94
    %v452 = vpop.permute.xlu0 %451
    %453 = vset.pattern.permute.xlu0 3
    %454 = vperm.xlu0 %453, %v95
    %v455 = vpop.permute.xlu0 %454
    %456 = vset.pattern.permute.xlu0 3
    %457 = vperm.xlu0 %456, %v96
    %v458 = vpop.permute.xlu0 %457
    %459 = vset.pattern.permute.xlu0 3
    %460 = vperm.xlu0 %459, %v97
    %v461 = vpop.permute.xlu0 %460
    %462 = vset.pattern.permute.xlu0 3
    %463 = vperm.xlu0 %462, %v98
    %v464 = vpop.permute.xlu0 %463
    %465 = vset.pattern.permute.xlu0 3
    %466 = vperm.xlu0 %465, %v99
    %v467 = vpop.permute.xlu0 %466
    %468 = vset.pattern.permute.xlu0 3
    %469 = vperm.xlu0 %468, %v100
    %v470 = vpop.permute.xlu0 %469
    %471 = vset.pattern.permute.xlu0 3
    %472 = vperm.xlu0 %471, %v101
    %v473 = vpop.permute.xlu0 %472
    %474 = vset.pattern.permute.xlu0 3
    %475 = vperm.xlu0 %474, %v102
    %v476 = vpop.permute.xlu0 %475
    %477 = vset.pattern.permute.xlu0 3
    %478 = vperm.xlu0 %477, %v103
    %v479 = vpop.permute.xlu0 %478
    %480 = vset.pattern.permute.xlu0 3
    %481 = vperm.xlu0 %480, %v104
    %v482 = vpop.permute.xlu0 %481
    %483 = vset.pattern.permute.xlu0 3
    %484 = vperm.xlu0 %483, %v105
    %v485 = vpop.permute.xlu0 %484
    %486 = vset.pattern.permute.xlu0 3
    %487 = vperm.xlu0 %486, %v106
    %v488 = vpop.permute.xlu0 %487
    %489 = vset.pattern.permute.xlu0 3
    %490 = vperm.xlu0 %489, %v107
    %v491 = vpop.permute.xlu0 %490
    %492 = vset.pattern.permute.xlu0 3
    %493 = vperm.xlu0 %492, %v108
    %v494 = vpop.permute.xlu0 %493
    %vm495 = vcmp.eq.s32.totalorder %v110, %v449
    %vm496 = vcmp.eq.s32.totalorder %v110, %v452
    %vm497 = vcmp.eq.s32.totalorder %v110, %v455
    %vm498 = vcmp.eq.s32.totalorder %v110, %v458
    %vm499 = vcmp.eq.s32.totalorder %v110, %v461
    %vm500 = vcmp.eq.s32.totalorder %v110, %v464
    %vm501 = vcmp.eq.s32.totalorder %v110, %v467
    %vm502 = vcmp.eq.s32.totalorder %v110, %v470
    %vm503 = vcmp.eq.s32.totalorder %v110, %v473
    %vm504 = vcmp.eq.s32.totalorder %v110, %v476
    %vm505 = vcmp.eq.s32.totalorder %v110, %v479
    %vm506 = vcmp.eq.s32.totalorder %v110, %v482
    %vm507 = vcmp.eq.s32.totalorder %v110, %v485
    %vm508 = vcmp.eq.s32.totalorder %v110, %v488
    %vm509 = vcmp.eq.s32.totalorder %v110, %v491
    %vm510 = vcmp.eq.s32.totalorder %v110, %v494
    %v511 = vsel %vm495, 1, 0
    %v512 = vsel %vm496, 1, 0
    %v513 = vsel %vm497, 1, 0
    %v514 = vsel %vm498, 1, 0
    %v515 = vsel %vm499, 1, 0
    %v516 = vsel %vm500, 1, 0
    %v517 = vsel %vm501, 1, 0
    %v518 = vsel %vm502, 1, 0
    %v519 = vsel %vm503, 1, 0
    %v520 = vsel %vm504, 1, 0
    %v521 = vsel %vm505, 1, 0
    %v522 = vsel %vm506, 1, 0
    %v523 = vsel %vm507, 1, 0
    %v524 = vsel %vm508, 1, 0
    %v525 = vsel %vm509, 1, 0
    %v526 = vsel %vm510, 1, 0
    %v527 = vcvt.s32.f32 %v511
    %v528 = vcvt.s32.f32 %v512
    %v529 = vcvt.s32.f32 %v513
    %v530 = vcvt.s32.f32 %v514
    %v531 = vcvt.s32.f32 %v515
    %v532 = vcvt.s32.f32 %v516
    %v533 = vcvt.s32.f32 %v517
    %v534 = vcvt.s32.f32 %v518
    %v535 = vcvt.s32.f32 %v519
    %v536 = vcvt.s32.f32 %v520
    %v537 = vcvt.s32.f32 %v521
    %v538 = vcvt.s32.f32 %v522
    %v539 = vcvt.s32.f32 %v523
    %v540 = vcvt.s32.f32 %v524
    %v541 = vcvt.s32.f32 %v525
    %v542 = vcvt.s32.f32 %v526
    %v543 = vadd.f32 %v431, %v527
    %v544 = vadd.f32 %v432, %v528
    %v545 = vadd.f32 %v433, %v529
    %v546 = vadd.f32 %v434, %v530
    %v547 = vadd.f32 %v435, %v531
    %v548 = vadd.f32 %v436, %v532
    %v549 = vadd.f32 %v437, %v533
    %v550 = vadd.f32 %v438, %v534
    %v551 = vadd.f32 %v439, %v535
    %v552 = vadd.f32 %v440, %v536
    %v553 = vadd.f32 %v441, %v537
    %v554 = vadd.f32 %v442, %v538
    %v555 = vadd.f32 %v443, %v539
    %v556 = vadd.f32 %v444, %v540
    %v557 = vadd.f32 %v445, %v541
    %v558 = vadd.f32 %v446, %v542
    %559 = vset.pattern.permute.xlu0 4
    %560 = vperm.xlu0 %559, %v93
    %v561 = vpop.permute.xlu0 %560
    %562 = vset.pattern.permute.xlu0 4
    %563 = vperm.xlu0 %562, %v94
    %v564 = vpop.permute.xlu0 %563
    %565 = vset.pattern.permute.xlu0 4
    %566 = vperm.xlu0 %565, %v95
    %v567 = vpop.permute.xlu0 %566
    %568 = vset.pattern.permute.xlu0 4
    %569 = vperm.xlu0 %568, %v96
    %v570 = vpop.permute.xlu0 %569
    %571 = vset.pattern.permute.xlu0 4
    %572 = vperm.xlu0 %571, %v97
    %v573 = vpop.permute.xlu0 %572
    %574 = vset.pattern.permute.xlu0 4
    %575 = vperm.xlu0 %574, %v98
    %v576 = vpop.permute.xlu0 %575
    %577 = vset.pattern.permute.xlu0 4
    %578 = vperm.xlu0 %577, %v99
    %v579 = vpop.permute.xlu0 %578
    %580 = vset.pattern.permute.xlu0 4
    %581 = vperm.xlu0 %580, %v100
    %v582 = vpop.permute.xlu0 %581
    %583 = vset.pattern.permute.xlu0 4
    %584 = vperm.xlu0 %583, %v101
    %v585 = vpop.permute.xlu0 %584
    %586 = vset.pattern.permute.xlu0 4
    %587 = vperm.xlu0 %586, %v102
    %v588 = vpop.permute.xlu0 %587
    %589 = vset.pattern.permute.xlu0 4
    %590 = vperm.xlu0 %589, %v103
    %v591 = vpop.permute.xlu0 %590
    %592 = vset.pattern.permute.xlu0 4
    %593 = vperm.xlu0 %592, %v104
    %v594 = vpop.permute.xlu0 %593
    %595 = vset.pattern.permute.xlu0 4
    %596 = vperm.xlu0 %595, %v105
    %v597 = vpop.permute.xlu0 %596
    %598 = vset.pattern.permute.xlu0 4
    %599 = vperm.xlu0 %598, %v106
    %v600 = vpop.permute.xlu0 %599
    %601 = vset.pattern.permute.xlu0 4
    %602 = vperm.xlu0 %601, %v107
    %v603 = vpop.permute.xlu0 %602
    %604 = vset.pattern.permute.xlu0 4
    %605 = vperm.xlu0 %604, %v108
    %v606 = vpop.permute.xlu0 %605
    %vm607 = vcmp.eq.s32.totalorder %v110, %v561
    %vm608 = vcmp.eq.s32.totalorder %v110, %v564
    %vm609 = vcmp.eq.s32.totalorder %v110, %v567
    %vm610 = vcmp.eq.s32.totalorder %v110, %v570
    %vm611 = vcmp.eq.s32.totalorder %v110, %v573
    %vm612 = vcmp.eq.s32.totalorder %v110, %v576
    %vm613 = vcmp.eq.s32.totalorder %v110, %v579
    %vm614 = vcmp.eq.s32.totalorder %v110, %v582
    %vm615 = vcmp.eq.s32.totalorder %v110, %v585
    %vm616 = vcmp.eq.s32.totalorder %v110, %v588
    %vm617 = vcmp.eq.s32.totalorder %v110, %v591
    %vm618 = vcmp.eq.s32.totalorder %v110, %v594
    %vm619 = vcmp.eq.s32.totalorder %v110, %v597
    %vm620 = vcmp.eq.s32.totalorder %v110, %v600
    %vm621 = vcmp.eq.s32.totalorder %v110, %v603
    %vm622 = vcmp.eq.s32.totalorder %v110, %v606
    %v623 = vsel %vm607, 1, 0
    %v624 = vsel %vm608, 1, 0
    %v625 = vsel %vm609, 1, 0
    %v626 = vsel %vm610, 1, 0
    %v627 = vsel %vm611, 1, 0
    %v628 = vsel %vm612, 1, 0
    %v629 = vsel %vm613, 1, 0
    %v630 = vsel %vm614, 1, 0
    %v631 = vsel %vm615, 1, 0
    %v632 = vsel %vm616, 1, 0
    %v633 = vsel %vm617, 1, 0
    %v634 = vsel %vm618, 1, 0
    %v635 = vsel %vm619, 1, 0
    %v636 = vsel %vm620, 1, 0
    %v637 = vsel %vm621, 1, 0
    %v638 = vsel %vm622, 1, 0
    %v639 = vcvt.s32.f32 %v623
    %v640 = vcvt.s32.f32 %v624
    %v641 = vcvt.s32.f32 %v625
    %v642 = vcvt.s32.f32 %v626
    %v643 = vcvt.s32.f32 %v627
    %v644 = vcvt.s32.f32 %v628
    %v645 = vcvt.s32.f32 %v629
    %v646 = vcvt.s32.f32 %v630
    %v647 = vcvt.s32.f32 %v631
    %v648 = vcvt.s32.f32 %v632
    %v649 = vcvt.s32.f32 %v633
    %v650 = vcvt.s32.f32 %v634
    %v651 = vcvt.s32.f32 %v635
    %v652 = vcvt.s32.f32 %v636
    %v653 = vcvt.s32.f32 %v637
    %v654 = vcvt.s32.f32 %v638
    %v655 = vadd.f32 %v543, %v639
    %v656 = vadd.f32 %v544, %v640
    %v657 = vadd.f32 %v545, %v641
    %v658 = vadd.f32 %v546, %v642
    %v659 = vadd.f32 %v547, %v643
    %v660 = vadd.f32 %v548, %v644
    %v661 = vadd.f32 %v549, %v645
    %v662 = vadd.f32 %v550, %v646
    %v663 = vadd.f32 %v551, %v647
    %v664 = vadd.f32 %v552, %v648
    %v665 = vadd.f32 %v553, %v649
    %v666 = vadd.f32 %v554, %v650
    %v667 = vadd.f32 %v555, %v651
    %v668 = vadd.f32 %v556, %v652
    %v669 = vadd.f32 %v557, %v653
    %v670 = vadd.f32 %v558, %v654
    %671 = vset.pattern.permute.xlu0 5
    %672 = vperm.xlu0 %671, %v93
    %v673 = vpop.permute.xlu0 %672
    %674 = vset.pattern.permute.xlu0 5
    %675 = vperm.xlu0 %674, %v94
    %v676 = vpop.permute.xlu0 %675
    %677 = vset.pattern.permute.xlu0 5
    %678 = vperm.xlu0 %677, %v95
    %v679 = vpop.permute.xlu0 %678
    %680 = vset.pattern.permute.xlu0 5
    %681 = vperm.xlu0 %680, %v96
    %v682 = vpop.permute.xlu0 %681
    %683 = vset.pattern.permute.xlu0 5
    %684 = vperm.xlu0 %683, %v97
    %v685 = vpop.permute.xlu0 %684
    %686 = vset.pattern.permute.xlu0 5
    %687 = vperm.xlu0 %686, %v98
    %v688 = vpop.permute.xlu0 %687
    %689 = vset.pattern.permute.xlu0 5
    %690 = vperm.xlu0 %689, %v99
    %v691 = vpop.permute.xlu0 %690
    %692 = vset.pattern.permute.xlu0 5
    %693 = vperm.xlu0 %692, %v100
    %v694 = vpop.permute.xlu0 %693
    %695 = vset.pattern.permute.xlu0 5
    %696 = vperm.xlu0 %695, %v101
    %v697 = vpop.permute.xlu0 %696
    %698 = vset.pattern.permute.xlu0 5
    %699 = vperm.xlu0 %698, %v102
    %v700 = vpop.permute.xlu0 %699
    %701 = vset.pattern.permute.xlu0 5
    %702 = vperm.xlu0 %701, %v103
    %v703 = vpop.permute.xlu0 %702
    %704 = vset.pattern.permute.xlu0 5
    %705 = vperm.xlu0 %704, %v104
    %v706 = vpop.permute.xlu0 %705
    %707 = vset.pattern.permute.xlu0 5
    %708 = vperm.xlu0 %707, %v105
    %v709 = vpop.permute.xlu0 %708
    %710 = vset.pattern.permute.xlu0 5
    %711 = vperm.xlu0 %710, %v106
    %v712 = vpop.permute.xlu0 %711
    %713 = vset.pattern.permute.xlu0 5
    %714 = vperm.xlu0 %713, %v107
    %v715 = vpop.permute.xlu0 %714
    %716 = vset.pattern.permute.xlu0 5
    %717 = vperm.xlu0 %716, %v108
    %v718 = vpop.permute.xlu0 %717
    %vm719 = vcmp.eq.s32.totalorder %v110, %v673
    %vm720 = vcmp.eq.s32.totalorder %v110, %v676
    %vm721 = vcmp.eq.s32.totalorder %v110, %v679
    %vm722 = vcmp.eq.s32.totalorder %v110, %v682
    %vm723 = vcmp.eq.s32.totalorder %v110, %v685
    %vm724 = vcmp.eq.s32.totalorder %v110, %v688
    %vm725 = vcmp.eq.s32.totalorder %v110, %v691
    %vm726 = vcmp.eq.s32.totalorder %v110, %v694
    %vm727 = vcmp.eq.s32.totalorder %v110, %v697
    %vm728 = vcmp.eq.s32.totalorder %v110, %v700
    %vm729 = vcmp.eq.s32.totalorder %v110, %v703
    %vm730 = vcmp.eq.s32.totalorder %v110, %v706
    %vm731 = vcmp.eq.s32.totalorder %v110, %v709
    %vm732 = vcmp.eq.s32.totalorder %v110, %v712
    %vm733 = vcmp.eq.s32.totalorder %v110, %v715
    %vm734 = vcmp.eq.s32.totalorder %v110, %v718
    %v735 = vsel %vm719, 1, 0
    %v736 = vsel %vm720, 1, 0
    %v737 = vsel %vm721, 1, 0
    %v738 = vsel %vm722, 1, 0
    %v739 = vsel %vm723, 1, 0
    %v740 = vsel %vm724, 1, 0
    %v741 = vsel %vm725, 1, 0
    %v742 = vsel %vm726, 1, 0
    %v743 = vsel %vm727, 1, 0
    %v744 = vsel %vm728, 1, 0
    %v745 = vsel %vm729, 1, 0
    %v746 = vsel %vm730, 1, 0
    %v747 = vsel %vm731, 1, 0
    %v748 = vsel %vm732, 1, 0
    %v749 = vsel %vm733, 1, 0
    %v750 = vsel %vm734, 1, 0
    %v751 = vcvt.s32.f32 %v735
    %v752 = vcvt.s32.f32 %v736
    %v753 = vcvt.s32.f32 %v737
    %v754 = vcvt.s32.f32 %v738
    %v755 = vcvt.s32.f32 %v739
    %v756 = vcvt.s32.f32 %v740
    %v757 = vcvt.s32.f32 %v741
    %v758 = vcvt.s32.f32 %v742
    %v759 = vcvt.s32.f32 %v743
    %v760 = vcvt.s32.f32 %v744
    %v761 = vcvt.s32.f32 %v745
    %v762 = vcvt.s32.f32 %v746
    %v763 = vcvt.s32.f32 %v747
    %v764 = vcvt.s32.f32 %v748
    %v765 = vcvt.s32.f32 %v749
    %v766 = vcvt.s32.f32 %v750
    %v767 = vadd.f32 %v655, %v751
    %v768 = vadd.f32 %v656, %v752
    %v769 = vadd.f32 %v657, %v753
    %v770 = vadd.f32 %v658, %v754
    %v771 = vadd.f32 %v659, %v755
    %v772 = vadd.f32 %v660, %v756
    %v773 = vadd.f32 %v661, %v757
    %v774 = vadd.f32 %v662, %v758
    %v775 = vadd.f32 %v663, %v759
    %v776 = vadd.f32 %v664, %v760
    %v777 = vadd.f32 %v665, %v761
    %v778 = vadd.f32 %v666, %v762
    %v779 = vadd.f32 %v667, %v763
    %v780 = vadd.f32 %v668, %v764
    %v781 = vadd.f32 %v669, %v765
    %v782 = vadd.f32 %v670, %v766
    %783 = vset.pattern.permute.xlu0 6
    %784 = vperm.xlu0 %783, %v93
    %v785 = vpop.permute.xlu0 %784
    %786 = vset.pattern.permute.xlu0 6
    %787 = vperm.xlu0 %786, %v94
    %v788 = vpop.permute.xlu0 %787
    %789 = vset.pattern.permute.xlu0 6
    %790 = vperm.xlu0 %789, %v95
    %v791 = vpop.permute.xlu0 %790
    %792 = vset.pattern.permute.xlu0 6
    %793 = vperm.xlu0 %792, %v96
    %v794 = vpop.permute.xlu0 %793
    %795 = vset.pattern.permute.xlu0 6
    %796 = vperm.xlu0 %795, %v97
    %v797 = vpop.permute.xlu0 %796
    %798 = vset.pattern.permute.xlu0 6
    %799 = vperm.xlu0 %798, %v98
    %v800 = vpop.permute.xlu0 %799
    %801 = vset.pattern.permute.xlu0 6
    %802 = vperm.xlu0 %801, %v99
    %v803 = vpop.permute.xlu0 %802
    %804 = vset.pattern.permute.xlu0 6
    %805 = vperm.xlu0 %804, %v100
    %v806 = vpop.permute.xlu0 %805
    %807 = vset.pattern.permute.xlu0 6
    %808 = vperm.xlu0 %807, %v101
    %v809 = vpop.permute.xlu0 %808
    %810 = vset.pattern.permute.xlu0 6
    %811 = vperm.xlu0 %810, %v102
    %v812 = vpop.permute.xlu0 %811
    %813 = vset.pattern.permute.xlu0 6
    %814 = vperm.xlu0 %813, %v103
    %v815 = vpop.permute.xlu0 %814
    %816 = vset.pattern.permute.xlu0 6
    %817 = vperm.xlu0 %816, %v104
    %v818 = vpop.permute.xlu0 %817
    %819 = vset.pattern.permute.xlu0 6
    %820 = vperm.xlu0 %819, %v105
    %v821 = vpop.permute.xlu0 %820
    %822 = vset.pattern.permute.xlu0 6
    %823 = vperm.xlu0 %822, %v106
    %v824 = vpop.permute.xlu0 %823
    %825 = vset.pattern.permute.xlu0 6
    %826 = vperm.xlu0 %825, %v107
    %v827 = vpop.permute.xlu0 %826
    %828 = vset.pattern.permute.xlu0 6
    %829 = vperm.xlu0 %828, %v108
    %v830 = vpop.permute.xlu0 %829
    %vm831 = vcmp.eq.s32.totalorder %v110, %v785
    %vm832 = vcmp.eq.s32.totalorder %v110, %v788
    %vm833 = vcmp.eq.s32.totalorder %v110, %v791
    %vm834 = vcmp.eq.s32.totalorder %v110, %v794
    %vm835 = vcmp.eq.s32.totalorder %v110, %v797
    %vm836 = vcmp.eq.s32.totalorder %v110, %v800
    %vm837 = vcmp.eq.s32.totalorder %v110, %v803
    %vm838 = vcmp.eq.s32.totalorder %v110, %v806
    %vm839 = vcmp.eq.s32.totalorder %v110, %v809
    %vm840 = vcmp.eq.s32.totalorder %v110, %v812
    %vm841 = vcmp.eq.s32.totalorder %v110, %v815
    %vm842 = vcmp.eq.s32.totalorder %v110, %v818
    %vm843 = vcmp.eq.s32.totalorder %v110, %v821
    %vm844 = vcmp.eq.s32.totalorder %v110, %v824
    %vm845 = vcmp.eq.s32.totalorder %v110, %v827
    %vm846 = vcmp.eq.s32.totalorder %v110, %v830
    %v847 = vsel %vm831, 1, 0
    %v848 = vsel %vm832, 1, 0
    %v849 = vsel %vm833, 1, 0
    %v850 = vsel %vm834, 1, 0
    %v851 = vsel %vm835, 1, 0
    %v852 = vsel %vm836, 1, 0
    %v853 = vsel %vm837, 1, 0
    %v854 = vsel %vm838, 1, 0
    %v855 = vsel %vm839, 1, 0
    %v856 = vsel %vm840, 1, 0
    %v857 = vsel %vm841, 1, 0
    %v858 = vsel %vm842, 1, 0
    %v859 = vsel %vm843, 1, 0
    %v860 = vsel %vm844, 1, 0
    %v861 = vsel %vm845, 1, 0
    %v862 = vsel %vm846, 1, 0
    %v863 = vcvt.s32.f32 %v847
    %v864 = vcvt.s32.f32 %v848
    %v865 = vcvt.s32.f32 %v849
    %v866 = vcvt.s32.f32 %v850
    %v867 = vcvt.s32.f32 %v851
    %v868 = vcvt.s32.f32 %v852
    %v869 = vcvt.s32.f32 %v853
    %v870 = vcvt.s32.f32 %v854
    %v871 = vcvt.s32.f32 %v855
    %v872 = vcvt.s32.f32 %v856
    %v873 = vcvt.s32.f32 %v857
    %v874 = vcvt.s32.f32 %v858
    %v875 = vcvt.s32.f32 %v859
    %v876 = vcvt.s32.f32 %v860
    %v877 = vcvt.s32.f32 %v861
    %v878 = vcvt.s32.f32 %v862
    %v879 = vadd.f32 %v767, %v863
    %v880 = vadd.f32 %v768, %v864
    %v881 = vadd.f32 %v769, %v865
    %v882 = vadd.f32 %v770, %v866
    %v883 = vadd.f32 %v771, %v867
    %v884 = vadd.f32 %v772, %v868
    %v885 = vadd.f32 %v773, %v869
    %v886 = vadd.f32 %v774, %v870
    %v887 = vadd.f32 %v775, %v871
    %v888 = vadd.f32 %v776, %v872
    %v889 = vadd.f32 %v777, %v873
    %v890 = vadd.f32 %v778, %v874
    %v891 = vadd.f32 %v779, %v875
    %v892 = vadd.f32 %v780, %v876
    %v893 = vadd.f32 %v781, %v877
    %v894 = vadd.f32 %v782, %v878
    %895 = vset.pattern.permute.xlu0 7
    %896 = vperm.xlu0 %895, %v93
    %v897 = vpop.permute.xlu0 %896
    %898 = vset.pattern.permute.xlu0 7
    %899 = vperm.xlu0 %898, %v94
    %v900 = vpop.permute.xlu0 %899
    %901 = vset.pattern.permute.xlu0 7
    %902 = vperm.xlu0 %901, %v95
    %v903 = vpop.permute.xlu0 %902
    %904 = vset.pattern.permute.xlu0 7
    %905 = vperm.xlu0 %904, %v96
    %v906 = vpop.permute.xlu0 %905
    %907 = vset.pattern.permute.xlu0 7
    %908 = vperm.xlu0 %907, %v97
    %v909 = vpop.permute.xlu0 %908
    %910 = vset.pattern.permute.xlu0 7
    %911 = vperm.xlu0 %910, %v98
    %v912 = vpop.permute.xlu0 %911
    %913 = vset.pattern.permute.xlu0 7
    %914 = vperm.xlu0 %913, %v99
    %v915 = vpop.permute.xlu0 %914
    %916 = vset.pattern.permute.xlu0 7
    %917 = vperm.xlu0 %916, %v100
    %v918 = vpop.permute.xlu0 %917
    %919 = vset.pattern.permute.xlu0 7
    %920 = vperm.xlu0 %919, %v101
    %v921 = vpop.permute.xlu0 %920
    %922 = vset.pattern.permute.xlu0 7
    %923 = vperm.xlu0 %922, %v102
    %v924 = vpop.permute.xlu0 %923
    %925 = vset.pattern.permute.xlu0 7
    %926 = vperm.xlu0 %925, %v103
    %v927 = vpop.permute.xlu0 %926
    %928 = vset.pattern.permute.xlu0 7
    %929 = vperm.xlu0 %928, %v104
    %v930 = vpop.permute.xlu0 %929
    %931 = vset.pattern.permute.xlu0 7
    %932 = vperm.xlu0 %931, %v105
    %v933 = vpop.permute.xlu0 %932
    %934 = vset.pattern.permute.xlu0 7
    %935 = vperm.xlu0 %934, %v106
    %v936 = vpop.permute.xlu0 %935
    %937 = vset.pattern.permute.xlu0 7
    %938 = vperm.xlu0 %937, %v107
    %v939 = vpop.permute.xlu0 %938
    %940 = vset.pattern.permute.xlu0 7
    %941 = vperm.xlu0 %940, %v108
    %v942 = vpop.permute.xlu0 %941
    %vm943 = vcmp.eq.s32.totalorder %v110, %v897
    %vm944 = vcmp.eq.s32.totalorder %v110, %v900
    %vm945 = vcmp.eq.s32.totalorder %v110, %v903
    %vm946 = vcmp.eq.s32.totalorder %v110, %v906
    %vm947 = vcmp.eq.s32.totalorder %v110, %v909
    %vm948 = vcmp.eq.s32.totalorder %v110, %v912
    %vm949 = vcmp.eq.s32.totalorder %v110, %v915
    %vm950 = vcmp.eq.s32.totalorder %v110, %v918
    %vm951 = vcmp.eq.s32.totalorder %v110, %v921
    %vm952 = vcmp.eq.s32.totalorder %v110, %v924
    %vm953 = vcmp.eq.s32.totalorder %v110, %v927
    %vm954 = vcmp.eq.s32.totalorder %v110, %v930
    %vm955 = vcmp.eq.s32.totalorder %v110, %v933
    %vm956 = vcmp.eq.s32.totalorder %v110, %v936
    %vm957 = vcmp.eq.s32.totalorder %v110, %v939
    %vm958 = vcmp.eq.s32.totalorder %v110, %v942
    %v959 = vsel %vm943, 1, 0
    %v960 = vsel %vm944, 1, 0
    %v961 = vsel %vm945, 1, 0
    %v962 = vsel %vm946, 1, 0
    %v963 = vsel %vm947, 1, 0
    %v964 = vsel %vm948, 1, 0
    %v965 = vsel %vm949, 1, 0
    %v966 = vsel %vm950, 1, 0
    %v967 = vsel %vm951, 1, 0
    %v968 = vsel %vm952, 1, 0
    %v969 = vsel %vm953, 1, 0
    %v970 = vsel %vm954, 1, 0
    %v971 = vsel %vm955, 1, 0
    %v972 = vsel %vm956, 1, 0
    %v973 = vsel %vm957, 1, 0
    %v974 = vsel %vm958, 1, 0
    %v975 = vcvt.s32.f32 %v959
    %v976 = vcvt.s32.f32 %v960
    %v977 = vcvt.s32.f32 %v961
    %v978 = vcvt.s32.f32 %v962
    %v979 = vcvt.s32.f32 %v963
    %v980 = vcvt.s32.f32 %v964
    %v981 = vcvt.s32.f32 %v965
    %v982 = vcvt.s32.f32 %v966
    %v983 = vcvt.s32.f32 %v967
    %v984 = vcvt.s32.f32 %v968
    %v985 = vcvt.s32.f32 %v969
    %v986 = vcvt.s32.f32 %v970
    %v987 = vcvt.s32.f32 %v971
    %v988 = vcvt.s32.f32 %v972
    %v989 = vcvt.s32.f32 %v973
    %v990 = vcvt.s32.f32 %v974
    %v991 = vadd.f32 %v879, %v975
    %v992 = vadd.f32 %v880, %v976
    %v993 = vadd.f32 %v881, %v977
    %v994 = vadd.f32 %v882, %v978
    %v995 = vadd.f32 %v883, %v979
    %v996 = vadd.f32 %v884, %v980
    %v997 = vadd.f32 %v885, %v981
    %v998 = vadd.f32 %v886, %v982
    %v999 = vadd.f32 %v887, %v983
    %v1000 = vadd.f32 %v888, %v984
    %v1001 = vadd.f32 %v889, %v985
    %v1002 = vadd.f32 %v890, %v986
    %v1003 = vadd.f32 %v891, %v987
    %v1004 = vadd.f32 %v892, %v988
    %v1005 = vadd.f32 %v893, %v989
    %v1006 = vadd.f32 %v894, %v990
    %v1007 = vld [vmem:[#allocation3] sm:$0x1]
    %v1009 = vlaneseq
    %v1010 = vshrl.u32 %v1009, 7
    %v1011 = vsub.s32 0, %v1010
    %v1012 = vrot.slane %v1007, %v1011
    %v1014 = vmul.f32 %v991, %v1012
    %v1015 = vmul.f32 %v992, %v1012
    %v1016 = vmul.f32 %v993, %v1012
    %v1017 = vmul.f32 %v994, %v1012
    %v1018 = vmul.f32 %v995, %v1012
    %v1019 = vmul.f32 %v996, %v1012
    %v1020 = vmul.f32 %v997, %v1012
    %v1021 = vmul.f32 %v998, %v1012
    %v1022 = vmul.f32 %v999, %v1012
    %v1023 = vmul.f32 %v1000, %v1012
    %v1024 = vmul.f32 %v1001, %v1012
    %v1025 = vmul.f32 %v1002, %v1012
    %v1026 = vmul.f32 %v1003, %v1012
    %v1027 = vmul.f32 %v1004, %v1012
    %v1028 = vmul.f32 %v1005, %v1012
    %v1029 = vmul.f32 %v1006, %v1012
    %1030 = vadd.xlane.f32.xlu0 %v1014
    %v1031 = vpop.xlane.xlu0 %1030
    %1032 = vadd.xlane.f32.xlu0 %v1015
    %v1033 = vpop.xlane.xlu0 %1032
    %1034 = vadd.xlane.f32.xlu0 %v1016
    %v1035 = vpop.xlane.xlu0 %1034
    %1036 = vadd.xlane.f32.xlu0 %v1017
    %v1037 = vpop.xlane.xlu0 %1036
    %1038 = vadd.xlane.f32.xlu0 %v1018
    %v1039 = vpop.xlane.xlu0 %1038
    %1040 = vadd.xlane.f32.xlu0 %v1019
    %v1041 = vpop.xlane.xlu0 %1040
    %1042 = vadd.xlane.f32.xlu0 %v1020
    %v1043 = vpop.xlane.xlu0 %1042
    %1044 = vadd.xlane.f32.xlu0 %v1021
    %v1045 = vpop.xlane.xlu0 %1044
    %1046 = vadd.xlane.f32.xlu0 %v1022
    %v1047 = vpop.xlane.xlu0 %1046
    %1048 = vadd.xlane.f32.xlu0 %v1023
    %v1049 = vpop.xlane.xlu0 %1048
    %1050 = vadd.xlane.f32.xlu0 %v1024
    %v1051 = vpop.xlane.xlu0 %1050
    %1052 = vadd.xlane.f32.xlu0 %v1025
    %v1053 = vpop.xlane.xlu0 %1052
    %1054 = vadd.xlane.f32.xlu0 %v1026
    %v1055 = vpop.xlane.xlu0 %1054
    %1056 = vadd.xlane.f32.xlu0 %v1027
    %v1057 = vpop.xlane.xlu0 %1056
    %1058 = vadd.xlane.f32.xlu0 %v1028
    %v1059 = vpop.xlane.xlu0 %1058
    %1060 = vadd.xlane.f32.xlu0 %v1029
    %v1061 = vpop.xlane.xlu0 %1060
    %v1062 = vld [vmem:[#allocation2] sm:$0xff]
    %v1063 = vld [vmem:[#allocation2 + $0x8] sm:$0xff]
    %v1064 = vld [vmem:[#allocation2 + $0x10] sm:$0xff]
    %v1065 = vld [vmem:[#allocation2 + $0x18] sm:$0xff]
    %v1066 = vld [vmem:[#allocation2 + $0x20] sm:$0xff]
    %v1067 = vld [vmem:[#allocation2 + $0x28] sm:$0xff]
    %v1068 = vld [vmem:[#allocation2 + $0x30] sm:$0xff]
    %v1069 = vld [vmem:[#allocation2 + $0x38] sm:$0xff]
    %v1070 = vld [vmem:[#allocation2 + $0x40] sm:$0xff]
    %v1071 = vld [vmem:[#allocation2 + $0x48] sm:$0xff]
    %v1072 = vld [vmem:[#allocation2 + $0x50] sm:$0xff]
    %v1073 = vld [vmem:[#allocation2 + $0x58] sm:$0xff]
    %v1074 = vld [vmem:[#allocation2 + $0x60] sm:$0xff]
    %v1075 = vld [vmem:[#allocation2 + $0x68] sm:$0xff]
    %v1076 = vld [vmem:[#allocation2 + $0x70] sm:$0xff]
    %v1077 = vld [vmem:[#allocation2 + $0x78] sm:$0xff]
    %v1078 = vadd.f32 %v1062, %v1031
    %v1079 = vadd.f32 %v1063, %v1033
    %v1080 = vadd.f32 %v1064, %v1035
    %v1081 = vadd.f32 %v1065, %v1037
    %v1082 = vadd.f32 %v1066, %v1039
    %v1083 = vadd.f32 %v1067, %v1041
    %v1084 = vadd.f32 %v1068, %v1043
    %v1085 = vadd.f32 %v1069, %v1045
    %v1086 = vadd.f32 %v1070, %v1047
    %v1087 = vadd.f32 %v1071, %v1049
    %v1088 = vadd.f32 %v1072, %v1051
    %v1089 = vadd.f32 %v1073, %v1053
    %v1090 = vadd.f32 %v1074, %v1055
    %v1091 = vadd.f32 %v1075, %v1057
    %v1092 = vadd.f32 %v1076, %v1059
    %v1093 = vadd.f32 %v1077, %v1061
    %vm1094 = vcmask 7168
    %1095 = vst.msk [vmem:[#allocation2] sm:$0xff] %vm1094, %v1078
    %1096 = vst.msk [vmem:[#allocation2 + $0x8] sm:$0xff] %vm1094, %v1079
    %1097 = vst.msk [vmem:[#allocation2 + $0x10] sm:$0xff] %vm1094, %v1080
    %1098 = vst.msk [vmem:[#allocation2 + $0x18] sm:$0xff] %vm1094, %v1081
    %1099 = vst.msk [vmem:[#allocation2 + $0x20] sm:$0xff] %vm1094, %v1082
    %1100 = vst.msk [vmem:[#allocation2 + $0x28] sm:$0xff] %vm1094, %v1083
    %1101 = vst.msk [vmem:[#allocation2 + $0x30] sm:$0xff] %vm1094, %v1084
    %1102 = vst.msk [vmem:[#allocation2 + $0x38] sm:$0xff] %vm1094, %v1085
    %1103 = vst.msk [vmem:[#allocation2 + $0x40] sm:$0xff] %vm1094, %v1086
    %1104 = vst.msk [vmem:[#allocation2 + $0x48] sm:$0xff] %vm1094, %v1087
    %1105 = vst.msk [vmem:[#allocation2 + $0x50] sm:$0xff] %vm1094, %v1088
    %1106 = vst.msk [vmem:[#allocation2 + $0x58] sm:$0xff] %vm1094, %v1089
    %1107 = vst.msk [vmem:[#allocation2 + $0x60] sm:$0xff] %vm1094, %v1090
    %1108 = vst.msk [vmem:[#allocation2 + $0x68] sm:$0xff] %vm1094, %v1091
    %1109 = vst.msk [vmem:[#allocation2 + $0x70] sm:$0xff] %vm1094, %v1092
    %1110 = vst.msk [vmem:[#allocation2 + $0x78] sm:$0xff] %vm1094, %v1093
    // Predicated region
    $region30: #{_optok_forward_impl.1} parent=1 // pred_check
      %p1111 = pneg %p54
    $region31: #{_optok_forward_impl.1} parent=1 // pred_check_branch
      %1113 = sbr.rel (%p1111) target = $region33
    $region32: #{_optok_forward_impl.1} parent=1 // pred_region
      %v1114 = vld [vmem:[#allocation2] sm:$0xff]
      %v1115 = vld [vmem:[#allocation2 + $0x8] sm:$0xff]
      %v1116 = vld [vmem:[#allocation2 + $0x10] sm:$0xff]
      %v1117 = vld [vmem:[#allocation2 + $0x18] sm:$0xff]
      %v1118 = vld [vmem:[#allocation2 + $0x20] sm:$0xff]
      %v1119 = vld [vmem:[#allocation2 + $0x28] sm:$0xff]
      %v1120 = vld [vmem:[#allocation2 + $0x30] sm:$0xff]
      %v1121 = vld [vmem:[#allocation2 + $0x38] sm:$0xff]
      %v1122 = vld [vmem:[#allocation2 + $0x40] sm:$0xff]
      %v1123 = vld [vmem:[#allocation2 + $0x48] sm:$0xff]
      %v1124 = vld [vmem:[#allocation2 + $0x50] sm:$0xff]
      %v1125 = vld [vmem:[#allocation2 + $0x58] sm:$0xff]
      %v1126 = vld [vmem:[#allocation2 + $0x60] sm:$0xff]
      %v1127 = vld [vmem:[#allocation2 + $0x68] sm:$0xff]
      %v1128 = vld [vmem:[#allocation2 + $0x70] sm:$0xff]
      %v1129 = vld [vmem:[#allocation2 + $0x78] sm:$0xff]
      %v1146 = vcombine.high %v1114, %v1114
      %v1147 = vcombine.high %v1115, %v1115
      %v1148 = vcombine.high %v1116, %v1116
      %v1149 = vcombine.high %v1117, %v1117
      %v1150 = vcombine.high %v1118, %v1118
      %v1151 = vcombine.high %v1119, %v1119
      %v1152 = vcombine.high %v1120, %v1120
      %v1153 = vcombine.high %v1121, %v1121
      %v1154 = vcombine.high %v1122, %v1122
      %v1155 = vcombine.high %v1123, %v1123
      %v1156 = vcombine.high %v1124, %v1124
      %v1157 = vcombine.high %v1125, %v1125
      %v1158 = vcombine.high %v1126, %v1126
      %v1159 = vcombine.high %v1127, %v1127
      %v1160 = vcombine.high %v1128, %v1128
      %v1161 = vcombine.high %v1129, %v1129
      %1178 = vset.pattern.permute.xlu0 0
      %1179 = vperm.xlu0 %1178, %v1114
      %v1180 = vpop.permute.xlu0 %1179
      %1181 = vset.pattern.permute.xlu0 0
      %1182 = vperm.xlu0 %1181, %v1146
      %v1183 = vpop.permute.xlu0 %1182
      %1184 = vset.pattern.permute.xlu0 0
      %1185 = vperm.xlu0 %1184, %v1115
      %v1186 = vpop.permute.xlu0 %1185
      %1187 = vset.pattern.permute.xlu0 0
      %1188 = vperm.xlu0 %1187, %v1147
      %v1189 = vpop.permute.xlu0 %1188
      %1190 = vset.pattern.permute.xlu0 0
      %1191 = vperm.xlu0 %1190, %v1116
      %v1192 = vpop.permute.xlu0 %1191
      %1193 = vset.pattern.permute.xlu0 0
      %1194 = vperm.xlu0 %1193, %v1148
      %v1195 = vpop.permute.xlu0 %1194
      %1196 = vset.pattern.permute.xlu0 0
      %1197 = vperm.xlu0 %1196, %v1117
      %v1198 = vpop.permute.xlu0 %1197
      %1199 = vset.pattern.permute.xlu0 0
      %1200 = vperm.xlu0 %1199, %v1149
      %v1201 = vpop.permute.xlu0 %1200
      %1202 = vset.pattern.permute.xlu0 0
      %1203 = vperm.xlu0 %1202, %v1118
      %v1204 = vpop.permute.xlu0 %1203
      %1205 = vset.pattern.permute.xlu0 0
      %1206 = vperm.xlu0 %1205, %v1150
      %v1207 = vpop.permute.xlu0 %1206
      %1208 = vset.pattern.permute.xlu0 0
      %1209 = vperm.xlu0 %1208, %v1119
      %v1210 = vpop.permute.xlu0 %1209
      %1211 = vset.pattern.permute.xlu0 0
      %1212 = vperm.xlu0 %1211, %v1151
      %v1213 = vpop.permute.xlu0 %1212
      %1214 = vset.pattern.permute.xlu0 0
      %1215 = vperm.xlu0 %1214, %v1120
      %v1216 = vpop.permute.xlu0 %1215
      %1217 = vset.pattern.permute.xlu0 0
      %1218 = vperm.xlu0 %1217, %v1152
      %v1219 = vpop.permute.xlu0 %1218
      %1220 = vset.pattern.permute.xlu0 0
      %1221 = vperm.xlu0 %1220, %v1121
      %v1222 = vpop.permute.xlu0 %1221
      %1223 = vset.pattern.permute.xlu0 0
      %1224 = vperm.xlu0 %1223, %v1153
      %v1225 = vpop.permute.xlu0 %1224
      %1226 = vset.pattern.permute.xlu0 0
      %1227 = vperm.xlu0 %1226, %v1122
      %v1228 = vpop.permute.xlu0 %1227
      %1229 = vset.pattern.permute.xlu0 0
      %1230 = vperm.xlu0 %1229, %v1154
      %v1231 = vpop.permute.xlu0 %1230
      %1232 = vset.pattern.permute.xlu0 0
      %1233 = vperm.xlu0 %1232, %v1123
      %v1234 = vpop.permute.xlu0 %1233
      %1235 = vset.pattern.permute.xlu0 0
      %1236 = vperm.xlu0 %1235, %v1155
      %v1237 = vpop.permute.xlu0 %1236
      %1238 = vset.pattern.permute.xlu0 0
      %1239 = vperm.xlu0 %1238, %v1124
      %v1240 = vpop.permute.xlu0 %1239
      %1241 = vset.pattern.permute.xlu0 0
      %1242 = vperm.xlu0 %1241, %v1156
      %v1243 = vpop.permute.xlu0 %1242
      %1244 = vset.pattern.permute.xlu0 0
      %1245 = vperm.xlu0 %1244, %v1125
      %v1246 = vpop.permute.xlu0 %1245
      %1247 = vset.pattern.permute.xlu0 0
      %1248 = vperm.xlu0 %1247, %v1157
      %v1249 = vpop.permute.xlu0 %1248
      %1250 = vset.pattern.permute.xlu0 0
      %1251 = vperm.xlu0 %1250, %v1126
      %v1252 = vpop.permute.xlu0 %1251
      %1253 = vset.pattern.permute.xlu0 0
      %1254 = vperm.xlu0 %1253, %v1158
      %v1255 = vpop.permute.xlu0 %1254
      %1256 = vset.pattern.permute.xlu0 0
      %1257 = vperm.xlu0 %1256, %v1127
      %v1258 = vpop.permute.xlu0 %1257
      %1259 = vset.pattern.permute.xlu0 0
      %1260 = vperm.xlu0 %1259, %v1159
      %v1261 = vpop.permute.xlu0 %1260
      %1262 = vset.pattern.permute.xlu0 0
      %1263 = vperm.xlu0 %1262, %v1128
      %v1264 = vpop.permute.xlu0 %1263
      %1265 = vset.pattern.permute.xlu0 0
      %1266 = vperm.xlu0 %1265, %v1160
      %v1267 = vpop.permute.xlu0 %1266
      %1268 = vset.pattern.permute.xlu0 0
      %1269 = vperm.xlu0 %1268, %v1129
      %v1270 = vpop.permute.xlu0 %1269
      %1271 = vset.pattern.permute.xlu0 0
      %1272 = vperm.xlu0 %1271, %v1161
      %v1273 = vpop.permute.xlu0 %1272
      %v1274 = vlaneseq
      %v1275 = vshrl.u32 %v1274, 7
      %v1276 = vsub.s32 %v110, %v1275
      %v1277 = vrot.slane %v1180, %v1276
      %v1278 = vlaneseq
      %v1279 = vshrl.u32 %v1278, 7
      %v1280 = vsub.s32 %v110, %v1279
      %v1281 = vrot.slane %v1183, %v1280
      %v1282 = vlaneseq
      %v1283 = vshrl.u32 %v1282, 7
      %v1284 = vsub.s32 %v110, %v1283
      %v1285 = vrot.slane %v1186, %v1284
      %v1286 = vlaneseq
      %v1287 = vshrl.u32 %v1286, 7
      %v1288 = vsub.s32 %v110, %v1287
      %v1289 = vrot.slane %v1189, %v1288
      %v1290 = vlaneseq
      %v1291 = vshrl.u32 %v1290, 7
      %v1292 = vsub.s32 %v110, %v1291
      %v1293 = vrot.slane %v1192, %v1292
      %v1294 = vlaneseq
      %v1295 = vshrl.u32 %v1294, 7
      %v1296 = vsub.s32 %v110, %v1295
      %v1297 = vrot.slane %v1195, %v1296
      %v1298 = vlaneseq
      %v1299 = vshrl.u32 %v1298, 7
      %v1300 = vsub.s32 %v110, %v1299
      %v1301 = vrot.slane %v1198, %v1300
      %v1302 = vlaneseq
      %v1303 = vshrl.u32 %v1302, 7
      %v1304 = vsub.s32 %v110, %v1303
      %v1305 = vrot.slane %v1201, %v1304
      %v1306 = vlaneseq
      %v1307 = vshrl.u32 %v1306, 7
      %v1308 = vsub.s32 %v110, %v1307
      %v1309 = vrot.slane %v1204, %v1308
      %v1310 = vlaneseq
      %v1311 = vshrl.u32 %v1310, 7
      %v1312 = vsub.s32 %v110, %v1311
      %v1313 = vrot.slane %v1207, %v1312
      %v1314 = vlaneseq
      %v1315 = vshrl.u32 %v1314, 7
      %v1316 = vsub.s32 %v110, %v1315
      %v1317 = vrot.slane %v1210, %v1316
      %v1318 = vlaneseq
      %v1319 = vshrl.u32 %v1318, 7
      %v1320 = vsub.s32 %v110, %v1319
      %v1321 = vrot.slane %v1213, %v1320
      %v1322 = vlaneseq
      %v1323 = vshrl.u32 %v1322, 7
      %v1324 = vsub.s32 %v110, %v1323
      %v1325 = vrot.slane %v1216, %v1324
      %v1326 = vlaneseq
      %v1327 = vshrl.u32 %v1326, 7
      %v1328 = vsub.s32 %v110, %v1327
      %v1329 = vrot.slane %v1219, %v1328
      %v1330 = vlaneseq
      %v1331 = vshrl.u32 %v1330, 7
      %v1332 = vsub.s32 %v110, %v1331
      %v1333 = vrot.slane %v1222, %v1332
      %v1334 = vlaneseq
      %v1335 = vshrl.u32 %v1334, 7
      %v1336 = vsub.s32 %v110, %v1335
      %v1337 = vrot.slane %v1225, %v1336
      %v1338 = vlaneseq
      %v1339 = vshrl.u32 %v1338, 7
      %v1340 = vsub.s32 %v110, %v1339
      %v1341 = vrot.slane %v1228, %v1340
      %v1342 = vlaneseq
      %v1343 = vshrl.u32 %v1342, 7
      %v1344 = vsub.s32 %v110, %v1343
      %v1345 = vrot.slane %v1231, %v1344
      %v1346 = vlaneseq
      %v1347 = vshrl.u32 %v1346, 7
      %v1348 = vsub.s32 %v110, %v1347
      %v1349 = vrot.slane %v1234, %v1348
      %v1350 = vlaneseq
      %v1351 = vshrl.u32 %v1350, 7
      %v1352 = vsub.s32 %v110, %v1351
      %v1353 = vrot.slane %v1237, %v1352
      %v1354 = vlaneseq
      %v1355 = vshrl.u32 %v1354, 7
      %v1356 = vsub.s32 %v110, %v1355
      %v1357 = vrot.slane %v1240, %v1356
      %v1358 = vlaneseq
      %v1359 = vshrl.u32 %v1358, 7
      %v1360 = vsub.s32 %v110, %v1359
      %v1361 = vrot.slane %v1243, %v1360
      %v1362 = vlaneseq
      %v1363 = vshrl.u32 %v1362, 7
      %v1364 = vsub.s32 %v110, %v1363
      %v1365 = vrot.slane %v1246, %v1364
      %v1366 = vlaneseq
      %v1367 = vshrl.u32 %v1366, 7
      %v1368 = vsub.s32 %v110, %v1367
      %v1369 = vrot.slane %v1249, %v1368
      %v1370 = vlaneseq
      %v1371 = vshrl.u32 %v1370, 7
      %v1372 = vsub.s32 %v110, %v1371
      %v1373 = vrot.slane %v1252, %v1372
      %v1374 = vlaneseq
      %v1375 = vshrl.u32 %v1374, 7
      %v1376 = vsub.s32 %v110, %v1375
      %v1377 = vrot.slane %v1255, %v1376
      %v1378 = vlaneseq
      %v1379 = vshrl.u32 %v1378, 7
      %v1380 = vsub.s32 %v110, %v1379
      %v1381 = vrot.slane %v1258, %v1380
      %v1382 = vlaneseq
      %v1383 = vshrl.u32 %v1382, 7
      %v1384 = vsub.s32 %v110, %v1383
      %v1385 = vrot.slane %v1261, %v1384
      %v1386 = vlaneseq
      %v1387 = vshrl.u32 %v1386, 7
      %v1388 = vsub.s32 %v110, %v1387
      %v1389 = vrot.slane %v1264, %v1388
      %v1390 = vlaneseq
      %v1391 = vshrl.u32 %v1390, 7
      %v1392 = vsub.s32 %v110, %v1391
      %v1393 = vrot.slane %v1267, %v1392
      %v1394 = vlaneseq
      %v1395 = vshrl.u32 %v1394, 7
      %v1396 = vsub.s32 %v110, %v1395
      %v1397 = vrot.slane %v1270, %v1396
      %v1398 = vlaneseq
      %v1399 = vshrl.u32 %v1398, 7
      %v1400 = vsub.s32 %v110, %v1399
      %v1401 = vrot.slane %v1273, %v1400
      %vm1402 = vcmask 1041409
      %v1403 = vsel %vm1402, %v1281, %v1277
      %vm1404 = vcmask 1042434
      %v1405 = vsel %vm1404, %v1285, %v1403
      %vm1406 = vcmask 1043459
      %v1407 = vsel %vm1406, %v1289, %v1405
      %vm1408 = vcmask 1044484
      %v1409 = vsel %vm1408, %v1293, %v1407
      %vm1410 = vcmask 1045509
      %v1411 = vsel %vm1410, %v1297, %v1409
      %vm1412 = vcmask 1046534
      %v1413 = vsel %vm1412, %v1301, %v1411
      %vm1414 = vcmask 1047559
      %v1415 = vsel %vm1414, %v1305, %v1413
      %v1416 = vsel %vm1402, %v1313, %v1309
      %v1417 = vsel %vm1404, %v1317, %v1416
      %v1418 = vsel %vm1406, %v1321, %v1417
      %v1419 = vsel %vm1408, %v1325, %v1418
      %v1420 = vsel %vm1410, %v1329, %v1419
      %v1421 = vsel %vm1412, %v1333, %v1420
      %v1422 = vsel %vm1414, %v1337, %v1421
      %v1423 = vsel %vm1402, %v1345, %v1341
      %v1424 = vsel %vm1404, %v1349, %v1423
      %v1425 = vsel %vm1406, %v1353, %v1424
      %v1426 = vsel %vm1408, %v1357, %v1425
      %v1427 = vsel %vm1410, %v1361, %v1426
      %v1428 = vsel %vm1412, %v1365, %v1427
      %v1429 = vsel %vm1414, %v1369, %v1428
      %v1430 = vsel %vm1402, %v1377, %v1373
      %v1431 = vsel %vm1404, %v1381, %v1430
      %v1432 = vsel %vm1406, %v1385, %v1431
      %v1433 = vsel %vm1408, %v1389, %v1432
      %v1434 = vsel %vm1410, %v1393, %v1433
      %v1435 = vsel %vm1412, %v1397, %v1434
      %v1436 = vsel %vm1414, %v1401, %v1435
      %vm1441 = vcmask 31744
      %v1442 = vsel %vm1441, %v1415, -inf
      %1443 = vmax.xlane.f32.xlu0 %v1442
      %v1444 = vpop.xlane.xlu0 %1443
      %v1445 = vsel %vm1441, %v1422, -inf
      %1446 = vmax.xlane.f32.xlu0 %v1445
      %v1447 = vpop.xlane.xlu0 %1446
      %v1448 = vsel %vm1441, %v1429, -inf
      %1449 = vmax.xlane.f32.xlu0 %v1448
      %v1450 = vpop.xlane.xlu0 %1449
      %v1451 = vsel %vm1441, %v1436, -inf
      %1452 = vmax.xlane.f32.xlu0 %v1451
      %v1453 = vpop.xlane.xlu0 %1452
      %v1459 = vunpack.c.l.s4 839922192
      %v1460 = vunpack.c.0.s8 %v1459
      %v1461 = vlaneseq
      %v1462 = vshrl.u32 %v1461, 7
      %v1463 = vsub.s32 %v1460, %v1462
      %v1464 = vrot.slane %v1444, %v1463
      %v1466 = vunpack.c.l.s4 1985246804
      %v1467 = vunpack.c.0.s8 %v1466
      %v1468 = vlaneseq
      %v1469 = vshrl.u32 %v1468, 7
      %v1470 = vsub.s32 %v1467, %v1469
      %v1471 = vrot.slane %v1444, %v1470
      %v1473 = vunpack.c.l.s4 839922192
      %v1474 = vunpack.c.0.s8 %v1473
      %v1475 = vlaneseq
      %v1476 = vshrl.u32 %v1475, 7
      %v1477 = vsub.s32 %v1474, %v1476
      %v1478 = vrot.slane %v1447, %v1477
      %v1480 = vunpack.c.l.s4 1985246804
      %v1481 = vunpack.c.0.s8 %v1480
      %v1482 = vlaneseq
      %v1483 = vshrl.u32 %v1482, 7
      %v1484 = vsub.s32 %v1481, %v1483
      %v1485 = vrot.slane %v1447, %v1484
      %v1487 = vunpack.c.l.s4 839922192
      %v1488 = vunpack.c.0.s8 %v1487
      %v1489 = vlaneseq
      %v1490 = vshrl.u32 %v1489, 7
      %v1491 = vsub.s32 %v1488, %v1490
      %v1492 = vrot.slane %v1450, %v1491
      %v1494 = vunpack.c.l.s4 1985246804
      %v1495 = vunpack.c.0.s8 %v1494
      %v1496 = vlaneseq
      %v1497 = vshrl.u32 %v1496, 7
      %v1498 = vsub.s32 %v1495, %v1497
      %v1499 = vrot.slane %v1450, %v1498
      %v1501 = vunpack.c.l.s4 839922192
      %v1502 = vunpack.c.0.s8 %v1501
      %v1503 = vlaneseq
      %v1504 = vshrl.u32 %v1503, 7
      %v1505 = vsub.s32 %v1502, %v1504
      %v1506 = vrot.slane %v1453, %v1505
      %v1508 = vunpack.c.l.s4 1985246804
      %v1509 = vunpack.c.0.s8 %v1508
      %v1510 = vlaneseq
      %v1511 = vshrl.u32 %v1510, 7
      %v1512 = vsub.s32 %v1509, %v1511
      %v1513 = vrot.slane %v1453, %v1512
      %v1514 = vcombine.low %v1464, %v1471
      %v1515 = vcombine.low %v1478, %v1485
      %v1516 = vcombine.low %v1492, %v1499
      %v1517 = vcombine.low %v1506, %v1513
      %v1518 = vlaneseq
      %v1519 = vshrl.u32 %v1518, 7
      %v1520 = vsub.s32 0, %v1519
      %v1521 = vrot.slane %v1514, %v1520
      %1523 = vbcast.lane.b32.xlu0 %v1521, 256
      %v1524 = vpop.permute.xlu0 %1523
      %v1525 = vlaneseq
      %v1526 = vshrl.u32 %v1525, 7
      %v1527 = vsub.s32 1, %v1526
      %v1528 = vrot.slane %v1514, %v1527
      %1530 = vbcast.lane.b32.xlu0 %v1528, 256
      %v1531 = vpop.permute.xlu0 %1530
      %v1532 = vlaneseq
      %v1533 = vshrl.u32 %v1532, 7
      %v1534 = vsub.s32 2, %v1533
      %v1535 = vrot.slane %v1514, %v1534
      %1537 = vbcast.lane.b32.xlu0 %v1535, 256
      %v1538 = vpop.permute.xlu0 %1537
      %v1539 = vlaneseq
      %v1540 = vshrl.u32 %v1539, 7
      %v1541 = vsub.s32 3, %v1540
      %v1542 = vrot.slane %v1514, %v1541
      %1544 = vbcast.lane.b32.xlu0 %v1542, 256
      %v1545 = vpop.permute.xlu0 %1544
      %v1546 = vlaneseq
      %v1547 = vshrl.u32 %v1546, 7
      %v1548 = vsub.s32 4, %v1547
      %v1549 = vrot.slane %v1514, %v1548
      %1551 = vbcast.lane.b32.xlu0 %v1549, 256
      %v1552 = vpop.permute.xlu0 %1551
      %v1553 = vlaneseq
      %v1554 = vshrl.u32 %v1553, 7
      %v1555 = vsub.s32 5, %v1554
      %v1556 = vrot.slane %v1514, %v1555
      %1558 = vbcast.lane.b32.xlu0 %v1556, 256
      %v1559 = vpop.permute.xlu0 %1558
      %v1560 = vlaneseq
      %v1561 = vshrl.u32 %v1560, 7
      %v1562 = vsub.s32 6, %v1561
      %v1563 = vrot.slane %v1514, %v1562
      %1565 = vbcast.lane.b32.xlu0 %v1563, 256
      %v1566 = vpop.permute.xlu0 %1565
      %v1567 = vlaneseq
      %v1568 = vshrl.u32 %v1567, 7
      %v1569 = vsub.s32 7, %v1568
      %v1570 = vrot.slane %v1514, %v1569
      %1572 = vbcast.lane.b32.xlu0 %v1570, 256
      %v1573 = vpop.permute.xlu0 %1572
      %v1574 = vlaneseq
      %v1575 = vshrl.u32 %v1574, 7
      %v1576 = vsub.s32 0, %v1575
      %v1577 = vrot.slane %v1515, %v1576
      %1579 = vbcast.lane.b32.xlu0 %v1577, 256
      %v1580 = vpop.permute.xlu0 %1579
      %v1581 = vlaneseq
      %v1582 = vshrl.u32 %v1581, 7
      %v1583 = vsub.s32 1, %v1582
      %v1584 = vrot.slane %v1515, %v1583
      %1586 = vbcast.lane.b32.xlu0 %v1584, 256
      %v1587 = vpop.permute.xlu0 %1586
      %v1588 = vlaneseq
      %v1589 = vshrl.u32 %v1588, 7
      %v1590 = vsub.s32 2, %v1589
      %v1591 = vrot.slane %v1515, %v1590
      %1593 = vbcast.lane.b32.xlu0 %v1591, 256
      %v1594 = vpop.permute.xlu0 %1593
      %v1595 = vlaneseq
      %v1596 = vshrl.u32 %v1595, 7
      %v1597 = vsub.s32 3, %v1596
      %v1598 = vrot.slane %v1515, %v1597
      %1600 = vbcast.lane.b32.xlu0 %v1598, 256
      %v1601 = vpop.permute.xlu0 %1600
      %v1602 = vlaneseq
      %v1603 = vshrl.u32 %v1602, 7
      %v1604 = vsub.s32 4, %v1603
      %v1605 = vrot.slane %v1515, %v1604
      %1607 = vbcast.lane.b32.xlu0 %v1605, 256
      %v1608 = vpop.permute.xlu0 %1607
      %v1609 = vlaneseq
      %v1610 = vshrl.u32 %v1609, 7
      %v1611 = vsub.s32 5, %v1610
      %v1612 = vrot.slane %v1515, %v1611
      %1614 = vbcast.lane.b32.xlu0 %v1612, 256
      %v1615 = vpop.permute.xlu0 %1614
      %v1616 = vlaneseq
      %v1617 = vshrl.u32 %v1616, 7
      %v1618 = vsub.s32 6, %v1617
      %v1619 = vrot.slane %v1515, %v1618
      %1621 = vbcast.lane.b32.xlu0 %v1619, 256
      %v1622 = vpop.permute.xlu0 %1621
      %v1623 = vlaneseq
      %v1624 = vshrl.u32 %v1623, 7
      %v1625 = vsub.s32 7, %v1624
      %v1626 = vrot.slane %v1515, %v1625
      %1628 = vbcast.lane.b32.xlu0 %v1626, 256
      %v1629 = vpop.permute.xlu0 %1628
      %v1630 = vlaneseq
      %v1631 = vshrl.u32 %v1630, 7
      %v1632 = vsub.s32 0, %v1631
      %v1633 = vrot.slane %v1516, %v1632
      %1635 = vbcast.lane.b32.xlu0 %v1633, 256
      %v1636 = vpop.permute.xlu0 %1635
      %v1637 = vlaneseq
      %v1638 = vshrl.u32 %v1637, 7
      %v1639 = vsub.s32 1, %v1638
      %v1640 = vrot.slane %v1516, %v1639
      %1642 = vbcast.lane.b32.xlu0 %v1640, 256
      %v1643 = vpop.permute.xlu0 %1642
      %v1644 = vlaneseq
      %v1645 = vshrl.u32 %v1644, 7
      %v1646 = vsub.s32 2, %v1645
      %v1647 = vrot.slane %v1516, %v1646
      %1649 = vbcast.lane.b32.xlu0 %v1647, 256
      %v1650 = vpop.permute.xlu0 %1649
      %v1651 = vlaneseq
      %v1652 = vshrl.u32 %v1651, 7
      %v1653 = vsub.s32 3, %v1652
      %v1654 = vrot.slane %v1516, %v1653
      %1656 = vbcast.lane.b32.xlu0 %v1654, 256
      %v1657 = vpop.permute.xlu0 %1656
      %v1658 = vlaneseq
      %v1659 = vshrl.u32 %v1658, 7
      %v1660 = vsub.s32 4, %v1659
      %v1661 = vrot.slane %v1516, %v1660
      %1663 = vbcast.lane.b32.xlu0 %v1661, 256
      %v1664 = vpop.permute.xlu0 %1663
      %v1665 = vlaneseq
      %v1666 = vshrl.u32 %v1665, 7
      %v1667 = vsub.s32 5, %v1666
      %v1668 = vrot.slane %v1516, %v1667
      %1670 = vbcast.lane.b32.xlu0 %v1668, 256
      %v1671 = vpop.permute.xlu0 %1670
      %v1672 = vlaneseq
      %v1673 = vshrl.u32 %v1672, 7
      %v1674 = vsub.s32 6, %v1673
      %v1675 = vrot.slane %v1516, %v1674
      %1677 = vbcast.lane.b32.xlu0 %v1675, 256
      %v1678 = vpop.permute.xlu0 %1677
      %v1679 = vlaneseq
      %v1680 = vshrl.u32 %v1679, 7
      %v1681 = vsub.s32 7, %v1680
      %v1682 = vrot.slane %v1516, %v1681
      %1684 = vbcast.lane.b32.xlu0 %v1682, 256
      %v1685 = vpop.permute.xlu0 %1684
      %v1686 = vlaneseq
      %v1687 = vshrl.u32 %v1686, 7
      %v1688 = vsub.s32 0, %v1687
      %v1689 = vrot.slane %v1517, %v1688
      %1691 = vbcast.lane.b32.xlu0 %v1689, 256
      %v1692 = vpop.permute.xlu0 %1691
      %v1693 = vlaneseq
      %v1694 = vshrl.u32 %v1693, 7
      %v1695 = vsub.s32 1, %v1694
      %v1696 = vrot.slane %v1517, %v1695
      %1698 = vbcast.lane.b32.xlu0 %v1696, 256
      %v1699 = vpop.permute.xlu0 %1698
      %v1700 = vlaneseq
      %v1701 = vshrl.u32 %v1700, 7
      %v1702 = vsub.s32 2, %v1701
      %v1703 = vrot.slane %v1517, %v1702
      %1705 = vbcast.lane.b32.xlu0 %v1703, 256
      %v1706 = vpop.permute.xlu0 %1705
      %v1707 = vlaneseq
      %v1708 = vshrl.u32 %v1707, 7
      %v1709 = vsub.s32 3, %v1708
      %v1710 = vrot.slane %v1517, %v1709
      %1712 = vbcast.lane.b32.xlu0 %v1710, 256
      %v1713 = vpop.permute.xlu0 %1712
      %v1714 = vlaneseq
      %v1715 = vshrl.u32 %v1714, 7
      %v1716 = vsub.s32 4, %v1715
      %v1717 = vrot.slane %v1517, %v1716
      %1719 = vbcast.lane.b32.xlu0 %v1717, 256
      %v1720 = vpop.permute.xlu0 %1719
      %v1721 = vlaneseq
      %v1722 = vshrl.u32 %v1721, 7
      %v1723 = vsub.s32 5, %v1722
      %v1724 = vrot.slane %v1517, %v1723
      %1726 = vbcast.lane.b32.xlu0 %v1724, 256
      %v1727 = vpop.permute.xlu0 %1726
      %v1728 = vlaneseq
      %v1729 = vshrl.u32 %v1728, 7
      %v1730 = vsub.s32 6, %v1729
      %v1731 = vrot.slane %v1517, %v1730
      %1733 = vbcast.lane.b32.xlu0 %v1731, 256
      %v1734 = vpop.permute.xlu0 %1733
      %v1735 = vlaneseq
      %v1736 = vshrl.u32 %v1735, 7
      %v1737 = vsub.s32 7, %v1736
      %v1738 = vrot.slane %v1517, %v1737
      %1740 = vbcast.lane.b32.xlu0 %v1738, 256
      %v1741 = vpop.permute.xlu0 %1740
      %v1774 = vsub.f32 %v1114, %v1524
      %v1775 = vsub.f32 %v1146, %v1531
      %v1776 = vsub.f32 %v1115, %v1538
      %v1777 = vsub.f32 %v1147, %v1545
      %v1778 = vsub.f32 %v1116, %v1552
      %v1779 = vsub.f32 %v1148, %v1559
      %v1780 = vsub.f32 %v1117, %v1566
      %v1781 = vsub.f32 %v1149, %v1573
      %v1782 = vsub.f32 %v1118, %v1580
      %v1783 = vsub.f32 %v1150, %v1587
      %v1784 = vsub.f32 %v1119, %v1594
      %v1785 = vsub.f32 %v1151, %v1601
      %v1786 = vsub.f32 %v1120, %v1608
      %v1787 = vsub.f32 %v1152, %v1615
      %v1788 = vsub.f32 %v1121, %v1622
      %v1789 = vsub.f32 %v1153, %v1629
      %v1790 = vsub.f32 %v1122, %v1636
      %v1791 = vsub.f32 %v1154, %v1643
      %v1792 = vsub.f32 %v1123, %v1650
      %v1793 = vsub.f32 %v1155, %v1657
      %v1794 = vsub.f32 %v1124, %v1664
      %v1795 = vsub.f32 %v1156, %v1671
      %v1796 = vsub.f32 %v1125, %v1678
      %v1797 = vsub.f32 %v1157, %v1685
      %v1798 = vsub.f32 %v1126, %v1692
      %v1799 = vsub.f32 %v1158, %v1699
      %v1800 = vsub.f32 %v1127, %v1706
      %v1801 = vsub.f32 %v1159, %v1713
      %v1802 = vsub.f32 %v1128, %v1720
      %v1803 = vsub.f32 %v1160, %v1727
      %v1804 = vsub.f32 %v1129, %v1734
      %v1805 = vsub.f32 %v1161, %v1741
      %v1806 = vmul.f32 %v1774, 1.442695
      %v1807 = vpow.pop %v1806
      %v1808 = vmul.f32 %v1775, 1.442695
      %v1809 = vpow.pop %v1808
      %v1810 = vmul.f32 %v1776, 1.442695
      %v1811 = vpow.pop %v1810
      %v1812 = vmul.f32 %v1777, 1.442695
      %v1813 = vpow.pop %v1812
      %v1814 = vmul.f32 %v1778, 1.442695
      %v1815 = vpow.pop %v1814
      %v1816 = vmul.f32 %v1779, 1.442695
      %v1817 = vpow.pop %v1816
      %v1818 = vmul.f32 %v1780, 1.442695
      %v1819 = vpow.pop %v1818
      %v1820 = vmul.f32 %v1781, 1.442695
      %v1821 = vpow.pop %v1820
      %v1822 = vmul.f32 %v1782, 1.442695
      %v1823 = vpow.pop %v1822
      %v1824 = vmul.f32 %v1783, 1.442695
      %v1825 = vpow.pop %v1824
      %v1826 = vmul.f32 %v1784, 1.442695
      %v1827 = vpow.pop %v1826
      %v1828 = vmul.f32 %v1785, 1.442695
      %v1829 = vpow.pop %v1828
      %v1830 = vmul.f32 %v1786, 1.442695
      %v1831 = vpow.pop %v1830
      %v1832 = vmul.f32 %v1787, 1.442695
      %v1833 = vpow.pop %v1832
      %v1834 = vmul.f32 %v1788, 1.442695
      %v1835 = vpow.pop %v1834
      %v1836 = vmul.f32 %v1789, 1.442695
      %v1837 = vpow.pop %v1836
      %v1838 = vmul.f32 %v1790, 1.442695
      %v1839 = vpow.pop %v1838
      %v1840 = vmul.f32 %v1791, 1.442695
      %v1841 = vpow.pop %v1840
      %v1842 = vmul.f32 %v1792, 1.442695
      %v1843 = vpow.pop %v1842
      %v1844 = vmul.f32 %v1793, 1.442695
      %v1845 = vpow.pop %v1844
      %v1846 = vmul.f32 %v1794, 1.442695
      %v1847 = vpow.pop %v1846
      %v1848 = vmul.f32 %v1795, 1.442695
      %v1849 = vpow.pop %v1848
      %v1850 = vmul.f32 %v1796, 1.442695
      %v1851 = vpow.pop %v1850
      %v1852 = vmul.f32 %v1797, 1.442695
      %v1853 = vpow.pop %v1852
      %v1854 = vmul.f32 %v1798, 1.442695
      %v1855 = vpow.pop %v1854
      %v1856 = vmul.f32 %v1799, 1.442695
      %v1857 = vpow.pop %v1856
      %v1858 = vmul.f32 %v1800, 1.442695
      %v1859 = vpow.pop %v1858
      %v1860 = vmul.f32 %v1801, 1.442695
      %v1861 = vpow.pop %v1860
      %v1862 = vmul.f32 %v1802, 1.442695
      %v1863 = vpow.pop %v1862
      %v1864 = vmul.f32 %v1803, 1.442695
      %v1865 = vpow.pop %v1864
      %v1866 = vmul.f32 %v1804, 1.442695
      %v1867 = vpow.pop %v1866
      %v1868 = vmul.f32 %v1805, 1.442695
      %v1869 = vpow.pop %v1868
      %1902 = vset.pattern.permute.xlu0 0
      %1903 = vperm.xlu0 %1902, %v1807
      %v1904 = vpop.permute.xlu0 %1903
      %1905 = vset.pattern.permute.xlu0 0
      %1906 = vperm.xlu0 %1905, %v1809
      %v1907 = vpop.permute.xlu0 %1906
      %1908 = vset.pattern.permute.xlu0 0
      %1909 = vperm.xlu0 %1908, %v1811
      %v1910 = vpop.permute.xlu0 %1909
      %1911 = vset.pattern.permute.xlu0 0
      %1912 = vperm.xlu0 %1911, %v1813
      %v1913 = vpop.permute.xlu0 %1912
      %1914 = vset.pattern.permute.xlu0 0
      %1915 = vperm.xlu0 %1914, %v1815
      %v1916 = vpop.permute.xlu0 %1915
      %1917 = vset.pattern.permute.xlu0 0
      %1918 = vperm.xlu0 %1917, %v1817
      %v1919 = vpop.permute.xlu0 %1918
      %1920 = vset.pattern.permute.xlu0 0
      %1921 = vperm.xlu0 %1920, %v1819
      %v1922 = vpop.permute.xlu0 %1921
      %1923 = vset.pattern.permute.xlu0 0
      %1924 = vperm.xlu0 %1923, %v1821
      %v1925 = vpop.permute.xlu0 %1924
      %1926 = vset.pattern.permute.xlu0 0
      %1927 = vperm.xlu0 %1926, %v1823
      %v1928 = vpop.permute.xlu0 %1927
      %1929 = vset.pattern.permute.xlu0 0
      %1930 = vperm.xlu0 %1929, %v1825
      %v1931 = vpop.permute.xlu0 %1930
      %1932 = vset.pattern.permute.xlu0 0
      %1933 = vperm.xlu0 %1932, %v1827
      %v1934 = vpop.permute.xlu0 %1933
      %1935 = vset.pattern.permute.xlu0 0
      %1936 = vperm.xlu0 %1935, %v1829
      %v1937 = vpop.permute.xlu0 %1936
      %1938 = vset.pattern.permute.xlu0 0
      %1939 = vperm.xlu0 %1938, %v1831
      %v1940 = vpop.permute.xlu0 %1939
      %1941 = vset.pattern.permute.xlu0 0
      %1942 = vperm.xlu0 %1941, %v1833
      %v1943 = vpop.permute.xlu0 %1942
      %1944 = vset.pattern.permute.xlu0 0
      %1945 = vperm.xlu0 %1944, %v1835
      %v1946 = vpop.permute.xlu0 %1945
      %1947 = vset.pattern.permute.xlu0 0
      %1948 = vperm.xlu0 %1947, %v1837
      %v1949 = vpop.permute.xlu0 %1948
      %1950 = vset.pattern.permute.xlu0 0
      %1951 = vperm.xlu0 %1950, %v1839
      %v1952 = vpop.permute.xlu0 %1951
      %1953 = vset.pattern.permute.xlu0 0
      %1954 = vperm.xlu0 %1953, %v1841
      %v1955 = vpop.permute.xlu0 %1954
      %1956 = vset.pattern.permute.xlu0 0
      %1957 = vperm.xlu0 %1956, %v1843
      %v1958 = vpop.permute.xlu0 %1957
      %1959 = vset.pattern.permute.xlu0 0
      %1960 = vperm.xlu0 %1959, %v1845
      %v1961 = vpop.permute.xlu0 %1960
      %1962 = vset.pattern.permute.xlu0 0
      %1963 = vperm.xlu0 %1962, %v1847
      %v1964 = vpop.permute.xlu0 %1963
      %1965 = vset.pattern.permute.xlu0 0
      %1966 = vperm.xlu0 %1965, %v1849
      %v1967 = vpop.permute.xlu0 %1966
      %1968 = vset.pattern.permute.xlu0 0
      %1969 = vperm.xlu0 %1968, %v1851
      %v1970 = vpop.permute.xlu0 %1969
      %1971 = vset.pattern.permute.xlu0 0
      %1972 = vperm.xlu0 %1971, %v1853
      %v1973 = vpop.permute.xlu0 %1972
      %1974 = vset.pattern.permute.xlu0 0
      %1975 = vperm.xlu0 %1974, %v1855
      %v1976 = vpop.permute.xlu0 %1975
      %1977 = vset.pattern.permute.xlu0 0
      %1978 = vperm.xlu0 %1977, %v1857
      %v1979 = vpop.permute.xlu0 %1978
      %1980 = vset.pattern.permute.xlu0 0
      %1981 = vperm.xlu0 %1980, %v1859
      %v1982 = vpop.permute.xlu0 %1981
      %1983 = vset.pattern.permute.xlu0 0
      %1984 = vperm.xlu0 %1983, %v1861
      %v1985 = vpop.permute.xlu0 %1984
      %1986 = vset.pattern.permute.xlu0 0
      %1987 = vperm.xlu0 %1986, %v1863
      %v1988 = vpop.permute.xlu0 %1987
      %1989 = vset.pattern.permute.xlu0 0
      %1990 = vperm.xlu0 %1989, %v1865
      %v1991 = vpop.permute.xlu0 %1990
      %1992 = vset.pattern.permute.xlu0 0
      %1993 = vperm.xlu0 %1992, %v1867
      %v1994 = vpop.permute.xlu0 %1993
      %1995 = vset.pattern.permute.xlu0 0
      %1996 = vperm.xlu0 %1995, %v1869
      %v1997 = vpop.permute.xlu0 %1996
      %v1998 = vlaneseq
      %v1999 = vshrl.u32 %v1998, 7
      %v2000 = vsub.s32 %v110, %v1999
      %v2001 = vrot.slane %v1904, %v2000
      %v2002 = vlaneseq
      %v2003 = vshrl.u32 %v2002, 7
      %v2004 = vsub.s32 %v110, %v2003
      %v2005 = vrot.slane %v1907, %v2004
      %v2006 = vlaneseq
      %v2007 = vshrl.u32 %v2006, 7
      %v2008 = vsub.s32 %v110, %v2007
      %v2009 = vrot.slane %v1910, %v2008
      %v2010 = vlaneseq
      %v2011 = vshrl.u32 %v2010, 7
      %v2012 = vsub.s32 %v110, %v2011
      %v2013 = vrot.slane %v1913, %v2012
      %v2014 = vlaneseq
      %v2015 = vshrl.u32 %v2014, 7
      %v2016 = vsub.s32 %v110, %v2015
      %v2017 = vrot.slane %v1916, %v2016
      %v2018 = vlaneseq
      %v2019 = vshrl.u32 %v2018, 7
      %v2020 = vsub.s32 %v110, %v2019
      %v2021 = vrot.slane %v1919, %v2020
      %v2022 = vlaneseq
      %v2023 = vshrl.u32 %v2022, 7
      %v2024 = vsub.s32 %v110, %v2023
      %v2025 = vrot.slane %v1922, %v2024
      %v2026 = vlaneseq
      %v2027 = vshrl.u32 %v2026, 7
      %v2028 = vsub.s32 %v110, %v2027
      %v2029 = vrot.slane %v1925, %v2028
      %v2030 = vlaneseq
      %v2031 = vshrl.u32 %v2030, 7
      %v2032 = vsub.s32 %v110, %v2031
      %v2033 = vrot.slane %v1928, %v2032
      %v2034 = vlaneseq
      %v2035 = vshrl.u32 %v2034, 7
      %v2036 = vsub.s32 %v110, %v2035
      %v2037 = vrot.slane %v1931, %v2036
      %v2038 = vlaneseq
      %v2039 = vshrl.u32 %v2038, 7
      %v2040 = vsub.s32 %v110, %v2039
      %v2041 = vrot.slane %v1934, %v2040
      %v2042 = vlaneseq
      %v2043 = vshrl.u32 %v2042, 7
      %v2044 = vsub.s32 %v110, %v2043
      %v2045 = vrot.slane %v1937, %v2044
      %v2046 = vlaneseq
      %v2047 = vshrl.u32 %v2046, 7
      %v2048 = vsub.s32 %v110, %v2047
      %v2049 = vrot.slane %v1940, %v2048
      %v2050 = vlaneseq
      %v2051 = vshrl.u32 %v2050, 7
      %v2052 = vsub.s32 %v110, %v2051
      %v2053 = vrot.slane %v1943, %v2052
      %v2054 = vlaneseq
      %v2055 = vshrl.u32 %v2054, 7
      %v2056 = vsub.s32 %v110, %v2055
      %v2057 = vrot.slane %v1946, %v2056
      %v2058 = vlaneseq
      %v2059 = vshrl.u32 %v2058, 7
      %v2060 = vsub.s32 %v110, %v2059
      %v2061 = vrot.slane %v1949, %v2060
      %v2062 = vlaneseq
      %v2063 = vshrl.u32 %v2062, 7
      %v2064 = vsub.s32 %v110, %v2063
      %v2065 = vrot.slane %v1952, %v2064
      %v2066 = vlaneseq
      %v2067 = vshrl.u32 %v2066, 7
      %v2068 = vsub.s32 %v110, %v2067
      %v2069 = vrot.slane %v1955, %v2068
      %v2070 = vlaneseq
      %v2071 = vshrl.u32 %v2070, 7
      %v2072 = vsub.s32 %v110, %v2071
      %v2073 = vrot.slane %v1958, %v2072
      %v2074 = vlaneseq
      %v2075 = vshrl.u32 %v2074, 7
      %v2076 = vsub.s32 %v110, %v2075
      %v2077 = vrot.slane %v1961, %v2076
      %v2078 = vlaneseq
      %v2079 = vshrl.u32 %v2078, 7
      %v2080 = vsub.s32 %v110, %v2079
      %v2081 = vrot.slane %v1964, %v2080
      %v2082 = vlaneseq
      %v2083 = vshrl.u32 %v2082, 7
      %v2084 = vsub.s32 %v110, %v2083
      %v2085 = vrot.slane %v1967, %v2084
      %v2086 = vlaneseq
      %v2087 = vshrl.u32 %v2086, 7
      %v2088 = vsub.s32 %v110, %v2087
      %v2089 = vrot.slane %v1970, %v2088
      %v2090 = vlaneseq
      %v2091 = vshrl.u32 %v2090, 7
      %v2092 = vsub.s32 %v110, %v2091
      %v2093 = vrot.slane %v1973, %v2092
      %v2094 = vlaneseq
      %v2095 = vshrl.u32 %v2094, 7
      %v2096 = vsub.s32 %v110, %v2095
      %v2097 = vrot.slane %v1976, %v2096
      %v2098 = vlaneseq
      %v2099 = vshrl.u32 %v2098, 7
      %v2100 = vsub.s32 %v110, %v2099
      %v2101 = vrot.slane %v1979, %v2100
      %v2102 = vlaneseq
      %v2103 = vshrl.u32 %v2102, 7
      %v2104 = vsub.s32 %v110, %v2103
      %v2105 = vrot.slane %v1982, %v2104
      %v2106 = vlaneseq
      %v2107 = vshrl.u32 %v2106, 7
      %v2108 = vsub.s32 %v110, %v2107
      %v2109 = vrot.slane %v1985, %v2108
      %v2110 = vlaneseq
      %v2111 = vshrl.u32 %v2110, 7
      %v2112 = vsub.s32 %v110, %v2111
      %v2113 = vrot.slane %v1988, %v2112
      %v2114 = vlaneseq
      %v2115 = vshrl.u32 %v2114, 7
      %v2116 = vsub.s32 %v110, %v2115
      %v2117 = vrot.slane %v1991, %v2116
      %v2118 = vlaneseq
      %v2119 = vshrl.u32 %v2118, 7
      %v2120 = vsub.s32 %v110, %v2119
      %v2121 = vrot.slane %v1994, %v2120
      %v2122 = vlaneseq
      %v2123 = vshrl.u32 %v2122, 7
      %v2124 = vsub.s32 %v110, %v2123
      %v2125 = vrot.slane %v1997, %v2124
      %v2126 = vsel %vm1402, %v2005, %v2001
      %v2127 = vsel %vm1404, %v2009, %v2126
      %v2128 = vsel %vm1406, %v2013, %v2127
      %v2129 = vsel %vm1408, %v2017, %v2128
      %v2130 = vsel %vm1410, %v2021, %v2129
      %v2131 = vsel %vm1412, %v2025, %v2130
      %v2132 = vsel %vm1414, %v2029, %v2131
      %v2133 = vsel %vm1402, %v2037, %v2033
      %v2134 = vsel %vm1404, %v2041, %v2133
      %v2135 = vsel %vm1406, %v2045, %v2134
      %v2136 = vsel %vm1408, %v2049, %v2135
      %v2137 = vsel %vm1410, %v2053, %v2136
      %v2138 = vsel %vm1412, %v2057, %v2137
      %v2139 = vsel %vm1414, %v2061, %v2138
      %v2140 = vsel %vm1402, %v2069, %v2065
      %v2141 = vsel %vm1404, %v2073, %v2140
      %v2142 = vsel %vm1406, %v2077, %v2141
      %v2143 = vsel %vm1408, %v2081, %v2142
      %v2144 = vsel %vm1410, %v2085, %v2143
      %v2145 = vsel %vm1412, %v2089, %v2144
      %v2146 = vsel %vm1414, %v2093, %v2145
      %v2147 = vsel %vm1402, %v2101, %v2097
      %v2148 = vsel %vm1404, %v2105, %v2147
      %v2149 = vsel %vm1406, %v2109, %v2148
      %v2150 = vsel %vm1408, %v2113, %v2149
      %v2151 = vsel %vm1410, %v2117, %v2150
      %v2152 = vsel %vm1412, %v2121, %v2151
      %v2153 = vsel %vm1414, %v2125, %v2152
      %v2158 = vsel %vm1441, %v2132, 0.0
      %2159 = vadd.xlane.f32.xlu0 %v2158
      %v2160 = vpop.xlane.xlu0 %2159
      %v2161 = vsel %vm1441, %v2139, 0.0
      %2162 = vadd.xlane.f32.xlu0 %v2161
      %v2163 = vpop.xlane.xlu0 %2162
      %v2164 = vsel %vm1441, %v2146, 0.0
      %2165 = vadd.xlane.f32.xlu0 %v2164
      %v2166 = vpop.xlane.xlu0 %2165
      %v2167 = vsel %vm1441, %v2153, 0.0
      %2168 = vadd.xlane.f32.xlu0 %v2167
      %v2169 = vpop.xlane.xlu0 %2168
      %v2175 = vunpack.c.l.s4 839922192
      %v2176 = vunpack.c.0.s8 %v2175
      %v2177 = vlaneseq
      %v2178 = vshrl.u32 %v2177, 7
      %v2179 = vsub.s32 %v2176, %v2178
      %v2180 = vrot.slane %v2160, %v2179
      %v2182 = vunpack.c.l.s4 1985246804
      %v2183 = vunpack.c.0.s8 %v2182
      %v2184 = vlaneseq
      %v2185 = vshrl.u32 %v2184, 7
      %v2186 = vsub.s32 %v2183, %v2185
      %v2187 = vrot.slane %v2160, %v2186
      %v2189 = vunpack.c.l.s4 839922192
      %v2190 = vunpack.c.0.s8 %v2189
      %v2191 = vlaneseq
      %v2192 = vshrl.u32 %v2191, 7
      %v2193 = vsub.s32 %v2190, %v2192
      %v2194 = vrot.slane %v2163, %v2193
      %v2196 = vunpack.c.l.s4 1985246804
      %v2197 = vunpack.c.0.s8 %v2196
      %v2198 = vlaneseq
      %v2199 = vshrl.u32 %v2198, 7
      %v2200 = vsub.s32 %v2197, %v2199
      %v2201 = vrot.slane %v2163, %v2200
      %v2203 = vunpack.c.l.s4 839922192
      %v2204 = vunpack.c.0.s8 %v2203
      %v2205 = vlaneseq
      %v2206 = vshrl.u32 %v2205, 7
      %v2207 = vsub.s32 %v2204, %v2206
      %v2208 = vrot.slane %v2166, %v2207
      %v2210 = vunpack.c.l.s4 1985246804
      %v2211 = vunpack.c.0.s8 %v2210
      %v2212 = vlaneseq
      %v2213 = vshrl.u32 %v2212, 7
      %v2214 = vsub.s32 %v2211, %v2213
      %v2215 = vrot.slane %v2166, %v2214
      %v2217 = vunpack.c.l.s4 839922192
      %v2218 = vunpack.c.0.s8 %v2217
      %v2219 = vlaneseq
      %v2220 = vshrl.u32 %v2219, 7
      %v2221 = vsub.s32 %v2218, %v2220
      %v2222 = vrot.slane %v2169, %v2221
      %v2224 = vunpack.c.l.s4 1985246804
      %v2225 = vunpack.c.0.s8 %v2224
      %v2226 = vlaneseq
      %v2227 = vshrl.u32 %v2226, 7
      %v2228 = vsub.s32 %v2225, %v2227
      %v2229 = vrot.slane %v2169, %v2228
      %v2230 = vcombine.low %v2180, %v2187
      %v2231 = vcombine.low %v2194, %v2201
      %v2232 = vcombine.low %v2208, %v2215
      %v2233 = vcombine.low %v2222, %v2229
      %v2234 = vlaneseq
      %v2235 = vshrl.u32 %v2234, 7
      %v2236 = vsub.s32 0, %v2235
      %v2237 = vrot.slane %v2230, %v2236
      %2239 = vbcast.lane.b32.xlu0 %v2237, 256
      %v2240 = vpop.permute.xlu0 %2239
      %v2241 = vlaneseq
      %v2242 = vshrl.u32 %v2241, 7
      %v2243 = vsub.s32 1, %v2242
      %v2244 = vrot.slane %v2230, %v2243
      %2246 = vbcast.lane.b32.xlu0 %v2244, 256
      %v2247 = vpop.permute.xlu0 %2246
      %v2248 = vlaneseq
      %v2249 = vshrl.u32 %v2248, 7
      %v2250 = vsub.s32 2, %v2249
      %v2251 = vrot.slane %v2230, %v2250
      %2253 = vbcast.lane.b32.xlu0 %v2251, 256
      %v2254 = vpop.permute.xlu0 %2253
      %v2255 = vlaneseq
      %v2256 = vshrl.u32 %v2255, 7
      %v2257 = vsub.s32 3, %v2256
      %v2258 = vrot.slane %v2230, %v2257
      %2260 = vbcast.lane.b32.xlu0 %v2258, 256
      %v2261 = vpop.permute.xlu0 %2260
      %v2262 = vlaneseq
      %v2263 = vshrl.u32 %v2262, 7
      %v2264 = vsub.s32 4, %v2263
      %v2265 = vrot.slane %v2230, %v2264
      %2267 = vbcast.lane.b32.xlu0 %v2265, 256
      %v2268 = vpop.permute.xlu0 %2267
      %v2269 = vlaneseq
      %v2270 = vshrl.u32 %v2269, 7
      %v2271 = vsub.s32 5, %v2270
      %v2272 = vrot.slane %v2230, %v2271
      %2274 = vbcast.lane.b32.xlu0 %v2272, 256
      %v2275 = vpop.permute.xlu0 %2274
      %v2276 = vlaneseq
      %v2277 = vshrl.u32 %v2276, 7
      %v2278 = vsub.s32 6, %v2277
      %v2279 = vrot.slane %v2230, %v2278
      %2281 = vbcast.lane.b32.xlu0 %v2279, 256
      %v2282 = vpop.permute.xlu0 %2281
      %v2283 = vlaneseq
      %v2284 = vshrl.u32 %v2283, 7
      %v2285 = vsub.s32 7, %v2284
      %v2286 = vrot.slane %v2230, %v2285
      %2288 = vbcast.lane.b32.xlu0 %v2286, 256
      %v2289 = vpop.permute.xlu0 %2288
      %v2290 = vlaneseq
      %v2291 = vshrl.u32 %v2290, 7
      %v2292 = vsub.s32 0, %v2291
      %v2293 = vrot.slane %v2231, %v2292
      %2295 = vbcast.lane.b32.xlu0 %v2293, 256
      %v2296 = vpop.permute.xlu0 %2295
      %v2297 = vlaneseq
      %v2298 = vshrl.u32 %v2297, 7
      %v2299 = vsub.s32 1, %v2298
      %v2300 = vrot.slane %v2231, %v2299
      %2302 = vbcast.lane.b32.xlu0 %v2300, 256
      %v2303 = vpop.permute.xlu0 %2302
      %v2304 = vlaneseq
      %v2305 = vshrl.u32 %v2304, 7
      %v2306 = vsub.s32 2, %v2305
      %v2307 = vrot.slane %v2231, %v2306
      %2309 = vbcast.lane.b32.xlu0 %v2307, 256
      %v2310 = vpop.permute.xlu0 %2309
      %v2311 = vlaneseq
      %v2312 = vshrl.u32 %v2311, 7
      %v2313 = vsub.s32 3, %v2312
      %v2314 = vrot.slane %v2231, %v2313
      %2316 = vbcast.lane.b32.xlu0 %v2314, 256
      %v2317 = vpop.permute.xlu0 %2316
      %v2318 = vlaneseq
      %v2319 = vshrl.u32 %v2318, 7
      %v2320 = vsub.s32 4, %v2319
      %v2321 = vrot.slane %v2231, %v2320
      %2323 = vbcast.lane.b32.xlu0 %v2321, 256
      %v2324 = vpop.permute.xlu0 %2323
      %v2325 = vlaneseq
      %v2326 = vshrl.u32 %v2325, 7
      %v2327 = vsub.s32 5, %v2326
      %v2328 = vrot.slane %v2231, %v2327
      %2330 = vbcast.lane.b32.xlu0 %v2328, 256
      %v2331 = vpop.permute.xlu0 %2330
      %v2332 = vlaneseq
      %v2333 = vshrl.u32 %v2332, 7
      %v2334 = vsub.s32 6, %v2333
      %v2335 = vrot.slane %v2231, %v2334
      %2337 = vbcast.lane.b32.xlu0 %v2335, 256
      %v2338 = vpop.permute.xlu0 %2337
      %v2339 = vlaneseq
      %v2340 = vshrl.u32 %v2339, 7
      %v2341 = vsub.s32 7, %v2340
      %v2342 = vrot.slane %v2231, %v2341
      %2344 = vbcast.lane.b32.xlu0 %v2342, 256
      %v2345 = vpop.permute.xlu0 %2344
      %v2346 = vlaneseq
      %v2347 = vshrl.u32 %v2346, 7
      %v2348 = vsub.s32 0, %v2347
      %v2349 = vrot.slane %v2232, %v2348
      %2351 = vbcast.lane.b32.xlu0 %v2349, 256
      %v2352 = vpop.permute.xlu0 %2351
      %v2353 = vlaneseq
      %v2354 = vshrl.u32 %v2353, 7
      %v2355 = vsub.s32 1, %v2354
      %v2356 = vrot.slane %v2232, %v2355
      %2358 = vbcast.lane.b32.xlu0 %v2356, 256
      %v2359 = vpop.permute.xlu0 %2358
      %v2360 = vlaneseq
      %v2361 = vshrl.u32 %v2360, 7
      %v2362 = vsub.s32 2, %v2361
      %v2363 = vrot.slane %v2232, %v2362
      %2365 = vbcast.lane.b32.xlu0 %v2363, 256
      %v2366 = vpop.permute.xlu0 %2365
      %v2367 = vlaneseq
      %v2368 = vshrl.u32 %v2367, 7
      %v2369 = vsub.s32 3, %v2368
      %v2370 = vrot.slane %v2232, %v2369
      %2372 = vbcast.lane.b32.xlu0 %v2370, 256
      %v2373 = vpop.permute.xlu0 %2372
      %v2374 = vlaneseq
      %v2375 = vshrl.u32 %v2374, 7
      %v2376 = vsub.s32 4, %v2375
      %v2377 = vrot.slane %v2232, %v2376
      %2379 = vbcast.lane.b32.xlu0 %v2377, 256
      %v2380 = vpop.permute.xlu0 %2379
      %v2381 = vlaneseq
      %v2382 = vshrl.u32 %v2381, 7
      %v2383 = vsub.s32 5, %v2382
      %v2384 = vrot.slane %v2232, %v2383
      %2386 = vbcast.lane.b32.xlu0 %v2384, 256
      %v2387 = vpop.permute.xlu0 %2386
      %v2388 = vlaneseq
      %v2389 = vshrl.u32 %v2388, 7
      %v2390 = vsub.s32 6, %v2389
      %v2391 = vrot.slane %v2232, %v2390
      %2393 = vbcast.lane.b32.xlu0 %v2391, 256
      %v2394 = vpop.permute.xlu0 %2393
      %v2395 = vlaneseq
      %v2396 = vshrl.u32 %v2395, 7
      %v2397 = vsub.s32 7, %v2396
      %v2398 = vrot.slane %v2232, %v2397
      %2400 = vbcast.lane.b32.xlu0 %v2398, 256
      %v2401 = vpop.permute.xlu0 %2400
      %v2402 = vlaneseq
      %v2403 = vshrl.u32 %v2402, 7
      %v2404 = vsub.s32 0, %v2403
      %v2405 = vrot.slane %v2233, %v2404
      %2407 = vbcast.lane.b32.xlu0 %v2405, 256
      %v2408 = vpop.permute.xlu0 %2407
      %v2409 = vlaneseq
      %v2410 = vshrl.u32 %v2409, 7
      %v2411 = vsub.s32 1, %v2410
      %v2412 = vrot.slane %v2233, %v2411
      %2414 = vbcast.lane.b32.xlu0 %v2412, 256
      %v2415 = vpop.permute.xlu0 %2414
      %v2416 = vlaneseq
      %v2417 = vshrl.u32 %v2416, 7
      %v2418 = vsub.s32 2, %v2417
      %v2419 = vrot.slane %v2233, %v2418
      %2421 = vbcast.lane.b32.xlu0 %v2419, 256
      %v2422 = vpop.permute.xlu0 %2421
      %v2423 = vlaneseq
      %v2424 = vshrl.u32 %v2423, 7
      %v2425 = vsub.s32 3, %v2424
      %v2426 = vrot.slane %v2233, %v2425
      %2428 = vbcast.lane.b32.xlu0 %v2426, 256
      %v2429 = vpop.permute.xlu0 %2428
      %v2430 = vlaneseq
      %v2431 = vshrl.u32 %v2430, 7
      %v2432 = vsub.s32 4, %v2431
      %v2433 = vrot.slane %v2233, %v2432
      %2435 = vbcast.lane.b32.xlu0 %v2433, 256
      %v2436 = vpop.permute.xlu0 %2435
      %v2437 = vlaneseq
      %v2438 = vshrl.u32 %v2437, 7
      %v2439 = vsub.s32 5, %v2438
      %v2440 = vrot.slane %v2233, %v2439
      %2442 = vbcast.lane.b32.xlu0 %v2440, 256
      %v2443 = vpop.permute.xlu0 %2442
      %v2444 = vlaneseq
      %v2445 = vshrl.u32 %v2444, 7
      %v2446 = vsub.s32 6, %v2445
      %v2447 = vrot.slane %v2233, %v2446
      %2449 = vbcast.lane.b32.xlu0 %v2447, 256
      %v2450 = vpop.permute.xlu0 %2449
      %v2451 = vlaneseq
      %v2452 = vshrl.u32 %v2451, 7
      %v2453 = vsub.s32 7, %v2452
      %v2454 = vrot.slane %v2233, %v2453
      %2456 = vbcast.lane.b32.xlu0 %v2454, 256
      %v2457 = vpop.permute.xlu0 %2456
      %v2490 = vrcp.pop %v2240
      %v2491 = vmul.f32 %v1807, %v2490
      %v2492 = vrcp.pop %v2247
      %v2493 = vmul.f32 %v1809, %v2492
      %v2494 = vrcp.pop %v2254
      %v2495 = vmul.f32 %v1811, %v2494
      %v2496 = vrcp.pop %v2261
      %v2497 = vmul.f32 %v1813, %v2496
      %v2498 = vrcp.pop %v2268
      %v2499 = vmul.f32 %v1815, %v2498
      %v2500 = vrcp.pop %v2275
      %v2501 = vmul.f32 %v1817, %v2500
      %v2502 = vrcp.pop %v2282
      %v2503 = vmul.f32 %v1819, %v2502
      %v2504 = vrcp.pop %v2289
      %v2505 = vmul.f32 %v1821, %v2504
      %v2506 = vrcp.pop %v2296
      %v2507 = vmul.f32 %v1823, %v2506
      %v2508 = vrcp.pop %v2303
      %v2509 = vmul.f32 %v1825, %v2508
      %v2510 = vrcp.pop %v2310
      %v2511 = vmul.f32 %v1827, %v2510
      %v2512 = vrcp.pop %v2317
      %v2513 = vmul.f32 %v1829, %v2512
      %v2514 = vrcp.pop %v2324
      %v2515 = vmul.f32 %v1831, %v2514
      %v2516 = vrcp.pop %v2331
      %v2517 = vmul.f32 %v1833, %v2516
      %v2518 = vrcp.pop %v2338
      %v2519 = vmul.f32 %v1835, %v2518
      %v2520 = vrcp.pop %v2345
      %v2521 = vmul.f32 %v1837, %v2520
      %v2522 = vrcp.pop %v2352
      %v2523 = vmul.f32 %v1839, %v2522
      %v2524 = vrcp.pop %v2359
      %v2525 = vmul.f32 %v1841, %v2524
      %v2526 = vrcp.pop %v2366
      %v2527 = vmul.f32 %v1843, %v2526
      %v2528 = vrcp.pop %v2373
      %v2529 = vmul.f32 %v1845, %v2528
      %v2530 = vrcp.pop %v2380
      %v2531 = vmul.f32 %v1847, %v2530
      %v2532 = vrcp.pop %v2387
      %v2533 = vmul.f32 %v1849, %v2532
      %v2534 = vrcp.pop %v2394
      %v2535 = vmul.f32 %v1851, %v2534
      %v2536 = vrcp.pop %v2401
      %v2537 = vmul.f32 %v1853, %v2536
      %v2538 = vrcp.pop %v2408
      %v2539 = vmul.f32 %v1855, %v2538
      %v2540 = vrcp.pop %v2415
      %v2541 = vmul.f32 %v1857, %v2540
      %v2542 = vrcp.pop %v2422
      %v2543 = vmul.f32 %v1859, %v2542
      %v2544 = vrcp.pop %v2429
      %v2545 = vmul.f32 %v1861, %v2544
      %v2546 = vrcp.pop %v2436
      %v2547 = vmul.f32 %v1863, %v2546
      %v2548 = vrcp.pop %v2443
      %v2549 = vmul.f32 %v1865, %v2548
      %v2550 = vrcp.pop %v2450
      %v2551 = vmul.f32 %v1867, %v2550
      %v2552 = vrcp.pop %v2457
      %v2553 = vmul.f32 %v1869, %v2552
      %v2554 = vmul.f32 %v1774, 10.0
      %v2555 = vmul.f32 %v1775, 10.0
      %v2556 = vmul.f32 %v1776, 10.0
      %v2557 = vmul.f32 %v1777, 10.0
      %v2558 = vmul.f32 %v1778, 10.0
      %v2559 = vmul.f32 %v1779, 10.0
      %v2560 = vmul.f32 %v1780, 10.0
      %v2561 = vmul.f32 %v1781, 10.0
      %v2562 = vmul.f32 %v1782, 10.0
      %v2563 = vmul.f32 %v1783, 10.0
      %v2564 = vmul.f32 %v1784, 10.0
      %v2565 = vmul.f32 %v1785, 10.0
      %v2566 = vmul.f32 %v1786, 10.0
      %v2567 = vmul.f32 %v1787, 10.0
      %v2568 = vmul.f32 %v1788, 10.0
      %v2569 = vmul.f32 %v1789, 10.0
      %v2570 = vmul.f32 %v1790, 10.0
      %v2571 = vmul.f32 %v1791, 10.0
      %v2572 = vmul.f32 %v1792, 10.0
      %v2573 = vmul.f32 %v1793, 10.0
      %v2574 = vmul.f32 %v1794, 10.0
      %v2575 = vmul.f32 %v1795, 10.0
      %v2576 = vmul.f32 %v1796, 10.0
      %v2577 = vmul.f32 %v1797, 10.0
      %v2578 = vmul.f32 %v1798, 10.0
      %v2579 = vmul.f32 %v1799, 10.0
      %v2580 = vmul.f32 %v1800, 10.0
      %v2581 = vmul.f32 %v1801, 10.0
      %v2582 = vmul.f32 %v1802, 10.0
      %v2583 = vmul.f32 %v1803, 10.0
      %v2584 = vmul.f32 %v1804, 10.0
      %v2585 = vmul.f32 %v1805, 10.0
      %v2586 = vmul.f32 %v2554, 1.442695
      %v2587 = vpow.pop %v2586
      %v2588 = vmul.f32 %v2555, 1.442695
      %v2589 = vpow.pop %v2588
      %v2590 = vmul.f32 %v2556, 1.442695
      %v2591 = vpow.pop %v2590
      %v2592 = vmul.f32 %v2557, 1.442695
      %v2593 = vpow.pop %v2592
      %v2594 = vmul.f32 %v2558, 1.442695
      %v2595 = vpow.pop %v2594
      %v2596 = vmul.f32 %v2559, 1.442695
      %v2597 = vpow.pop %v2596
      %v2598 = vmul.f32 %v2560, 1.442695
      %v2599 = vpow.pop %v2598
      %v2600 = vmul.f32 %v2561, 1.442695
      %v2601 = vpow.pop %v2600
      %v2602 = vmul.f32 %v2562, 1.442695
      %v2603 = vpow.pop %v2602
      %v2604 = vmul.f32 %v2563, 1.442695
      %v2605 = vpow.pop %v2604
      %v2606 = vmul.f32 %v2564, 1.442695
      %v2607 = vpow.pop %v2606
      %v2608 = vmul.f32 %v2565, 1.442695
      %v2609 = vpow.pop %v2608
      %v2610 = vmul.f32 %v2566, 1.442695
      %v2611 = vpow.pop %v2610
      %v2612 = vmul.f32 %v2567, 1.442695
      %v2613 = vpow.pop %v2612
      %v2614 = vmul.f32 %v2568, 1.442695
      %v2615 = vpow.pop %v2614
      %v2616 = vmul.f32 %v2569, 1.442695
      %v2617 = vpow.pop %v2616
      %v2618 = vmul.f32 %v2570, 1.442695
      %v2619 = vpow.pop %v2618
      %v2620 = vmul.f32 %v2571, 1.442695
      %v2621 = vpow.pop %v2620
      %v2622 = vmul.f32 %v2572, 1.442695
      %v2623 = vpow.pop %v2622
      %v2624 = vmul.f32 %v2573, 1.442695
      %v2625 = vpow.pop %v2624
      %v2626 = vmul.f32 %v2574, 1.442695
      %v2627 = vpow.pop %v2626
      %v2628 = vmul.f32 %v2575, 1.442695
      %v2629 = vpow.pop %v2628
      %v2630 = vmul.f32 %v2576, 1.442695
      %v2631 = vpow.pop %v2630
      %v2632 = vmul.f32 %v2577, 1.442695
      %v2633 = vpow.pop %v2632
      %v2634 = vmul.f32 %v2578, 1.442695
      %v2635 = vpow.pop %v2634
      %v2636 = vmul.f32 %v2579, 1.442695
      %v2637 = vpow.pop %v2636
      %v2638 = vmul.f32 %v2580, 1.442695
      %v2639 = vpow.pop %v2638
      %v2640 = vmul.f32 %v2581, 1.442695
      %v2641 = vpow.pop %v2640
      %v2642 = vmul.f32 %v2582, 1.442695
      %v2643 = vpow.pop %v2642
      %v2644 = vmul.f32 %v2583, 1.442695
      %v2645 = vpow.pop %v2644
      %v2646 = vmul.f32 %v2584, 1.442695
      %v2647 = vpow.pop %v2646
      %v2648 = vmul.f32 %v2585, 1.442695
      %v2649 = vpow.pop %v2648
      %2682 = vset.pattern.permute.xlu0 0
      %2683 = vperm.xlu0 %2682, %v2587
      %v2684 = vpop.permute.xlu0 %2683
      %2685 = vset.pattern.permute.xlu0 0
      %2686 = vperm.xlu0 %2685, %v2589
      %v2687 = vpop.permute.xlu0 %2686
      %2688 = vset.pattern.permute.xlu0 0
      %2689 = vperm.xlu0 %2688, %v2591
      %v2690 = vpop.permute.xlu0 %2689
      %2691 = vset.pattern.permute.xlu0 0
      %2692 = vperm.xlu0 %2691, %v2593
      %v2693 = vpop.permute.xlu0 %2692
      %2694 = vset.pattern.permute.xlu0 0
      %2695 = vperm.xlu0 %2694, %v2595
      %v2696 = vpop.permute.xlu0 %2695
      %2697 = vset.pattern.permute.xlu0 0
      %2698 = vperm.xlu0 %2697, %v2597
      %v2699 = vpop.permute.xlu0 %2698
      %2700 = vset.pattern.permute.xlu0 0
      %2701 = vperm.xlu0 %2700, %v2599
      %v2702 = vpop.permute.xlu0 %2701
      %2703 = vset.pattern.permute.xlu0 0
      %2704 = vperm.xlu0 %2703, %v2601
      %v2705 = vpop.permute.xlu0 %2704
      %2706 = vset.pattern.permute.xlu0 0
      %2707 = vperm.xlu0 %2706, %v2603
      %v2708 = vpop.permute.xlu0 %2707
      %2709 = vset.pattern.permute.xlu0 0
      %2710 = vperm.xlu0 %2709, %v2605
      %v2711 = vpop.permute.xlu0 %2710
      %2712 = vset.pattern.permute.xlu0 0
      %2713 = vperm.xlu0 %2712, %v2607
      %v2714 = vpop.permute.xlu0 %2713
      %2715 = vset.pattern.permute.xlu0 0
      %2716 = vperm.xlu0 %2715, %v2609
      %v2717 = vpop.permute.xlu0 %2716
      %2718 = vset.pattern.permute.xlu0 0
      %2719 = vperm.xlu0 %2718, %v2611
      %v2720 = vpop.permute.xlu0 %2719
      %2721 = vset.pattern.permute.xlu0 0
      %2722 = vperm.xlu0 %2721, %v2613
      %v2723 = vpop.permute.xlu0 %2722
      %2724 = vset.pattern.permute.xlu0 0
      %2725 = vperm.xlu0 %2724, %v2615
      %v2726 = vpop.permute.xlu0 %2725
      %2727 = vset.pattern.permute.xlu0 0
      %2728 = vperm.xlu0 %2727, %v2617
      %v2729 = vpop.permute.xlu0 %2728
      %2730 = vset.pattern.permute.xlu0 0
      %2731 = vperm.xlu0 %2730, %v2619
      %v2732 = vpop.permute.xlu0 %2731
      %2733 = vset.pattern.permute.xlu0 0
      %2734 = vperm.xlu0 %2733, %v2621
      %v2735 = vpop.permute.xlu0 %2734
      %2736 = vset.pattern.permute.xlu0 0
      %2737 = vperm.xlu0 %2736, %v2623
      %v2738 = vpop.permute.xlu0 %2737
      %2739 = vset.pattern.permute.xlu0 0
      %2740 = vperm.xlu0 %2739, %v2625
      %v2741 = vpop.permute.xlu0 %2740
      %2742 = vset.pattern.permute.xlu0 0
      %2743 = vperm.xlu0 %2742, %v2627
      %v2744 = vpop.permute.xlu0 %2743
      %2745 = vset.pattern.permute.xlu0 0
      %2746 = vperm.xlu0 %2745, %v2629
      %v2747 = vpop.permute.xlu0 %2746
      %2748 = vset.pattern.permute.xlu0 0
      %2749 = vperm.xlu0 %2748, %v2631
      %v2750 = vpop.permute.xlu0 %2749
      %2751 = vset.pattern.permute.xlu0 0
      %2752 = vperm.xlu0 %2751, %v2633
      %v2753 = vpop.permute.xlu0 %2752
      %2754 = vset.pattern.permute.xlu0 0
      %2755 = vperm.xlu0 %2754, %v2635
      %v2756 = vpop.permute.xlu0 %2755
      %2757 = vset.pattern.permute.xlu0 0
      %2758 = vperm.xlu0 %2757, %v2637
      %v2759 = vpop.permute.xlu0 %2758
      %2760 = vset.pattern.permute.xlu0 0
      %2761 = vperm.xlu0 %2760, %v2639
      %v2762 = vpop.permute.xlu0 %2761
      %2763 = vset.pattern.permute.xlu0 0
      %2764 = vperm.xlu0 %2763, %v2641
      %v2765 = vpop.permute.xlu0 %2764
      %2766 = vset.pattern.permute.xlu0 0
      %2767 = vperm.xlu0 %2766, %v2643
      %v2768 = vpop.permute.xlu0 %2767
      %2769 = vset.pattern.permute.xlu0 0
      %2770 = vperm.xlu0 %2769, %v2645
      %v2771 = vpop.permute.xlu0 %2770
      %2772 = vset.pattern.permute.xlu0 0
      %2773 = vperm.xlu0 %2772, %v2647
      %v2774 = vpop.permute.xlu0 %2773
      %2775 = vset.pattern.permute.xlu0 0
      %2776 = vperm.xlu0 %2775, %v2649
      %v2777 = vpop.permute.xlu0 %2776
      %v2778 = vlaneseq
      %v2779 = vshrl.u32 %v2778, 7
      %v2780 = vsub.s32 %v110, %v2779
      %v2781 = vrot.slane %v2684, %v2780
      %v2782 = vlaneseq
      %v2783 = vshrl.u32 %v2782, 7
      %v2784 = vsub.s32 %v110, %v2783
      %v2785 = vrot.slane %v2687, %v2784
      %v2786 = vlaneseq
      %v2787 = vshrl.u32 %v2786, 7
      %v2788 = vsub.s32 %v110, %v2787
      %v2789 = vrot.slane %v2690, %v2788
      %v2790 = vlaneseq
      %v2791 = vshrl.u32 %v2790, 7
      %v2792 = vsub.s32 %v110, %v2791
      %v2793 = vrot.slane %v2693, %v2792
      %v2794 = vlaneseq
      %v2795 = vshrl.u32 %v2794, 7
      %v2796 = vsub.s32 %v110, %v2795
      %v2797 = vrot.slane %v2696, %v2796
      %v2798 = vlaneseq
      %v2799 = vshrl.u32 %v2798, 7
      %v2800 = vsub.s32 %v110, %v2799
      %v2801 = vrot.slane %v2699, %v2800
      %v2802 = vlaneseq
      %v2803 = vshrl.u32 %v2802, 7
      %v2804 = vsub.s32 %v110, %v2803
      %v2805 = vrot.slane %v2702, %v2804
      %v2806 = vlaneseq
      %v2807 = vshrl.u32 %v2806, 7
      %v2808 = vsub.s32 %v110, %v2807
      %v2809 = vrot.slane %v2705, %v2808
      %v2810 = vlaneseq
      %v2811 = vshrl.u32 %v2810, 7
      %v2812 = vsub.s32 %v110, %v2811
      %v2813 = vrot.slane %v2708, %v2812
      %v2814 = vlaneseq
      %v2815 = vshrl.u32 %v2814, 7
      %v2816 = vsub.s32 %v110, %v2815
      %v2817 = vrot.slane %v2711, %v2816
      %v2818 = vlaneseq
      %v2819 = vshrl.u32 %v2818, 7
      %v2820 = vsub.s32 %v110, %v2819
      %v2821 = vrot.slane %v2714, %v2820
      %v2822 = vlaneseq
      %v2823 = vshrl.u32 %v2822, 7
      %v2824 = vsub.s32 %v110, %v2823
      %v2825 = vrot.slane %v2717, %v2824
      %v2826 = vlaneseq
      %v2827 = vshrl.u32 %v2826, 7
      %v2828 = vsub.s32 %v110, %v2827
      %v2829 = vrot.slane %v2720, %v2828
      %v2830 = vlaneseq
      %v2831 = vshrl.u32 %v2830, 7
      %v2832 = vsub.s32 %v110, %v2831
      %v2833 = vrot.slane %v2723, %v2832
      %v2834 = vlaneseq
      %v2835 = vshrl.u32 %v2834, 7
      %v2836 = vsub.s32 %v110, %v2835
      %v2837 = vrot.slane %v2726, %v2836
      %v2838 = vlaneseq
      %v2839 = vshrl.u32 %v2838, 7
      %v2840 = vsub.s32 %v110, %v2839
      %v2841 = vrot.slane %v2729, %v2840
      %v2842 = vlaneseq
      %v2843 = vshrl.u32 %v2842, 7
      %v2844 = vsub.s32 %v110, %v2843
      %v2845 = vrot.slane %v2732, %v2844
      %v2846 = vlaneseq
      %v2847 = vshrl.u32 %v2846, 7
      %v2848 = vsub.s32 %v110, %v2847
      %v2849 = vrot.slane %v2735, %v2848
      %v2850 = vlaneseq
      %v2851 = vshrl.u32 %v2850, 7
      %v2852 = vsub.s32 %v110, %v2851
      %v2853 = vrot.slane %v2738, %v2852
      %v2854 = vlaneseq
      %v2855 = vshrl.u32 %v2854, 7
      %v2856 = vsub.s32 %v110, %v2855
      %v2857 = vrot.slane %v2741, %v2856
      %v2858 = vlaneseq
      %v2859 = vshrl.u32 %v2858, 7
      %v2860 = vsub.s32 %v110, %v2859
      %v2861 = vrot.slane %v2744, %v2860
      %v2862 = vlaneseq
      %v2863 = vshrl.u32 %v2862, 7
      %v2864 = vsub.s32 %v110, %v2863
      %v2865 = vrot.slane %v2747, %v2864
      %v2866 = vlaneseq
      %v2867 = vshrl.u32 %v2866, 7
      %v2868 = vsub.s32 %v110, %v2867
      %v2869 = vrot.slane %v2750, %v2868
      %v2870 = vlaneseq
      %v2871 = vshrl.u32 %v2870, 7
      %v2872 = vsub.s32 %v110, %v2871
      %v2873 = vrot.slane %v2753, %v2872
      %v2874 = vlaneseq
      %v2875 = vshrl.u32 %v2874, 7
      %v2876 = vsub.s32 %v110, %v2875
      %v2877 = vrot.slane %v2756, %v2876
      %v2878 = vlaneseq
      %v2879 = vshrl.u32 %v2878, 7
      %v2880 = vsub.s32 %v110, %v2879
      %v2881 = vrot.slane %v2759, %v2880
      %v2882 = vlaneseq
      %v2883 = vshrl.u32 %v2882, 7
      %v2884 = vsub.s32 %v110, %v2883
      %v2885 = vrot.slane %v2762, %v2884
      %v2886 = vlaneseq
      %v2887 = vshrl.u32 %v2886, 7
      %v2888 = vsub.s32 %v110, %v2887
      %v2889 = vrot.slane %v2765, %v2888
      %v2890 = vlaneseq
      %v2891 = vshrl.u32 %v2890, 7
      %v2892 = vsub.s32 %v110, %v2891
      %v2893 = vrot.slane %v2768, %v2892
      %v2894 = vlaneseq
      %v2895 = vshrl.u32 %v2894, 7
      %v2896 = vsub.s32 %v110, %v2895
      %v2897 = vrot.slane %v2771, %v2896
      %v2898 = vlaneseq
      %v2899 = vshrl.u32 %v2898, 7
      %v2900 = vsub.s32 %v110, %v2899
      %v2901 = vrot.slane %v2774, %v2900
      %v2902 = vlaneseq
      %v2903 = vshrl.u32 %v2902, 7
      %v2904 = vsub.s32 %v110, %v2903
      %v2905 = vrot.slane %v2777, %v2904
      %v2906 = vsel %vm1402, %v2785, %v2781
      %v2907 = vsel %vm1404, %v2789, %v2906
      %v2908 = vsel %vm1406, %v2793, %v2907
      %v2909 = vsel %vm1408, %v2797, %v2908
      %v2910 = vsel %vm1410, %v2801, %v2909
      %v2911 = vsel %vm1412, %v2805, %v2910
      %v2912 = vsel %vm1414, %v2809, %v2911
      %v2913 = vsel %vm1402, %v2817, %v2813
      %v2914 = vsel %vm1404, %v2821, %v2913
      %v2915 = vsel %vm1406, %v2825, %v2914
      %v2916 = vsel %vm1408, %v2829, %v2915
      %v2917 = vsel %vm1410, %v2833, %v2916
      %v2918 = vsel %vm1412, %v2837, %v2917
      %v2919 = vsel %vm1414, %v2841, %v2918
      %v2920 = vsel %vm1402, %v2849, %v2845
      %v2921 = vsel %vm1404, %v2853, %v2920
      %v2922 = vsel %vm1406, %v2857, %v2921
      %v2923 = vsel %vm1408, %v2861, %v2922
      %v2924 = vsel %vm1410, %v2865, %v2923
      %v2925 = vsel %vm1412, %v2869, %v2924
      %v2926 = vsel %vm1414, %v2873, %v2925
      %v2927 = vsel %vm1402, %v2881, %v2877
      %v2928 = vsel %vm1404, %v2885, %v2927
      %v2929 = vsel %vm1406, %v2889, %v2928
      %v2930 = vsel %vm1408, %v2893, %v2929
      %v2931 = vsel %vm1410, %v2897, %v2930
      %v2932 = vsel %vm1412, %v2901, %v2931
      %v2933 = vsel %vm1414, %v2905, %v2932
      %v2938 = vsel %vm1441, %v2912, 0.0
      %2939 = vadd.xlane.f32.xlu0 %v2938
      %v2940 = vpop.xlane.xlu0 %2939
      %v2941 = vsel %vm1441, %v2919, 0.0
      %2942 = vadd.xlane.f32.xlu0 %v2941
      %v2943 = vpop.xlane.xlu0 %2942
      %v2944 = vsel %vm1441, %v2926, 0.0
      %2945 = vadd.xlane.f32.xlu0 %v2944
      %v2946 = vpop.xlane.xlu0 %2945
      %v2947 = vsel %vm1441, %v2933, 0.0
      %2948 = vadd.xlane.f32.xlu0 %v2947
      %v2949 = vpop.xlane.xlu0 %2948
      %v2955 = vunpack.c.l.s4 839922192
      %v2956 = vunpack.c.0.s8 %v2955
      %v2957 = vlaneseq
      %v2958 = vshrl.u32 %v2957, 7
      %v2959 = vsub.s32 %v2956, %v2958
      %v2960 = vrot.slane %v2940, %v2959
      %v2962 = vunpack.c.l.s4 1985246804
      %v2963 = vunpack.c.0.s8 %v2962
      %v2964 = vlaneseq
      %v2965 = vshrl.u32 %v2964, 7
      %v2966 = vsub.s32 %v2963, %v2965
      %v2967 = vrot.slane %v2940, %v2966
      %v2969 = vunpack.c.l.s4 839922192
      %v2970 = vunpack.c.0.s8 %v2969
      %v2971 = vlaneseq
      %v2972 = vshrl.u32 %v2971, 7
      %v2973 = vsub.s32 %v2970, %v2972
      %v2974 = vrot.slane %v2943, %v2973
      %v2976 = vunpack.c.l.s4 1985246804
      %v2977 = vunpack.c.0.s8 %v2976
      %v2978 = vlaneseq
      %v2979 = vshrl.u32 %v2978, 7
      %v2980 = vsub.s32 %v2977, %v2979
      %v2981 = vrot.slane %v2943, %v2980
      %v2983 = vunpack.c.l.s4 839922192
      %v2984 = vunpack.c.0.s8 %v2983
      %v2985 = vlaneseq
      %v2986 = vshrl.u32 %v2985, 7
      %v2987 = vsub.s32 %v2984, %v2986
      %v2988 = vrot.slane %v2946, %v2987
      %v2990 = vunpack.c.l.s4 1985246804
      %v2991 = vunpack.c.0.s8 %v2990
      %v2992 = vlaneseq
      %v2993 = vshrl.u32 %v2992, 7
      %v2994 = vsub.s32 %v2991, %v2993
      %v2995 = vrot.slane %v2946, %v2994
      %v2997 = vunpack.c.l.s4 839922192
      %v2998 = vunpack.c.0.s8 %v2997
      %v2999 = vlaneseq
      %v3000 = vshrl.u32 %v2999, 7
      %v3001 = vsub.s32 %v2998, %v3000
      %v3002 = vrot.slane %v2949, %v3001
      %v3004 = vunpack.c.l.s4 1985246804
      %v3005 = vunpack.c.0.s8 %v3004
      %v3006 = vlaneseq
      %v3007 = vshrl.u32 %v3006, 7
      %v3008 = vsub.s32 %v3005, %v3007
      %v3009 = vrot.slane %v2949, %v3008
      %v3010 = vcombine.low %v2960, %v2967
      %v3011 = vcombine.low %v2974, %v2981
      %v3012 = vcombine.low %v2988, %v2995
      %v3013 = vcombine.low %v3002, %v3009
      %v3014 = vlaneseq
      %v3015 = vshrl.u32 %v3014, 7
      %v3016 = vsub.s32 0, %v3015
      %v3017 = vrot.slane %v3010, %v3016
      %3019 = vbcast.lane.b32.xlu0 %v3017, 256
      %v3020 = vpop.permute.xlu0 %3019
      %v3021 = vlaneseq
      %v3022 = vshrl.u32 %v3021, 7
      %v3023 = vsub.s32 1, %v3022
      %v3024 = vrot.slane %v3010, %v3023
      %3026 = vbcast.lane.b32.xlu0 %v3024, 256
      %v3027 = vpop.permute.xlu0 %3026
      %v3028 = vlaneseq
      %v3029 = vshrl.u32 %v3028, 7
      %v3030 = vsub.s32 2, %v3029
      %v3031 = vrot.slane %v3010, %v3030
      %3033 = vbcast.lane.b32.xlu0 %v3031, 256
      %v3034 = vpop.permute.xlu0 %3033
      %v3035 = vlaneseq
      %v3036 = vshrl.u32 %v3035, 7
      %v3037 = vsub.s32 3, %v3036
      %v3038 = vrot.slane %v3010, %v3037
      %3040 = vbcast.lane.b32.xlu0 %v3038, 256
      %v3041 = vpop.permute.xlu0 %3040
      %v3042 = vlaneseq
      %v3043 = vshrl.u32 %v3042, 7
      %v3044 = vsub.s32 4, %v3043
      %v3045 = vrot.slane %v3010, %v3044
      %3047 = vbcast.lane.b32.xlu0 %v3045, 256
      %v3048 = vpop.permute.xlu0 %3047
      %v3049 = vlaneseq
      %v3050 = vshrl.u32 %v3049, 7
      %v3051 = vsub.s32 5, %v3050
      %v3052 = vrot.slane %v3010, %v3051
      %3054 = vbcast.lane.b32.xlu0 %v3052, 256
      %v3055 = vpop.permute.xlu0 %3054
      %v3056 = vlaneseq
      %v3057 = vshrl.u32 %v3056, 7
      %v3058 = vsub.s32 6, %v3057
      %v3059 = vrot.slane %v3010, %v3058
      %3061 = vbcast.lane.b32.xlu0 %v3059, 256
      %v3062 = vpop.permute.xlu0 %3061
      %v3063 = vlaneseq
      %v3064 = vshrl.u32 %v3063, 7
      %v3065 = vsub.s32 7, %v3064
      %v3066 = vrot.slane %v3010, %v3065
      %3068 = vbcast.lane.b32.xlu0 %v3066, 256
      %v3069 = vpop.permute.xlu0 %3068
      %v3070 = vlaneseq
      %v3071 = vshrl.u32 %v3070, 7
      %v3072 = vsub.s32 0, %v3071
      %v3073 = vrot.slane %v3011, %v3072
      %3075 = vbcast.lane.b32.xlu0 %v3073, 256
      %v3076 = vpop.permute.xlu0 %3075
      %v3077 = vlaneseq
      %v3078 = vshrl.u32 %v3077, 7
      %v3079 = vsub.s32 1, %v3078
      %v3080 = vrot.slane %v3011, %v3079
      %3082 = vbcast.lane.b32.xlu0 %v3080, 256
      %v3083 = vpop.permute.xlu0 %3082
      %v3084 = vlaneseq
      %v3085 = vshrl.u32 %v3084, 7
      %v3086 = vsub.s32 2, %v3085
      %v3087 = vrot.slane %v3011, %v3086
      %3089 = vbcast.lane.b32.xlu0 %v3087, 256
      %v3090 = vpop.permute.xlu0 %3089
      %v3091 = vlaneseq
      %v3092 = vshrl.u32 %v3091, 7
      %v3093 = vsub.s32 3, %v3092
      %v3094 = vrot.slane %v3011, %v3093
      %3096 = vbcast.lane.b32.xlu0 %v3094, 256
      %v3097 = vpop.permute.xlu0 %3096
      %v3098 = vlaneseq
      %v3099 = vshrl.u32 %v3098, 7
      %v3100 = vsub.s32 4, %v3099
      %v3101 = vrot.slane %v3011, %v3100
      %3103 = vbcast.lane.b32.xlu0 %v3101, 256
      %v3104 = vpop.permute.xlu0 %3103
      %v3105 = vlaneseq
      %v3106 = vshrl.u32 %v3105, 7
      %v3107 = vsub.s32 5, %v3106
      %v3108 = vrot.slane %v3011, %v3107
      %3110 = vbcast.lane.b32.xlu0 %v3108, 256
      %v3111 = vpop.permute.xlu0 %3110
      %v3112 = vlaneseq
      %v3113 = vshrl.u32 %v3112, 7
      %v3114 = vsub.s32 6, %v3113
      %v3115 = vrot.slane %v3011, %v3114
      %3117 = vbcast.lane.b32.xlu0 %v3115, 256
      %v3118 = vpop.permute.xlu0 %3117
      %v3119 = vlaneseq
      %v3120 = vshrl.u32 %v3119, 7
      %v3121 = vsub.s32 7, %v3120
      %v3122 = vrot.slane %v3011, %v3121
      %3124 = vbcast.lane.b32.xlu0 %v3122, 256
      %v3125 = vpop.permute.xlu0 %3124
      %v3126 = vlaneseq
      %v3127 = vshrl.u32 %v3126, 7
      %v3128 = vsub.s32 0, %v3127
      %v3129 = vrot.slane %v3012, %v3128
      %3131 = vbcast.lane.b32.xlu0 %v3129, 256
      %v3132 = vpop.permute.xlu0 %3131
      %v3133 = vlaneseq
      %v3134 = vshrl.u32 %v3133, 7
      %v3135 = vsub.s32 1, %v3134
      %v3136 = vrot.slane %v3012, %v3135
      %3138 = vbcast.lane.b32.xlu0 %v3136, 256
      %v3139 = vpop.permute.xlu0 %3138
      %v3140 = vlaneseq
      %v3141 = vshrl.u32 %v3140, 7
      %v3142 = vsub.s32 2, %v3141
      %v3143 = vrot.slane %v3012, %v3142
      %3145 = vbcast.lane.b32.xlu0 %v3143, 256
      %v3146 = vpop.permute.xlu0 %3145
      %v3147 = vlaneseq
      %v3148 = vshrl.u32 %v3147, 7
      %v3149 = vsub.s32 3, %v3148
      %v3150 = vrot.slane %v3012, %v3149
      %3152 = vbcast.lane.b32.xlu0 %v3150, 256
      %v3153 = vpop.permute.xlu0 %3152
      %v3154 = vlaneseq
      %v3155 = vshrl.u32 %v3154, 7
      %v3156 = vsub.s32 4, %v3155
      %v3157 = vrot.slane %v3012, %v3156
      %3159 = vbcast.lane.b32.xlu0 %v3157, 256
      %v3160 = vpop.permute.xlu0 %3159
      %v3161 = vlaneseq
      %v3162 = vshrl.u32 %v3161, 7
      %v3163 = vsub.s32 5, %v3162
      %v3164 = vrot.slane %v3012, %v3163
      %3166 = vbcast.lane.b32.xlu0 %v3164, 256
      %v3167 = vpop.permute.xlu0 %3166
      %v3168 = vlaneseq
      %v3169 = vshrl.u32 %v3168, 7
      %v3170 = vsub.s32 6, %v3169
      %v3171 = vrot.slane %v3012, %v3170
      %3173 = vbcast.lane.b32.xlu0 %v3171, 256
      %v3174 = vpop.permute.xlu0 %3173
      %v3175 = vlaneseq
      %v3176 = vshrl.u32 %v3175, 7
      %v3177 = vsub.s32 7, %v3176
      %v3178 = vrot.slane %v3012, %v3177
      %3180 = vbcast.lane.b32.xlu0 %v3178, 256
      %v3181 = vpop.permute.xlu0 %3180
      %v3182 = vlaneseq
      %v3183 = vshrl.u32 %v3182, 7
      %v3184 = vsub.s32 0, %v3183
      %v3185 = vrot.slane %v3013, %v3184
      %3187 = vbcast.lane.b32.xlu0 %v3185, 256
      %v3188 = vpop.permute.xlu0 %3187
      %v3189 = vlaneseq
      %v3190 = vshrl.u32 %v3189, 7
      %v3191 = vsub.s32 1, %v3190
      %v3192 = vrot.slane %v3013, %v3191
      %3194 = vbcast.lane.b32.xlu0 %v3192, 256
      %v3195 = vpop.permute.xlu0 %3194
      %v3196 = vlaneseq
      %v3197 = vshrl.u32 %v3196, 7
      %v3198 = vsub.s32 2, %v3197
      %v3199 = vrot.slane %v3013, %v3198
      %3201 = vbcast.lane.b32.xlu0 %v3199, 256
      %v3202 = vpop.permute.xlu0 %3201
      %v3203 = vlaneseq
      %v3204 = vshrl.u32 %v3203, 7
      %v3205 = vsub.s32 3, %v3204
      %v3206 = vrot.slane %v3013, %v3205
      %3208 = vbcast.lane.b32.xlu0 %v3206, 256
      %v3209 = vpop.permute.xlu0 %3208
      %v3210 = vlaneseq
      %v3211 = vshrl.u32 %v3210, 7
      %v3212 = vsub.s32 4, %v3211
      %v3213 = vrot.slane %v3013, %v3212
      %3215 = vbcast.lane.b32.xlu0 %v3213, 256
      %v3216 = vpop.permute.xlu0 %3215
      %v3217 = vlaneseq
      %v3218 = vshrl.u32 %v3217, 7
      %v3219 = vsub.s32 5, %v3218
      %v3220 = vrot.slane %v3013, %v3219
      %3222 = vbcast.lane.b32.xlu0 %v3220, 256
      %v3223 = vpop.permute.xlu0 %3222
      %v3224 = vlaneseq
      %v3225 = vshrl.u32 %v3224, 7
      %v3226 = vsub.s32 6, %v3225
      %v3227 = vrot.slane %v3013, %v3226
      %3229 = vbcast.lane.b32.xlu0 %v3227, 256
      %v3230 = vpop.permute.xlu0 %3229
      %v3231 = vlaneseq
      %v3232 = vshrl.u32 %v3231, 7
      %v3233 = vsub.s32 7, %v3232
      %v3234 = vrot.slane %v3013, %v3233
      %3236 = vbcast.lane.b32.xlu0 %v3234, 256
      %v3237 = vpop.permute.xlu0 %3236
      %v3270 = vrcp.pop %v3020
      %v3271 = vmul.f32 %v2587, %v3270
      %v3272 = vrcp.pop %v3027
      %v3273 = vmul.f32 %v2589, %v3272
      %v3274 = vrcp.pop %v3034
      %v3275 = vmul.f32 %v2591, %v3274
      %v3276 = vrcp.pop %v3041
      %v3277 = vmul.f32 %v2593, %v3276
      %v3278 = vrcp.pop %v3048
      %v3279 = vmul.f32 %v2595, %v3278
      %v3280 = vrcp.pop %v3055
      %v3281 = vmul.f32 %v2597, %v3280
      %v3282 = vrcp.pop %v3062
      %v3283 = vmul.f32 %v2599, %v3282
      %v3284 = vrcp.pop %v3069
      %v3285 = vmul.f32 %v2601, %v3284
      %v3286 = vrcp.pop %v3076
      %v3287 = vmul.f32 %v2603, %v3286
      %v3288 = vrcp.pop %v3083
      %v3289 = vmul.f32 %v2605, %v3288
      %v3290 = vrcp.pop %v3090
      %v3291 = vmul.f32 %v2607, %v3290
      %v3292 = vrcp.pop %v3097
      %v3293 = vmul.f32 %v2609, %v3292
      %v3294 = vrcp.pop %v3104
      %v3295 = vmul.f32 %v2611, %v3294
      %v3296 = vrcp.pop %v3111
      %v3297 = vmul.f32 %v2613, %v3296
      %v3298 = vrcp.pop %v3118
      %v3299 = vmul.f32 %v2615, %v3298
      %v3300 = vrcp.pop %v3125
      %v3301 = vmul.f32 %v2617, %v3300
      %v3302 = vrcp.pop %v3132
      %v3303 = vmul.f32 %v2619, %v3302
      %v3304 = vrcp.pop %v3139
      %v3305 = vmul.f32 %v2621, %v3304
      %v3306 = vrcp.pop %v3146
      %v3307 = vmul.f32 %v2623, %v3306
      %v3308 = vrcp.pop %v3153
      %v3309 = vmul.f32 %v2625, %v3308
      %v3310 = vrcp.pop %v3160
      %v3311 = vmul.f32 %v2627, %v3310
      %v3312 = vrcp.pop %v3167
      %v3313 = vmul.f32 %v2629, %v3312
      %v3314 = vrcp.pop %v3174
      %v3315 = vmul.f32 %v2631, %v3314
      %v3316 = vrcp.pop %v3181
      %v3317 = vmul.f32 %v2633, %v3316
      %v3318 = vrcp.pop %v3188
      %v3319 = vmul.f32 %v2635, %v3318
      %v3320 = vrcp.pop %v3195
      %v3321 = vmul.f32 %v2637, %v3320
      %v3322 = vrcp.pop %v3202
      %v3323 = vmul.f32 %v2639, %v3322
      %v3324 = vrcp.pop %v3209
      %v3325 = vmul.f32 %v2641, %v3324
      %v3326 = vrcp.pop %v3216
      %v3327 = vmul.f32 %v2643, %v3326
      %v3328 = vrcp.pop %v3223
      %v3329 = vmul.f32 %v2645, %v3328
      %v3330 = vrcp.pop %v3230
      %v3331 = vmul.f32 %v2647, %v3330
      %v3332 = vrcp.pop %v3237
      %v3333 = vmul.f32 %v2649, %v3332
      %v3334 = vsub.f32 0.0, %v1114
      %v3335 = vsub.f32 0.0, %v1146
      %v3336 = vsub.f32 0.0, %v1115
      %v3337 = vsub.f32 0.0, %v1147
      %v3338 = vsub.f32 0.0, %v1116
      %v3339 = vsub.f32 0.0, %v1148
      %v3340 = vsub.f32 0.0, %v1117
      %v3341 = vsub.f32 0.0, %v1149
      %v3342 = vsub.f32 0.0, %v1118
      %v3343 = vsub.f32 0.0, %v1150
      %v3344 = vsub.f32 0.0, %v1119
      %v3345 = vsub.f32 0.0, %v1151
      %v3346 = vsub.f32 0.0, %v1120
      %v3347 = vsub.f32 0.0, %v1152
      %v3348 = vsub.f32 0.0, %v1121
      %v3349 = vsub.f32 0.0, %v1153
      %v3350 = vsub.f32 0.0, %v1122
      %v3351 = vsub.f32 0.0, %v1154
      %v3352 = vsub.f32 0.0, %v1123
      %v3353 = vsub.f32 0.0, %v1155
      %v3354 = vsub.f32 0.0, %v1124
      %v3355 = vsub.f32 0.0, %v1156
      %v3356 = vsub.f32 0.0, %v1125
      %v3357 = vsub.f32 0.0, %v1157
      %v3358 = vsub.f32 0.0, %v1126
      %v3359 = vsub.f32 0.0, %v1158
      %v3360 = vsub.f32 0.0, %v1127
      %v3361 = vsub.f32 0.0, %v1159
      %v3362 = vsub.f32 0.0, %v1128
      %v3363 = vsub.f32 0.0, %v1160
      %v3364 = vsub.f32 0.0, %v1129
      %v3365 = vsub.f32 0.0, %v1161
      %v3366 = vmul.f32 %v3334, %v3271
      %v3367 = vmul.f32 %v3335, %v3273
      %v3368 = vmul.f32 %v3336, %v3275
      %v3369 = vmul.f32 %v3337, %v3277
      %v3370 = vmul.f32 %v3338, %v3279
      %v3371 = vmul.f32 %v3339, %v3281
      %v3372 = vmul.f32 %v3340, %v3283
      %v3373 = vmul.f32 %v3341, %v3285
      %v3374 = vmul.f32 %v3342, %v3287
      %v3375 = vmul.f32 %v3343, %v3289
      %v3376 = vmul.f32 %v3344, %v3291
      %v3377 = vmul.f32 %v3345, %v3293
      %v3378 = vmul.f32 %v3346, %v3295
      %v3379 = vmul.f32 %v3347, %v3297
      %v3380 = vmul.f32 %v3348, %v3299
      %v3381 = vmul.f32 %v3349, %v3301
      %v3382 = vmul.f32 %v3350, %v3303
      %v3383 = vmul.f32 %v3351, %v3305
      %v3384 = vmul.f32 %v3352, %v3307
      %v3385 = vmul.f32 %v3353, %v3309
      %v3386 = vmul.f32 %v3354, %v3311
      %v3387 = vmul.f32 %v3355, %v3313
      %v3388 = vmul.f32 %v3356, %v3315
      %v3389 = vmul.f32 %v3357, %v3317
      %v3390 = vmul.f32 %v3358, %v3319
      %v3391 = vmul.f32 %v3359, %v3321
      %v3392 = vmul.f32 %v3360, %v3323
      %v3393 = vmul.f32 %v3361, %v3325
      %v3394 = vmul.f32 %v3362, %v3327
      %v3395 = vmul.f32 %v3363, %v3329
      %v3396 = vmul.f32 %v3364, %v3331
      %v3397 = vmul.f32 %v3365, %v3333
      %v3398 = vld [vmem:[#allocation8] sm:$0xff]
      %v3399 = vld [vmem:[#allocation8 + $0x8] sm:$0xff]
      %v3400 = vld [vmem:[#allocation8 + $0x10] sm:$0xff]
      %v3401 = vld [vmem:[#allocation8 + $0x18] sm:$0xff]
      %v3406 = vcombine.high %v3398, %v3398
      %v3407 = vcombine.high %v3399, %v3399
      %v3408 = vcombine.high %v3400, %v3400
      %v3409 = vcombine.high %v3401, %v3401
      %v3410 = vcombine.low %v3398, %v3406
      %v3411 = vcombine.low %v3399, %v3407
      %v3412 = vcombine.low %v3400, %v3408
      %v3413 = vcombine.low %v3401, %v3409
      %v3414 = vlaneseq
      %v3415 = vshrl.u32 %v3414, 7
      %v3416 = vsub.s32 0, %v3415
      %v3417 = vrot.slane %v3410, %v3416
      %3419 = vbcast.lane.b32.xlu0 %v3417, 256
      %v3420 = vpop.permute.xlu0 %3419
      %v3421 = vlaneseq
      %v3422 = vshrl.u32 %v3421, 7
      %v3423 = vsub.s32 1, %v3422
      %v3424 = vrot.slane %v3410, %v3423
      %3426 = vbcast.lane.b32.xlu0 %v3424, 256
      %v3427 = vpop.permute.xlu0 %3426
      %v3428 = vlaneseq
      %v3429 = vshrl.u32 %v3428, 7
      %v3430 = vsub.s32 2, %v3429
      %v3431 = vrot.slane %v3410, %v3430
      %3433 = vbcast.lane.b32.xlu0 %v3431, 256
      %v3434 = vpop.permute.xlu0 %3433
      %v3435 = vlaneseq
      %v3436 = vshrl.u32 %v3435, 7
      %v3437 = vsub.s32 3, %v3436
      %v3438 = vrot.slane %v3410, %v3437
      %3440 = vbcast.lane.b32.xlu0 %v3438, 256
      %v3441 = vpop.permute.xlu0 %3440
      %v3442 = vlaneseq
      %v3443 = vshrl.u32 %v3442, 7
      %v3444 = vsub.s32 4, %v3443
      %v3445 = vrot.slane %v3410, %v3444
      %3447 = vbcast.lane.b32.xlu0 %v3445, 256
      %v3448 = vpop.permute.xlu0 %3447
      %v3449 = vlaneseq
      %v3450 = vshrl.u32 %v3449, 7
      %v3451 = vsub.s32 5, %v3450
      %v3452 = vrot.slane %v3410, %v3451
      %3454 = vbcast.lane.b32.xlu0 %v3452, 256
      %v3455 = vpop.permute.xlu0 %3454
      %v3456 = vlaneseq
      %v3457 = vshrl.u32 %v3456, 7
      %v3458 = vsub.s32 6, %v3457
      %v3459 = vrot.slane %v3410, %v3458
      %3461 = vbcast.lane.b32.xlu0 %v3459, 256
      %v3462 = vpop.permute.xlu0 %3461
      %v3463 = vlaneseq
      %v3464 = vshrl.u32 %v3463, 7
      %v3465 = vsub.s32 7, %v3464
      %v3466 = vrot.slane %v3410, %v3465
      %3468 = vbcast.lane.b32.xlu0 %v3466, 256
      %v3469 = vpop.permute.xlu0 %3468
      %v3470 = vlaneseq
      %v3471 = vshrl.u32 %v3470, 7
      %v3472 = vsub.s32 0, %v3471
      %v3473 = vrot.slane %v3411, %v3472
      %3475 = vbcast.lane.b32.xlu0 %v3473, 256
      %v3476 = vpop.permute.xlu0 %3475
      %v3477 = vlaneseq
      %v3478 = vshrl.u32 %v3477, 7
      %v3479 = vsub.s32 1, %v3478
      %v3480 = vrot.slane %v3411, %v3479
      %3482 = vbcast.lane.b32.xlu0 %v3480, 256
      %v3483 = vpop.permute.xlu0 %3482
      %v3484 = vlaneseq
      %v3485 = vshrl.u32 %v3484, 7
      %v3486 = vsub.s32 2, %v3485
      %v3487 = vrot.slane %v3411, %v3486
      %3489 = vbcast.lane.b32.xlu0 %v3487, 256
      %v3490 = vpop.permute.xlu0 %3489
      %v3491 = vlaneseq
      %v3492 = vshrl.u32 %v3491, 7
      %v3493 = vsub.s32 3, %v3492
      %v3494 = vrot.slane %v3411, %v3493
      %3496 = vbcast.lane.b32.xlu0 %v3494, 256
      %v3497 = vpop.permute.xlu0 %3496
      %v3498 = vlaneseq
      %v3499 = vshrl.u32 %v3498, 7
      %v3500 = vsub.s32 4, %v3499
      %v3501 = vrot.slane %v3411, %v3500
      %3503 = vbcast.lane.b32.xlu0 %v3501, 256
      %v3504 = vpop.permute.xlu0 %3503
      %v3505 = vlaneseq
      %v3506 = vshrl.u32 %v3505, 7
      %v3507 = vsub.s32 5, %v3506
      %v3508 = vrot.slane %v3411, %v3507
      %3510 = vbcast.lane.b32.xlu0 %v3508, 256
      %v3511 = vpop.permute.xlu0 %3510
      %v3512 = vlaneseq
      %v3513 = vshrl.u32 %v3512, 7
      %v3514 = vsub.s32 6, %v3513
      %v3515 = vrot.slane %v3411, %v3514
      %3517 = vbcast.lane.b32.xlu0 %v3515, 256
      %v3518 = vpop.permute.xlu0 %3517
      %v3519 = vlaneseq
      %v3520 = vshrl.u32 %v3519, 7
      %v3521 = vsub.s32 7, %v3520
      %v3522 = vrot.slane %v3411, %v3521
      %3524 = vbcast.lane.b32.xlu0 %v3522, 256
      %v3525 = vpop.permute.xlu0 %3524
      %v3526 = vlaneseq
      %v3527 = vshrl.u32 %v3526, 7
      %v3528 = vsub.s32 0, %v3527
      %v3529 = vrot.slane %v3412, %v3528
      %3531 = vbcast.lane.b32.xlu0 %v3529, 256
      %v3532 = vpop.permute.xlu0 %3531
      %v3533 = vlaneseq
      %v3534 = vshrl.u32 %v3533, 7
      %v3535 = vsub.s32 1, %v3534
      %v3536 = vrot.slane %v3412, %v3535
      %3538 = vbcast.lane.b32.xlu0 %v3536, 256
      %v3539 = vpop.permute.xlu0 %3538
      %v3540 = vlaneseq
      %v3541 = vshrl.u32 %v3540, 7
      %v3542 = vsub.s32 2, %v3541
      %v3543 = vrot.slane %v3412, %v3542
      %3545 = vbcast.lane.b32.xlu0 %v3543, 256
      %v3546 = vpop.permute.xlu0 %3545
      %v3547 = vlaneseq
      %v3548 = vshrl.u32 %v3547, 7
      %v3549 = vsub.s32 3, %v3548
      %v3550 = vrot.slane %v3412, %v3549
      %3552 = vbcast.lane.b32.xlu0 %v3550, 256
      %v3553 = vpop.permute.xlu0 %3552
      %v3554 = vlaneseq
      %v3555 = vshrl.u32 %v3554, 7
      %v3556 = vsub.s32 4, %v3555
      %v3557 = vrot.slane %v3412, %v3556
      %3559 = vbcast.lane.b32.xlu0 %v3557, 256
      %v3560 = vpop.permute.xlu0 %3559
      %v3561 = vlaneseq
      %v3562 = vshrl.u32 %v3561, 7
      %v3563 = vsub.s32 5, %v3562
      %v3564 = vrot.slane %v3412, %v3563
      %3566 = vbcast.lane.b32.xlu0 %v3564, 256
      %v3567 = vpop.permute.xlu0 %3566
      %v3568 = vlaneseq
      %v3569 = vshrl.u32 %v3568, 7
      %v3570 = vsub.s32 6, %v3569
      %v3571 = vrot.slane %v3412, %v3570
      %3573 = vbcast.lane.b32.xlu0 %v3571, 256
      %v3574 = vpop.permute.xlu0 %3573
      %v3575 = vlaneseq
      %v3576 = vshrl.u32 %v3575, 7
      %v3577 = vsub.s32 7, %v3576
      %v3578 = vrot.slane %v3412, %v3577
      %3580 = vbcast.lane.b32.xlu0 %v3578, 256
      %v3581 = vpop.permute.xlu0 %3580
      %v3582 = vlaneseq
      %v3583 = vshrl.u32 %v3582, 7
      %v3584 = vsub.s32 0, %v3583
      %v3585 = vrot.slane %v3413, %v3584
      %3587 = vbcast.lane.b32.xlu0 %v3585, 256
      %v3588 = vpop.permute.xlu0 %3587
      %v3589 = vlaneseq
      %v3590 = vshrl.u32 %v3589, 7
      %v3591 = vsub.s32 1, %v3590
      %v3592 = vrot.slane %v3413, %v3591
      %3594 = vbcast.lane.b32.xlu0 %v3592, 256
      %v3595 = vpop.permute.xlu0 %3594
      %v3596 = vlaneseq
      %v3597 = vshrl.u32 %v3596, 7
      %v3598 = vsub.s32 2, %v3597
      %v3599 = vrot.slane %v3413, %v3598
      %3601 = vbcast.lane.b32.xlu0 %v3599, 256
      %v3602 = vpop.permute.xlu0 %3601
      %v3603 = vlaneseq
      %v3604 = vshrl.u32 %v3603, 7
      %v3605 = vsub.s32 3, %v3604
      %v3606 = vrot.slane %v3413, %v3605
      %3608 = vbcast.lane.b32.xlu0 %v3606, 256
      %v3609 = vpop.permute.xlu0 %3608
      %v3610 = vlaneseq
      %v3611 = vshrl.u32 %v3610, 7
      %v3612 = vsub.s32 4, %v3611
      %v3613 = vrot.slane %v3413, %v3612
      %3615 = vbcast.lane.b32.xlu0 %v3613, 256
      %v3616 = vpop.permute.xlu0 %3615
      %v3617 = vlaneseq
      %v3618 = vshrl.u32 %v3617, 7
      %v3619 = vsub.s32 5, %v3618
      %v3620 = vrot.slane %v3413, %v3619
      %3622 = vbcast.lane.b32.xlu0 %v3620, 256
      %v3623 = vpop.permute.xlu0 %3622
      %v3624 = vlaneseq
      %v3625 = vshrl.u32 %v3624, 7
      %v3626 = vsub.s32 6, %v3625
      %v3627 = vrot.slane %v3413, %v3626
      %3629 = vbcast.lane.b32.xlu0 %v3627, 256
      %v3630 = vpop.permute.xlu0 %3629
      %v3631 = vlaneseq
      %v3632 = vshrl.u32 %v3631, 7
      %v3633 = vsub.s32 7, %v3632
      %v3634 = vrot.slane %v3413, %v3633
      %3636 = vbcast.lane.b32.xlu0 %v3634, 256
      %v3637 = vpop.permute.xlu0 %3636
      %v3670 = vmul.f32 %v3366, %v3420
      %v3671 = vmul.f32 %v3367, %v3427
      %v3672 = vmul.f32 %v3368, %v3434
      %v3673 = vmul.f32 %v3369, %v3441
      %v3674 = vmul.f32 %v3370, %v3448
      %v3675 = vmul.f32 %v3371, %v3455
      %v3676 = vmul.f32 %v3372, %v3462
      %v3677 = vmul.f32 %v3373, %v3469
      %v3678 = vmul.f32 %v3374, %v3476
      %v3679 = vmul.f32 %v3375, %v3483
      %v3680 = vmul.f32 %v3376, %v3490
      %v3681 = vmul.f32 %v3377, %v3497
      %v3682 = vmul.f32 %v3378, %v3504
      %v3683 = vmul.f32 %v3379, %v3511
      %v3684 = vmul.f32 %v3380, %v3518
      %v3685 = vmul.f32 %v3381, %v3525
      %v3686 = vmul.f32 %v3382, %v3532
      %v3687 = vmul.f32 %v3383, %v3539
      %v3688 = vmul.f32 %v3384, %v3546
      %v3689 = vmul.f32 %v3385, %v3553
      %v3690 = vmul.f32 %v3386, %v3560
      %v3691 = vmul.f32 %v3387, %v3567
      %v3692 = vmul.f32 %v3388, %v3574
      %v3693 = vmul.f32 %v3389, %v3581
      %v3694 = vmul.f32 %v3390, %v3588
      %v3695 = vmul.f32 %v3391, %v3595
      %v3696 = vmul.f32 %v3392, %v3602
      %v3697 = vmul.f32 %v3393, %v3609
      %v3698 = vmul.f32 %v3394, %v3616
      %v3699 = vmul.f32 %v3395, %v3623
      %v3700 = vmul.f32 %v3396, %v3630
      %v3701 = vmul.f32 %v3397, %v3637
      %v3702 = vadd.s32 %v110, 4294967288
      %v3703 = vlaneseq
      %v3704 = vshrl.u32 %v3703, 7
      %v3705 = vsub.s32 %v3702, %v3704
      %v3706 = vrot.slane %v1186, %v3705
      %vm3707 = vcmask 130112
      %v3708 = vsel %vm3707, %v3706, %v1277
      %v3709 = vadd.s32 %v110, 4294967280
      %v3710 = vlaneseq
      %v3711 = vshrl.u32 %v3710, 7
      %v3712 = vsub.s32 %v3709, %v3711
      %v3713 = vrot.slane %v1192, %v3712
      %vm3714 = vcmask 195712
      %v3715 = vsel %vm3714, %v3713, %v3708
      %v3716 = vadd.s32 %v110, 4294967272
      %v3717 = vlaneseq
      %v3718 = vshrl.u32 %v3717, 7
      %v3719 = vsub.s32 %v3716, %v3718
      %v3720 = vrot.slane %v1198, %v3719
      %vm3721 = vcmask 261312
      %v3722 = vsel %vm3721, %v3720, %v3715
      %v3723 = vadd.s32 %v110, 4294967264
      %v3724 = vlaneseq
      %v3725 = vshrl.u32 %v3724, 7
      %v3726 = vsub.s32 %v3723, %v3725
      %v3727 = vrot.slane %v1204, %v3726
      %vm3728 = vcmask 326912
      %v3729 = vsel %vm3728, %v3727, %v3722
      %v3730 = vadd.s32 %v110, 4294967256
      %v3731 = vlaneseq
      %v3732 = vshrl.u32 %v3731, 7
      %v3733 = vsub.s32 %v3730, %v3732
      %v3734 = vrot.slane %v1210, %v3733
      %vm3735 = vcmask 392512
      %v3736 = vsel %vm3735, %v3734, %v3729
      %v3737 = vadd.s32 %v110, 4294967248
      %v3738 = vlaneseq
      %v3739 = vshrl.u32 %v3738, 7
      %v3740 = vsub.s32 %v3737, %v3739
      %v3741 = vrot.slane %v1216, %v3740
      %vm3742 = vcmask 458112
      %v3743 = vsel %vm3742, %v3741, %v3736
      %v3744 = vadd.s32 %v110, 4294967240
      %v3745 = vlaneseq
      %v3746 = vshrl.u32 %v3745, 7
      %v3747 = vsub.s32 %v3744, %v3746
      %v3748 = vrot.slane %v1222, %v3747
      %vm3749 = vcmask 523712
      %v3750 = vsel %vm3749, %v3748, %v3743
      %v3751 = vadd.s32 %v110, 4294967232
      %v3752 = vlaneseq
      %v3753 = vshrl.u32 %v3752, 7
      %v3754 = vsub.s32 %v3751, %v3753
      %v3755 = vrot.slane %v1228, %v3754
      %vm3756 = vcmask 589312
      %v3757 = vsel %vm3756, %v3755, %v3750
      %v3758 = vadd.s32 %v110, 4294967224
      %v3759 = vlaneseq
      %v3760 = vshrl.u32 %v3759, 7
      %v3761 = vsub.s32 %v3758, %v3760
      %v3762 = vrot.slane %v1234, %v3761
      %vm3763 = vcmask 654912
      %v3764 = vsel %vm3763, %v3762, %v3757
      %v3765 = vadd.s32 %v110, 4294967216
      %v3766 = vlaneseq
      %v3767 = vshrl.u32 %v3766, 7
      %v3768 = vsub.s32 %v3765, %v3767
      %v3769 = vrot.slane %v1240, %v3768
      %vm3770 = vcmask 720512
      %v3771 = vsel %vm3770, %v3769, %v3764
      %v3772 = vadd.s32 %v110, 4294967208
      %v3773 = vlaneseq
      %v3774 = vshrl.u32 %v3773, 7
      %v3775 = vsub.s32 %v3772, %v3774
      %v3776 = vrot.slane %v1246, %v3775
      %vm3777 = vcmask 786112
      %v3778 = vsel %vm3777, %v3776, %v3771
      %v3779 = vadd.s32 %v110, 4294967200
      %v3780 = vlaneseq
      %v3781 = vshrl.u32 %v3780, 7
      %v3782 = vsub.s32 %v3779, %v3781
      %v3783 = vrot.slane %v1252, %v3782
      %vm3784 = vcmask 851712
      %v3785 = vsel %vm3784, %v3783, %v3778
      %v3786 = vadd.s32 %v110, 4294967192
      %v3787 = vlaneseq
      %v3788 = vshrl.u32 %v3787, 7
      %v3789 = vsub.s32 %v3786, %v3788
      %v3790 = vrot.slane %v1258, %v3789
      %vm3791 = vcmask 917312
      %v3792 = vsel %vm3791, %v3790, %v3785
      %v3793 = vadd.s32 %v110, 4294967184
      %v3794 = vlaneseq
      %v3795 = vshrl.u32 %v3794, 7
      %v3796 = vsub.s32 %v3793, %v3795
      %v3797 = vrot.slane %v1264, %v3796
      %vm3798 = vcmask 982912
      %v3799 = vsel %vm3798, %v3797, %v3792
      %v3800 = vadd.s32 %v110, 4294967176
      %v3801 = vlaneseq
      %v3802 = vshrl.u32 %v3801, 7
      %v3803 = vsub.s32 %v3800, %v3802
      %v3804 = vrot.slane %v1270, %v3803
      %vm3805 = vcmask 1048512
      %v3806 = vsel %vm3805, %v3804, %v3799
      %3808 = vst [vmem:[#allocation9] sm:$0x1] %v3806
      %v3841 = vcombine.low %v2491, %v2493
      %v3842 = vcombine.low %v2495, %v2497
      %v3843 = vcombine.low %v2499, %v2501
      %v3844 = vcombine.low %v2503, %v2505
      %v3845 = vcombine.low %v2507, %v2509
      %v3846 = vcombine.low %v2511, %v2513
      %v3847 = vcombine.low %v2515, %v2517
      %v3848 = vcombine.low %v2519, %v2521
      %v3849 = vcombine.low %v2523, %v2525
      %v3850 = vcombine.low %v2527, %v2529
      %v3851 = vcombine.low %v2531, %v2533
      %v3852 = vcombine.low %v2535, %v2537
      %v3853 = vcombine.low %v2539, %v2541
      %v3854 = vcombine.low %v2543, %v2545
      %v3855 = vcombine.low %v2547, %v2549
      %v3856 = vcombine.low %v2551, %v2553
      %3857 = vset.pattern.permute.xlu0 0
      %3858 = vperm.xlu0 %3857, %v3841
      %v3859 = vpop.permute.xlu0 %3858
      %3860 = vset.pattern.permute.xlu0 0
      %3861 = vperm.xlu0 %3860, %v3842
      %v3862 = vpop.permute.xlu0 %3861
      %3863 = vset.pattern.permute.xlu0 0
      %3864 = vperm.xlu0 %3863, %v3843
      %v3865 = vpop.permute.xlu0 %3864
      %3866 = vset.pattern.permute.xlu0 0
      %3867 = vperm.xlu0 %3866, %v3844
      %v3868 = vpop.permute.xlu0 %3867
      %3869 = vset.pattern.permute.xlu0 0
      %3870 = vperm.xlu0 %3869, %v3845
      %v3871 = vpop.permute.xlu0 %3870
      %3872 = vset.pattern.permute.xlu0 0
      %3873 = vperm.xlu0 %3872, %v3846
      %v3874 = vpop.permute.xlu0 %3873
      %3875 = vset.pattern.permute.xlu0 0
      %3876 = vperm.xlu0 %3875, %v3847
      %v3877 = vpop.permute.xlu0 %3876
      %3878 = vset.pattern.permute.xlu0 0
      %3879 = vperm.xlu0 %3878, %v3848
      %v3880 = vpop.permute.xlu0 %3879
      %3881 = vset.pattern.permute.xlu0 0
      %3882 = vperm.xlu0 %3881, %v3849
      %v3883 = vpop.permute.xlu0 %3882
      %3884 = vset.pattern.permute.xlu0 0
      %3885 = vperm.xlu0 %3884, %v3850
      %v3886 = vpop.permute.xlu0 %3885
      %3887 = vset.pattern.permute.xlu0 0
      %3888 = vperm.xlu0 %3887, %v3851
      %v3889 = vpop.permute.xlu0 %3888
      %3890 = vset.pattern.permute.xlu0 0
      %3891 = vperm.xlu0 %3890, %v3852
      %v3892 = vpop.permute.xlu0 %3891
      %3893 = vset.pattern.permute.xlu0 0
      %3894 = vperm.xlu0 %3893, %v3853
      %v3895 = vpop.permute.xlu0 %3894
      %3896 = vset.pattern.permute.xlu0 0
      %3897 = vperm.xlu0 %3896, %v3854
      %v3898 = vpop.permute.xlu0 %3897
      %3899 = vset.pattern.permute.xlu0 0
      %3900 = vperm.xlu0 %3899, %v3855
      %v3901 = vpop.permute.xlu0 %3900
      %3902 = vset.pattern.permute.xlu0 0
      %3903 = vperm.xlu0 %3902, %v3856
      %v3904 = vpop.permute.xlu0 %3903
      %v3905 = vlaneseq
      %v3906 = vshrl.u32 %v3905, 7
      %v3907 = vsub.s32 %v110, %v3906
      %v3908 = vrot.slane %v3859, %v3907
      %v3909 = vlaneseq
      %v3910 = vshrl.u32 %v3909, 7
      %v3911 = vsub.s32 %v3702, %v3910
      %v3912 = vrot.slane %v3862, %v3911
      %v3913 = vsel %vm3707, %v3912, %v3908
      %v3914 = vlaneseq
      %v3915 = vshrl.u32 %v3914, 7
      %v3916 = vsub.s32 %v3709, %v3915
      %v3917 = vrot.slane %v3865, %v3916
      %v3918 = vsel %vm3714, %v3917, %v3913
      %v3919 = vlaneseq
      %v3920 = vshrl.u32 %v3919, 7
      %v3921 = vsub.s32 %v3716, %v3920
      %v3922 = vrot.slane %v3868, %v3921
      %v3923 = vsel %vm3721, %v3922, %v3918
      %v3924 = vlaneseq
      %v3925 = vshrl.u32 %v3924, 7
      %v3926 = vsub.s32 %v3723, %v3925
      %v3927 = vrot.slane %v3871, %v3926
      %v3928 = vsel %vm3728, %v3927, %v3923
      %v3929 = vlaneseq
      %v3930 = vshrl.u32 %v3929, 7
      %v3931 = vsub.s32 %v3730, %v3930
      %v3932 = vrot.slane %v3874, %v3931
      %v3933 = vsel %vm3735, %v3932, %v3928
      %v3934 = vlaneseq
      %v3935 = vshrl.u32 %v3934, 7
      %v3936 = vsub.s32 %v3737, %v3935
      %v3937 = vrot.slane %v3877, %v3936
      %v3938 = vsel %vm3742, %v3937, %v3933
      %v3939 = vlaneseq
      %v3940 = vshrl.u32 %v3939, 7
      %v3941 = vsub.s32 %v3744, %v3940
      %v3942 = vrot.slane %v3880, %v3941
      %v3943 = vsel %vm3749, %v3942, %v3938
      %v3944 = vlaneseq
      %v3945 = vshrl.u32 %v3944, 7
      %v3946 = vsub.s32 %v3751, %v3945
      %v3947 = vrot.slane %v3883, %v3946
      %v3948 = vsel %vm3756, %v3947, %v3943
      %v3949 = vlaneseq
      %v3950 = vshrl.u32 %v3949, 7
      %v3951 = vsub.s32 %v3758, %v3950
      %v3952 = vrot.slane %v3886, %v3951
      %v3953 = vsel %vm3763, %v3952, %v3948
      %v3954 = vlaneseq
      %v3955 = vshrl.u32 %v3954, 7
      %v3956 = vsub.s32 %v3765, %v3955
      %v3957 = vrot.slane %v3889, %v3956
      %v3958 = vsel %vm3770, %v3957, %v3953
      %v3959 = vlaneseq
      %v3960 = vshrl.u32 %v3959, 7
      %v3961 = vsub.s32 %v3772, %v3960
      %v3962 = vrot.slane %v3892, %v3961
      %v3963 = vsel %vm3777, %v3962, %v3958
      %v3964 = vlaneseq
      %v3965 = vshrl.u32 %v3964, 7
      %v3966 = vsub.s32 %v3779, %v3965
      %v3967 = vrot.slane %v3895, %v3966
      %v3968 = vsel %vm3784, %v3967, %v3963
      %v3969 = vlaneseq
      %v3970 = vshrl.u32 %v3969, 7
      %v3971 = vsub.s32 %v3786, %v3970
      %v3972 = vrot.slane %v3898, %v3971
      %v3973 = vsel %vm3791, %v3972, %v3968
      %v3974 = vlaneseq
      %v3975 = vshrl.u32 %v3974, 7
      %v3976 = vsub.s32 %v3793, %v3975
      %v3977 = vrot.slane %v3901, %v3976
      %v3978 = vsel %vm3798, %v3977, %v3973
      %v3979 = vlaneseq
      %v3980 = vshrl.u32 %v3979, 7
      %v3981 = vsub.s32 %v3800, %v3980
      %v3982 = vrot.slane %v3904, %v3981
      %v3983 = vsel %vm3805, %v3982, %v3978
      %3985 = vst [vmem:[#allocation9 + $0x1] sm:$0x1] %v3983
      %v4018 = vcombine.low %v3271, %v3273
      %v4019 = vcombine.low %v3275, %v3277
      %v4020 = vcombine.low %v3279, %v3281
      %v4021 = vcombine.low %v3283, %v3285
      %v4022 = vcombine.low %v3287, %v3289
      %v4023 = vcombine.low %v3291, %v3293
      %v4024 = vcombine.low %v3295, %v3297
      %v4025 = vcombine.low %v3299, %v3301
      %v4026 = vcombine.low %v3303, %v3305
      %v4027 = vcombine.low %v3307, %v3309
      %v4028 = vcombine.low %v3311, %v3313
      %v4029 = vcombine.low %v3315, %v3317
      %v4030 = vcombine.low %v3319, %v3321
      %v4031 = vcombine.low %v3323, %v3325
      %v4032 = vcombine.low %v3327, %v3329
      %v4033 = vcombine.low %v3331, %v3333
      %4034 = vset.pattern.permute.xlu0 0
      %4035 = vperm.xlu0 %4034, %v4018
      %v4036 = vpop.permute.xlu0 %4035
      %4037 = vset.pattern.permute.xlu0 0
      %4038 = vperm.xlu0 %4037, %v4019
      %v4039 = vpop.permute.xlu0 %4038
      %4040 = vset.pattern.permute.xlu0 0
      %4041 = vperm.xlu0 %4040, %v4020
      %v4042 = vpop.permute.xlu0 %4041
      %4043 = vset.pattern.permute.xlu0 0
      %4044 = vperm.xlu0 %4043, %v4021
      %v4045 = vpop.permute.xlu0 %4044
      %4046 = vset.pattern.permute.xlu0 0
      %4047 = vperm.xlu0 %4046, %v4022
      %v4048 = vpop.permute.xlu0 %4047
      %4049 = vset.pattern.permute.xlu0 0
      %4050 = vperm.xlu0 %4049, %v4023
      %v4051 = vpop.permute.xlu0 %4050
      %4052 = vset.pattern.permute.xlu0 0
      %4053 = vperm.xlu0 %4052, %v4024
      %v4054 = vpop.permute.xlu0 %4053
      %4055 = vset.pattern.permute.xlu0 0
      %4056 = vperm.xlu0 %4055, %v4025
      %v4057 = vpop.permute.xlu0 %4056
      %4058 = vset.pattern.permute.xlu0 0
      %4059 = vperm.xlu0 %4058, %v4026
      %v4060 = vpop.permute.xlu0 %4059
      %4061 = vset.pattern.permute.xlu0 0
      %4062 = vperm.xlu0 %4061, %v4027
      %v4063 = vpop.permute.xlu0 %4062
      %4064 = vset.pattern.permute.xlu0 0
      %4065 = vperm.xlu0 %4064, %v4028
      %v4066 = vpop.permute.xlu0 %4065
      %4067 = vset.pattern.permute.xlu0 0
      %4068 = vperm.xlu0 %4067, %v4029
      %v4069 = vpop.permute.xlu0 %4068
      %4070 = vset.pattern.permute.xlu0 0
      %4071 = vperm.xlu0 %4070, %v4030
      %v4072 = vpop.permute.xlu0 %4071
      %4073 = vset.pattern.permute.xlu0 0
      %4074 = vperm.xlu0 %4073, %v4031
      %v4075 = vpop.permute.xlu0 %4074
      %4076 = vset.pattern.permute.xlu0 0
      %4077 = vperm.xlu0 %4076, %v4032
      %v4078 = vpop.permute.xlu0 %4077
      %4079 = vset.pattern.permute.xlu0 0
      %4080 = vperm.xlu0 %4079, %v4033
      %v4081 = vpop.permute.xlu0 %4080
      %v4082 = vlaneseq
      %v4083 = vshrl.u32 %v4082, 7
      %v4084 = vsub.s32 %v110, %v4083
      %v4085 = vrot.slane %v4036, %v4084
      %v4086 = vlaneseq
      %v4087 = vshrl.u32 %v4086, 7
      %v4088 = vsub.s32 %v3702, %v4087
      %v4089 = vrot.slane %v4039, %v4088
      %v4090 = vsel %vm3707, %v4089, %v4085
      %v4091 = vlaneseq
      %v4092 = vshrl.u32 %v4091, 7
      %v4093 = vsub.s32 %v3709, %v4092
      %v4094 = vrot.slane %v4042, %v4093
      %v4095 = vsel %vm3714, %v4094, %v4090
      %v4096 = vlaneseq
      %v4097 = vshrl.u32 %v4096, 7
      %v4098 = vsub.s32 %v3716, %v4097
      %v4099 = vrot.slane %v4045, %v4098
      %v4100 = vsel %vm3721, %v4099, %v4095
      %v4101 = vlaneseq
      %v4102 = vshrl.u32 %v4101, 7
      %v4103 = vsub.s32 %v3723, %v4102
      %v4104 = vrot.slane %v4048, %v4103
      %v4105 = vsel %vm3728, %v4104, %v4100
      %v4106 = vlaneseq
      %v4107 = vshrl.u32 %v4106, 7
      %v4108 = vsub.s32 %v3730, %v4107
      %v4109 = vrot.slane %v4051, %v4108
      %v4110 = vsel %vm3735, %v4109, %v4105
      %v4111 = vlaneseq
      %v4112 = vshrl.u32 %v4111, 7
      %v4113 = vsub.s32 %v3737, %v4112
      %v4114 = vrot.slane %v4054, %v4113
      %v4115 = vsel %vm3742, %v4114, %v4110
      %v4116 = vlaneseq
      %v4117 = vshrl.u32 %v4116, 7
      %v4118 = vsub.s32 %v3744, %v4117
      %v4119 = vrot.slane %v4057, %v4118
      %v4120 = vsel %vm3749, %v4119, %v4115
      %v4121 = vlaneseq
      %v4122 = vshrl.u32 %v4121, 7
      %v4123 = vsub.s32 %v3751, %v4122
      %v4124 = vrot.slane %v4060, %v4123
      %v4125 = vsel %vm3756, %v4124, %v4120
      %v4126 = vlaneseq
      %v4127 = vshrl.u32 %v4126, 7
      %v4128 = vsub.s32 %v3758, %v4127
      %v4129 = vrot.slane %v4063, %v4128
      %v4130 = vsel %vm3763, %v4129, %v4125
      %v4131 = vlaneseq
      %v4132 = vshrl.u32 %v4131, 7
      %v4133 = vsub.s32 %v3765, %v4132
      %v4134 = vrot.slane %v4066, %v4133
      %v4135 = vsel %vm3770, %v4134, %v4130
      %v4136 = vlaneseq
      %v4137 = vshrl.u32 %v4136, 7
      %v4138 = vsub.s32 %v3772, %v4137
      %v4139 = vrot.slane %v4069, %v4138
      %v4140 = vsel %vm3777, %v4139, %v4135
      %v4141 = vlaneseq
      %v4142 = vshrl.u32 %v4141, 7
      %v4143 = vsub.s32 %v3779, %v4142
      %v4144 = vrot.slane %v4072, %v4143
      %v4145 = vsel %vm3784, %v4144, %v4140
      %v4146 = vlaneseq
      %v4147 = vshrl.u32 %v4146, 7
      %v4148 = vsub.s32 %v3786, %v4147
      %v4149 = vrot.slane %v4075, %v4148
      %v4150 = vsel %vm3791, %v4149, %v4145
      %v4151 = vlaneseq
      %v4152 = vshrl.u32 %v4151, 7
      %v4153 = vsub.s32 %v3793, %v4152
      %v4154 = vrot.slane %v4078, %v4153
      %v4155 = vsel %vm3798, %v4154, %v4150
      %v4156 = vlaneseq
      %v4157 = vshrl.u32 %v4156, 7
      %v4158 = vsub.s32 %v3800, %v4157
      %v4159 = vrot.slane %v4081, %v4158
      %v4160 = vsel %vm3805, %v4159, %v4155
      %4162 = vst [vmem:[#allocation9 + $0x2] sm:$0x1] %v4160
      %v4195 = vcombine.low %v3670, %v3671
      %v4196 = vcombine.low %v3672, %v3673
      %v4197 = vcombine.low %v3674, %v3675
      %v4198 = vcombine.low %v3676, %v3677
      %v4199 = vcombine.low %v3678, %v3679
      %v4200 = vcombine.low %v3680, %v3681
      %v4201 = vcombine.low %v3682, %v3683
      %v4202 = vcombine.low %v3684, %v3685
      %v4203 = vcombine.low %v3686, %v3687
      %v4204 = vcombine.low %v3688, %v3689
      %v4205 = vcombine.low %v3690, %v3691
      %v4206 = vcombine.low %v3692, %v3693
      %v4207 = vcombine.low %v3694, %v3695
      %v4208 = vcombine.low %v3696, %v3697
      %v4209 = vcombine.low %v3698, %v3699
      %v4210 = vcombine.low %v3700, %v3701
      %4211 = vset.pattern.permute.xlu0 0
      %4212 = vperm.xlu0 %4211, %v4195
      %v4213 = vpop.permute.xlu0 %4212
      %4214 = vset.pattern.permute.xlu0 0
      %4215 = vperm.xlu0 %4214, %v4196
      %v4216 = vpop.permute.xlu0 %4215
      %4217 = vset.pattern.permute.xlu0 0
      %4218 = vperm.xlu0 %4217, %v4197
      %v4219 = vpop.permute.xlu0 %4218
      %4220 = vset.pattern.permute.xlu0 0
      %4221 = vperm.xlu0 %4220, %v4198
      %v4222 = vpop.permute.xlu0 %4221
      %4223 = vset.pattern.permute.xlu0 0
      %4224 = vperm.xlu0 %4223, %v4199
      %v4225 = vpop.permute.xlu0 %4224
      %4226 = vset.pattern.permute.xlu0 0
      %4227 = vperm.xlu0 %4226, %v4200
      %v4228 = vpop.permute.xlu0 %4227
      %4229 = vset.pattern.permute.xlu0 0
      %4230 = vperm.xlu0 %4229, %v4201
      %v4231 = vpop.permute.xlu0 %4230
      %4232 = vset.pattern.permute.xlu0 0
      %4233 = vperm.xlu0 %4232, %v4202
      %v4234 = vpop.permute.xlu0 %4233
      %4235 = vset.pattern.permute.xlu0 0
      %4236 = vperm.xlu0 %4235, %v4203
      %v4237 = vpop.permute.xlu0 %4236
      %4238 = vset.pattern.permute.xlu0 0
      %4239 = vperm.xlu0 %4238, %v4204
      %v4240 = vpop.permute.xlu0 %4239
      %4241 = vset.pattern.permute.xlu0 0
      %4242 = vperm.xlu0 %4241, %v4205
      %v4243 = vpop.permute.xlu0 %4242
      %4244 = vset.pattern.permute.xlu0 0
      %4245 = vperm.xlu0 %4244, %v4206
      %v4246 = vpop.permute.xlu0 %4245
      %4247 = vset.pattern.permute.xlu0 0
      %4248 = vperm.xlu0 %4247, %v4207
      %v4249 = vpop.permute.xlu0 %4248
      %4250 = vset.pattern.permute.xlu0 0
      %4251 = vperm.xlu0 %4250, %v4208
      %v4252 = vpop.permute.xlu0 %4251
      %4253 = vset.pattern.permute.xlu0 0
      %4254 = vperm.xlu0 %4253, %v4209
      %v4255 = vpop.permute.xlu0 %4254
      %4256 = vset.pattern.permute.xlu0 0
      %4257 = vperm.xlu0 %4256, %v4210
      %v4258 = vpop.permute.xlu0 %4257
      %v4259 = vlaneseq
      %v4260 = vshrl.u32 %v4259, 7
      %v4261 = vsub.s32 %v110, %v4260
      %v4262 = vrot.slane %v4213, %v4261
      %v4263 = vlaneseq
      %v4264 = vshrl.u32 %v4263, 7
      %v4265 = vsub.s32 %v3702, %v4264
      %v4266 = vrot.slane %v4216, %v4265
      %v4267 = vsel %vm3707, %v4266, %v4262
      %v4268 = vlaneseq
      %v4269 = vshrl.u32 %v4268, 7
      %v4270 = vsub.s32 %v3709, %v4269
      %v4271 = vrot.slane %v4219, %v4270
      %v4272 = vsel %vm3714, %v4271, %v4267
      %v4273 = vlaneseq
      %v4274 = vshrl.u32 %v4273, 7
      %v4275 = vsub.s32 %v3716, %v4274
      %v4276 = vrot.slane %v4222, %v4275
      %v4277 = vsel %vm3721, %v4276, %v4272
      %v4278 = vlaneseq
      %v4279 = vshrl.u32 %v4278, 7
      %v4280 = vsub.s32 %v3723, %v4279
      %v4281 = vrot.slane %v4225, %v4280
      %v4282 = vsel %vm3728, %v4281, %v4277
      %v4283 = vlaneseq
      %v4284 = vshrl.u32 %v4283, 7
      %v4285 = vsub.s32 %v3730, %v4284
      %v4286 = vrot.slane %v4228, %v4285
      %v4287 = vsel %vm3735, %v4286, %v4282
      %v4288 = vlaneseq
      %v4289 = vshrl.u32 %v4288, 7
      %v4290 = vsub.s32 %v3737, %v4289
      %v4291 = vrot.slane %v4231, %v4290
      %v4292 = vsel %vm3742, %v4291, %v4287
      %v4293 = vlaneseq
      %v4294 = vshrl.u32 %v4293, 7
      %v4295 = vsub.s32 %v3744, %v4294
      %v4296 = vrot.slane %v4234, %v4295
      %v4297 = vsel %vm3749, %v4296, %v4292
      %v4298 = vlaneseq
      %v4299 = vshrl.u32 %v4298, 7
      %v4300 = vsub.s32 %v3751, %v4299
      %v4301 = vrot.slane %v4237, %v4300
      %v4302 = vsel %vm3756, %v4301, %v4297
      %v4303 = vlaneseq
      %v4304 = vshrl.u32 %v4303, 7
      %v4305 = vsub.s32 %v3758, %v4304
      %v4306 = vrot.slane %v4240, %v4305
      %v4307 = vsel %vm3763, %v4306, %v4302
      %v4308 = vlaneseq
      %v4309 = vshrl.u32 %v4308, 7
      %v4310 = vsub.s32 %v3765, %v4309
      %v4311 = vrot.slane %v4243, %v4310
      %v4312 = vsel %vm3770, %v4311, %v4307
      %v4313 = vlaneseq
      %v4314 = vshrl.u32 %v4313, 7
      %v4315 = vsub.s32 %v3772, %v4314
      %v4316 = vrot.slane %v4246, %v4315
      %v4317 = vsel %vm3777, %v4316, %v4312
      %v4318 = vlaneseq
      %v4319 = vshrl.u32 %v4318, 7
      %v4320 = vsub.s32 %v3779, %v4319
      %v4321 = vrot.slane %v4249, %v4320
      %v4322 = vsel %vm3784, %v4321, %v4317
      %v4323 = vlaneseq
      %v4324 = vshrl.u32 %v4323, 7
      %v4325 = vsub.s32 %v3786, %v4324
      %v4326 = vrot.slane %v4252, %v4325
      %v4327 = vsel %vm3791, %v4326, %v4322
      %v4328 = vlaneseq
      %v4329 = vshrl.u32 %v4328, 7
      %v4330 = vsub.s32 %v3793, %v4329
      %v4331 = vrot.slane %v4255, %v4330
      %v4332 = vsel %vm3798, %v4331, %v4327
      %v4333 = vlaneseq
      %v4334 = vshrl.u32 %v4333, 7
      %v4335 = vsub.s32 %v3800, %v4334
      %v4336 = vrot.slane %v4258, %v4335
      %v4337 = vsel %vm3805, %v4336, %v4332
      %4339 = vst [vmem:[#allocation9 + $0x3] sm:$0x1] %v4337
    $region33: #{_optok_forward_impl.1} parent=1 // pred_fallthru
      _
    // Predicated region
    $region34: #{_optok_forward_impl.1} parent=1 // pred_check
      _
    $region35: #{_optok_forward_impl.1} parent=1 // pred_check_branch
      %4341 = sbr.rel (0) target = $region37
    $region36: #{_optok_forward_impl.1} parent=1 // pred_region
      %s4343 = ssub.s32 64, 64
      %4344 = vsyncadd [#allocation5], %s4343
      %s4346 = sshll.u32 [#allocation9], 4
      %s4347 = int_to_ptr.vmem [resolvable:$true] %s4346
      %4349 = dma.vmem_to_hbm [thread:$0]  %s4347, 64, %s3, [#allocation5]
    $region37: #{_optok_forward_impl.1} parent=1 // pred_fallthru
      _
    // Predicated region
    $region38: #{_optok_forward_impl.1} parent=1 // pred_check
      _
    $region39: #{_optok_forward_impl.1} parent=1 // pred_check_branch
      %4351 = sbr.rel (0) target = $region41
    $region40: #{_optok_forward_impl.1} parent=1 // pred_region
      %4352 = dma.done [#allocation5], 64
    $region41: #{_optok_forward_impl.1} parent=1 // pred_fallthru
      _
    %4353 = vsyncpa [#allocation4], 1
    %4354 = vsyncpa [#allocation7], 1
    %4355 = vsyncpa [#allocation5], 1

</llo_original>
